<compile_context>
chip_gen: v5e
topology: v5e:2x2
jax: 0.10.0
libtpu: 0.0.40
codegen_flags: <defaults>
</compile_context>

<pallas_src>
import functools

import jax
import jax.numpy as jnp
from jax.experimental import pallas as pl
from jax.experimental.pallas import tpu as pltpu


def _round_up(n, m):
    return ((n + m - 1) // m) * m


# ----------------------------------------------------------------------------
# Fused Pallas kernel: LSTM layer 0 + layer 1 (wavefront) -> FC, single invocation.
# ----------------------------------------------------------------------------
def _fused_lstm_fc_kernel(x_ref, wih0_ref, whh0_ref, b0_ref,
                          wih1_ref, whh1_ref, b1_ref,
                          wfc_ref, bfc_ref, out_ref,
                          g0_sc, *, seq_len, batch):
    """All refs are whole-array VMEM blocks (no grid).

    x_ref   : (T*Bp, Fp)  bf16   time-major, batch/feature padded input
    wih*_ref: (Fin, 4H)   bf16   input->hidden weights (transposed vs PyTorch)
    whh*_ref: (H, 4H)     bf16   hidden->hidden weights (transposed vs PyTorch)
    b*_ref  : (1, 4H)     f32    combined bias (b_ih + b_hh)
    wfc_ref : (H, Cp)     bf16   FC weights (transposed, class-padded)
    bfc_ref : (1, Cp)     f32
    out_ref : (Bp, Cp)    f32    logits (padded)
    g0_sc   : (T*Bp, 4H)  f32    hoisted layer-0 input projection (no bias)
    """
    H = whh0_ref.shape[0]

    # Hoisted layer-0 input projection: one big MXU matmul, off the recurrence.
    g0_sc[...] = jnp.dot(x_ref[...], wih0_ref[...],
                         preferred_element_type=jnp.float32)

    b0 = b0_ref[...]
    b1 = b1_ref[...]

    def cell(gates, c):
        i_g = jax.nn.sigmoid(gates[:, 0 * H:1 * H])
        f_g = jax.nn.sigmoid(gates[:, 1 * H:2 * H])
        g_g = jnp.tanh(gates[:, 2 * H:3 * H])
        o_g = jax.nn.sigmoid(gates[:, 3 * H:4 * H])
        c = f_g * c + i_g * g_g
        h = o_g * jnp.tanh(c)
        return h, c

    c0 = jnp.zeros((batch, H), jnp.float32)
    c1 = jnp.zeros((batch, H), jnp.float32)
    h0_bf = None
    h1_bf = None

    # Wavefront over time: layer-0 step t, then layer-1 step t, one static-unrolled
    # loop.  Layer-1 step t depends only on (layer-0 step t, layer-1 step t-1), so
    # the scheduler can overlap it with layer-0 step t+1.
    for t in range(seq_len):
        rows = pl.ds(t * batch, batch)            # static, batch-aligned (8)

        # ---- layer 0, step t (bias folded per step; skip h @ W_hh at t == 0).
        g0 = g0_sc[rows, :] + b0
        if t > 0:
            g0 = g0 + jnp.dot(h0_bf, whh0_ref[...],
                              preferred_element_type=jnp.float32)
        h0, c0 = cell(g0, c0)
        h0_bf = h0.astype(jnp.bfloat16)           # reused: layer-1 input proj + next step

        # ---- layer 1, step t (per-step input projection from h0_t).
        g1 = jnp.dot(h0_bf, wih1_ref[...],
                     preferred_element_type=jnp.float32) + b1
        if t > 0:
            g1 = g1 + jnp.dot(h1_bf, whh1_ref[...],
                              preferred_element_type=jnp.float32)
        h1, c1 = cell(g1, c1)
        h1_bf = h1.astype(jnp.bfloat16)           # reused: next step + final FC

    # ---- nn.Dropout on out[:, -1, :] is identity in eval mode; final FC (bf16 MXU).
    out_ref[...] = (jnp.dot(h1_bf, wfc_ref[...],
                            preferred_element_type=jnp.float32)
                    + bfc_ref[...]).astype(out_ref.dtype)


# ----------------------------------------------------------------------------
# Wrappers
# ----------------------------------------------------------------------------
def _fused_lstm_fc(x2d, p, *, seq_len, batch):
    TB, Fp = x2d.shape
    H = p["whh0"].shape[0]
    Cp = p["wfc"].shape[1]
    kernel = functools.partial(_fused_lstm_fc_kernel, seq_len=seq_len, batch=batch)
    return pl.pallas_call(
        kernel,
        out_shape=jax.ShapeDtypeStruct((batch, Cp), jnp.float32),
        in_specs=[
            pl.BlockSpec((TB, Fp), lambda: (0, 0)),
            pl.BlockSpec(p["wih0"].shape, lambda: (0, 0)),
            pl.BlockSpec(p["whh0"].shape, lambda: (0, 0)),
            pl.BlockSpec(p["b0"].shape, lambda: (0, 0)),
            pl.BlockSpec(p["wih1"].shape, lambda: (0, 0)),
            pl.BlockSpec(p["whh1"].shape, lambda: (0, 0)),
            pl.BlockSpec(p["b1"].shape, lambda: (0, 0)),
            pl.BlockSpec(p["wfc"].shape, lambda: (0, 0)),
            pl.BlockSpec(p["bfc"].shape, lambda: (0, 0)),
        ],
        out_specs=pl.BlockSpec((batch, Cp), lambda: (0, 0)),
        scratch_shapes=[
            pltpu.VMEM((TB, 4 * H), jnp.float32),   # hoisted layer-0 gate inputs
        ],
    )(x2d, p["wih0"], p["whh0"], p["b0"],
      p["wih1"], p["whh1"], p["b1"], p["wfc"], p["bfc"])


@functools.partial(jax.jit, static_argnames=("num_classes",))
def lstm_forward(x, params, num_classes=10):
    """x: (B, T, input_size) batch_first, like the PyTorch module. Returns (B, C)."""
    B, T, F = x.shape
    Fp = params["wih0"].shape[0]
    Bp = _round_up(B, 8)                              # sublane-align the batch
    # Time-major + zero-pad batch/features (padding is inert: padded W_ih rows are 0).
    xt = jnp.transpose(x, (1, 0, 2)).astype(jnp.float32)        # (T, B, F)
    xt = jnp.pad(xt, ((0, 0), (0, Bp - B), (0, Fp - F)))        # (T, Bp, Fp)
    x2d = xt.reshape(T * Bp, Fp).astype(jnp.bfloat16)           # (T*Bp, Fp)
    out_p = _fused_lstm_fc(x2d, params, seq_len=T, batch=Bp)    # (Bp, Cp)
    return out_p[:B, :num_classes]


def init_params(key, input_size=100, hidden_size=128, num_layers=2, num_classes=10):
    """Kernel-ready params mirroring PyTorch LSTM init (uniform +/- 1/sqrt(H))."""
    assert num_layers == 2, "fused kernel implements the default 2-layer config"
    H = hidden_size
    Fp = _round_up(input_size, 128)
    Cp = _round_up(num_classes, 128)
    bound = 1.0 / jnp.sqrt(jnp.float32(H))
    keys = jax.random.split(key, num_layers * 4 + 2)
    params = {}
    k = 0
    for layer in range(num_layers):
        f_in = input_size if layer == 0 else H
        f_pad = Fp if layer == 0 else H
        w_ih = jax.random.uniform(keys[k], (4 * H, f_in), minval=-bound, maxval=bound); k += 1
        w_hh = jax.random.uniform(keys[k], (4 * H, H), minval=-bound, maxval=bound); k += 1
        b_ih = jax.random.uniform(keys[k], (4 * H,), minval=-bound, maxval=bound); k += 1
        b_hh = jax.random.uniform(keys[k], (4 * H,), minval=-bound, maxval=bound); k += 1
        w_ih_t = jnp.zeros((f_pad, 4 * H), jnp.float32).at[:f_in, :].set(w_ih.T)
        params[f"wih{layer}"] = w_ih_t.astype(jnp.bfloat16)               # (Fin, 4H)
        params[f"whh{layer}"] = w_hh.T.astype(jnp.bfloat16)               # (H, 4H)
        params[f"b{layer}"] = (b_ih + b_hh)[None, :].astype(jnp.float32)  # (1, 4H)
    w_fc = jax.random.uniform(keys[k], (num_classes, H), minval=-bound, maxval=bound); k += 1
    b_fc = jax.random.uniform(keys[k], (num_classes,), minval=-bound, maxval=bound)
    params["wfc"] = (jnp.zeros((H, Cp), jnp.float32)
                     .at[:, :num_classes].set(w_fc.T)).astype(jnp.bfloat16)
    params["bfc"] = jnp.zeros((1, Cp), jnp.float32).at[0, :num_classes].set(b_fc)
    return params


# ----------------------------------------------------------------------------
# Main
# ----------------------------------------------------------------------------
if __name__ == "__main__":
    INPUT_SIZE = 100
    HIDDEN_SIZE = 128
    NUM_LAYERS = 2
    NUM_CLASSES = 10
    BATCH = 2
    SEQ = 8

    key = jax.random.PRNGKey(0)
    k_x, k_p = jax.random.split(key)
    x = jax.random.normal(k_x, (BATCH, SEQ, INPUT_SIZE), dtype=jnp.float32)
    params = init_params(k_p, INPUT_SIZE, HIDDEN_SIZE, NUM_LAYERS, NUM_CLASSES)

    out = lstm_forward(x, params, num_classes=NUM_CLASSES)
    jax.block_until_ready(out)
    assert out.shape == (BATCH, NUM_CLASSES), out.shape
    print("KERNEL_OK")
</pallas_src>

<mosaic_0001>
module attributes {stable_mosaic.version = 11 : i64} {
  func.func @_fused_lstm_fc_kernel(%arg0: memref<64x128xbf16, #tpu.memory_space<vmem>>, %arg1: memref<128x512xbf16, #tpu.memory_space<vmem>>, %arg2: memref<128x512xbf16, #tpu.memory_space<vmem>>, %arg3: memref<1x512xf32, #tpu.memory_space<vmem>>, %arg4: memref<128x512xbf16, #tpu.memory_space<vmem>>, %arg5: memref<128x512xbf16, #tpu.memory_space<vmem>>, %arg6: memref<1x512xf32, #tpu.memory_space<vmem>>, %arg7: memref<128x128xbf16, #tpu.memory_space<vmem>>, %arg8: memref<1x128xf32, #tpu.memory_space<vmem>>, %arg9: memref<8x128xf32, #tpu.memory_space<vmem>>, %arg10: memref<64x512xf32, #tpu.memory_space<vmem>>) attributes {dimension_semantics = [], scalar_prefetch = 0 : i64, scratch_operands = 1 : i64, tpu.core_type = #tpu.core_type<tc>} {
    %c0 = arith.constant 0 : index
    %c0_0 = arith.constant 0 : index
    %0 = vector.load %arg0[%c0, %c0_0] : memref<64x128xbf16, #tpu.memory_space<vmem>>, vector<64x128xbf16>
    %c0_1 = arith.constant 0 : index
    %c0_2 = arith.constant 0 : index
    %1 = vector.load %arg1[%c0_1, %c0_2] : memref<128x512xbf16, #tpu.memory_space<vmem>>, vector<128x512xbf16>
    %cst = arith.constant dense<0.000000e+00> : vector<64x512xf32>
    %2 = tpu.matmul %0, %1, %cst {dimension_numbers = #tpu.dot_dimension_numbers<[1], [0], [0], [1], [0, 0, 1, 1], [], []>} : vector<64x128xbf16>, vector<128x512xbf16>, vector<64x512xf32> -> vector<64x512xf32>
    %c0_3 = arith.constant 0 : index
    %c0_4 = arith.constant 0 : index
    %3 = vector.load %arg10[%c0_3, %c0_4] : memref<64x512xf32, #tpu.memory_space<vmem>>, vector<64x512xf32>
    tpu.vector_store %arg10[%c0_3, %c0_4], %2 {strides = array<i32>} : memref<64x512xf32, #tpu.memory_space<vmem>>, vector<64x512xf32>,
    %c0_5 = arith.constant 0 : index
    %c0_6 = arith.constant 0 : index
    %4 = vector.load %arg3[%c0_5, %c0_6] : memref<1x512xf32, #tpu.memory_space<vmem>>, vector<1x512xf32>
    %c0_7 = arith.constant 0 : index
    %c0_8 = arith.constant 0 : index
    %5 = vector.load %arg6[%c0_7, %c0_8] : memref<1x512xf32, #tpu.memory_space<vmem>>, vector<1x512xf32>
    %cst_9 = arith.constant 0.000000e+00 : f32
    %6 = vector.broadcast %cst_9 : f32 to vector<8x128xf32>
    %cst_10 = arith.constant 0.000000e+00 : f32
    %7 = vector.broadcast %cst_10 : f32 to vector<8x128xf32>
    %c0_11 = arith.constant 0 : index
    %c0_12 = arith.constant 0 : index
    %8 = vector.load %arg10[%c0_11, %c0_12] : memref<64x512xf32, #tpu.memory_space<vmem>>, vector<8x512xf32>
    %9 = vector.broadcast %4 : vector<1x512xf32> to vector<8x512xf32>
    %10 = arith.addf %8, %9 : vector<8x512xf32>
    %11 = vector.extract_strided_slice %10 {offsets = [0, 0], sizes = [8, 128], strides = [1, 1]} : vector<8x512xf32> to vector<8x128xf32>
    %12 = arith.negf %11 : vector<8x128xf32>
    %13 = math.exp %12 : vector<8x128xf32>
    %cst_13 = arith.constant 1.000000e+00 : f32
    %14 = vector.broadcast %cst_13 : f32 to vector<8x128xf32>
    %15 = arith.addf %14, %13 : vector<8x128xf32>
    %16 = arith.divf %14, %15 : vector<8x128xf32>
    %17 = vector.extract_strided_slice %10 {offsets = [0, 128], sizes = [8, 128], strides = [1, 1]} : vector<8x512xf32> to vector<8x128xf32>
    %18 = arith.negf %17 : vector<8x128xf32>
    %19 = math.exp %18 : vector<8x128xf32>
    %cst_14 = arith.constant 1.000000e+00 : f32
    %20 = vector.broadcast %cst_14 : f32 to vector<8x128xf32>
    %21 = arith.addf %20, %19 : vector<8x128xf32>
    %22 = arith.divf %20, %21 : vector<8x128xf32>
    %23 = vector.extract_strided_slice %10 {offsets = [0, 256], sizes = [8, 128], strides = [1, 1]} : vector<8x512xf32> to vector<8x128xf32>
    %24 = math.tanh %23 : vector<8x128xf32>
    %25 = vector.extract_strided_slice %10 {offsets = [0, 384], sizes = [8, 128], strides = [1, 1]} : vector<8x512xf32> to vector<8x128xf32>
    %26 = arith.negf %25 : vector<8x128xf32>
    %27 = math.exp %26 : vector<8x128xf32>
    %cst_15 = arith.constant 1.000000e+00 : f32
    %28 = vector.broadcast %cst_15 : f32 to vector<8x128xf32>
    %29 = arith.addf %28, %27 : vector<8x128xf32>
    %30 = arith.divf %28, %29 : vector<8x128xf32>
    %31 = arith.mulf %22, %6 : vector<8x128xf32>
    %32 = arith.mulf %16, %24 : vector<8x128xf32>
    %33 = arith.addf %31, %32 : vector<8x128xf32>
    %34 = math.tanh %33 : vector<8x128xf32>
    %35 = arith.mulf %30, %34 : vector<8x128xf32>
    %36 = arith.truncf %35 : vector<8x128xf32> to vector<8x128xbf16>
    %c0_16 = arith.constant 0 : index
    %c0_17 = arith.constant 0 : index
    %37 = vector.load %arg4[%c0_16, %c0_17] : memref<128x512xbf16, #tpu.memory_space<vmem>>, vector<128x512xbf16>
    %cst_18 = arith.constant dense<0.000000e+00> : vector<8x512xf32>
    %38 = tpu.matmul %36, %37, %cst_18 {dimension_numbers = #tpu.dot_dimension_numbers<[1], [0], [0], [1], [0, 0, 1, 1], [], []>} : vector<8x128xbf16>, vector<128x512xbf16>, vector<8x512xf32> -> vector<8x512xf32>
    %39 = vector.broadcast %5 : vector<1x512xf32> to vector<8x512xf32>
    %40 = arith.addf %38, %39 : vector<8x512xf32>
    %41 = vector.extract_strided_slice %40 {offsets = [0, 0], sizes = [8, 128], strides = [1, 1]} : vector<8x512xf32> to vector<8x128xf32>
    %42 = arith.negf %41 : vector<8x128xf32>
    %43 = math.exp %42 : vector<8x128xf32>
    %cst_19 = arith.constant 1.000000e+00 : f32
    %44 = vector.broadcast %cst_19 : f32 to vector<8x128xf32>
    %45 = arith.addf %44, %43 : vector<8x128xf32>
    %46 = arith.divf %44, %45 : vector<8x128xf32>
    %47 = vector.extract_strided_slice %40 {offsets = [0, 128], sizes = [8, 128], strides = [1, 1]} : vector<8x512xf32> to vector<8x128xf32>
    %48 = arith.negf %47 : vector<8x128xf32>
    %49 = math.exp %48 : vector<8x128xf32>
    %cst_20 = arith.constant 1.000000e+00 : f32
    %50 = vector.broadcast %cst_20 : f32 to vector<8x128xf32>
    %51 = arith.addf %50, %49 : vector<8x128xf32>
    %52 = arith.divf %50, %51 : vector<8x128xf32>
    %53 = vector.extract_strided_slice %40 {offsets = [0, 256], sizes = [8, 128], strides = [1, 1]} : vector<8x512xf32> to vector<8x128xf32>
    %54 = math.tanh %53 : vector<8x128xf32>
    %55 = vector.extract_strided_slice %40 {offsets = [0, 384], sizes = [8, 128], strides = [1, 1]} : vector<8x512xf32> to vector<8x128xf32>
    %56 = arith.negf %55 : vector<8x128xf32>
    %57 = math.exp %56 : vector<8x128xf32>
    %cst_21 = arith.constant 1.000000e+00 : f32
    %58 = vector.broadcast %cst_21 : f32 to vector<8x128xf32>
    %59 = arith.addf %58, %57 : vector<8x128xf32>
    %60 = arith.divf %58, %59 : vector<8x128xf32>
    %61 = arith.mulf %52, %7 : vector<8x128xf32>
    %62 = arith.mulf %46, %54 : vector<8x128xf32>
    %63 = arith.addf %61, %62 : vector<8x128xf32>
    %64 = math.tanh %63 : vector<8x128xf32>
    %65 = arith.mulf %60, %64 : vector<8x128xf32>
    %66 = arith.truncf %65 : vector<8x128xf32> to vector<8x128xbf16>
    %c8 = arith.constant 8 : index
    %c0_22 = arith.constant 0 : index
    %67 = vector.load %arg10[%c8, %c0_22] : memref<64x512xf32, #tpu.memory_space<vmem>>, vector<8x512xf32>
    %68 = vector.broadcast %4 : vector<1x512xf32> to vector<8x512xf32>
    %69 = arith.addf %67, %68 : vector<8x512xf32>
    %c0_23 = arith.constant 0 : index
    %c0_24 = arith.constant 0 : index
    %70 = vector.load %arg2[%c0_23, %c0_24] : memref<128x512xbf16, #tpu.memory_space<vmem>>, vector<128x512xbf16>
    %cst_25 = arith.constant dense<0.000000e+00> : vector<8x512xf32>
    %71 = tpu.matmul %36, %70, %cst_25 {dimension_numbers = #tpu.dot_dimension_numbers<[1], [0], [0], [1], [0, 0, 1, 1], [], []>} : vector<8x128xbf16>, vector<128x512xbf16>, vector<8x512xf32> -> vector<8x512xf32>
    %72 = arith.addf %69, %71 : vector<8x512xf32>
    %73 = vector.extract_strided_slice %72 {offsets = [0, 0], sizes = [8, 128], strides = [1, 1]} : vector<8x512xf32> to vector<8x128xf32>
    %74 = arith.negf %73 : vector<8x128xf32>
    %75 = math.exp %74 : vector<8x128xf32>
    %cst_26 = arith.constant 1.000000e+00 : f32
    %76 = vector.broadcast %cst_26 : f32 to vector<8x128xf32>
    %77 = arith.addf %76, %75 : vector<8x128xf32>
    %78 = arith.divf %76, %77 : vector<8x128xf32>
    %79 = vector.extract_strided_slice %72 {offsets = [0, 128], sizes = [8, 128], strides = [1, 1]} : vector<8x512xf32> to vector<8x128xf32>
    %80 = arith.negf %79 : vector<8x128xf32>
    %81 = math.exp %80 : vector<8x128xf32>
    %cst_27 = arith.constant 1.000000e+00 : f32
    %82 = vector.broadcast %cst_27 : f32 to vector<8x128xf32>
    %83 = arith.addf %82, %81 : vector<8x128xf32>
    %84 = arith.divf %82, %83 : vector<8x128xf32>
    %85 = vector.extract_strided_slice %72 {offsets = [0, 256], sizes = [8, 128], strides = [1, 1]} : vector<8x512xf32> to vector<8x128xf32>
    %86 = math.tanh %85 : vector<8x128xf32>
    %87 = vector.extract_strided_slice %72 {offsets = [0, 384], sizes = [8, 128], strides = [1, 1]} : vector<8x512xf32> to vector<8x128xf32>
    %88 = arith.negf %87 : vector<8x128xf32>
    %89 = math.exp %88 : vector<8x128xf32>
    %cst_28 = arith.constant 1.000000e+00 : f32
    %90 = vector.broadcast %cst_28 : f32 to vector<8x128xf32>
    %91 = arith.addf %90, %89 : vector<8x128xf32>
    %92 = arith.divf %90, %91 : vector<8x128xf32>
    %93 = arith.mulf %84, %33 : vector<8x128xf32>
    %94 = arith.mulf %78, %86 : vector<8x128xf32>
    %95 = arith.addf %93, %94 : vector<8x128xf32>
    %96 = math.tanh %95 : vector<8x128xf32>
    %97 = arith.mulf %92, %96 : vector<8x128xf32>
    %98 = arith.truncf %97 : vector<8x128xf32> to vector<8x128xbf16>
    %c0_29 = arith.constant 0 : index
    %c0_30 = arith.constant 0 : index
    %99 = vector.load %arg4[%c0_29, %c0_30] : memref<128x512xbf16, #tpu.memory_space<vmem>>, vector<128x512xbf16>
    %cst_31 = arith.constant dense<0.000000e+00> : vector<8x512xf32>
    %100 = tpu.matmul %98, %99, %cst_31 {dimension_numbers = #tpu.dot_dimension_numbers<[1], [0], [0], [1], [0, 0, 1, 1], [], []>} : vector<8x128xbf16>, vector<128x512xbf16>, vector<8x512xf32> -> vector<8x512xf32>
    %101 = vector.broadcast %5 : vector<1x512xf32> to vector<8x512xf32>
    %102 = arith.addf %100, %101 : vector<8x512xf32>
    %c0_32 = arith.constant 0 : index
    %c0_33 = arith.constant 0 : index
    %103 = vector.load %arg5[%c0_32, %c0_33] : memref<128x512xbf16, #tpu.memory_space<vmem>>, vector<128x512xbf16>
    %cst_34 = arith.constant dense<0.000000e+00> : vector<8x512xf32>
    %104 = tpu.matmul %66, %103, %cst_34 {dimension_numbers = #tpu.dot_dimension_numbers<[1], [0], [0], [1], [0, 0, 1, 1], [], []>} : vector<8x128xbf16>, vector<128x512xbf16>, vector<8x512xf32> -> vector<8x512xf32>
    %105 = arith.addf %102, %104 : vector<8x512xf32>
    %106 = vector.extract_strided_slice %105 {offsets = [0, 0], sizes = [8, 128], strides = [1, 1]} : vector<8x512xf32> to vector<8x128xf32>
    %107 = arith.negf %106 : vector<8x128xf32>
    %108 = math.exp %107 : vector<8x128xf32>
    %cst_35 = arith.constant 1.000000e+00 : f32
    %109 = vector.broadcast %cst_35 : f32 to vector<8x128xf32>
    %110 = arith.addf %109, %108 : vector<8x128xf32>
    %111 = arith.divf %109, %110 : vector<8x128xf32>
    %112 = vector.extract_strided_slice %105 {offsets = [0, 128], sizes = [8, 128], strides = [1, 1]} : vector<8x512xf32> to vector<8x128xf32>
    %113 = arith.negf %112 : vector<8x128xf32>
    %114 = math.exp %113 : vector<8x128xf32>
    %cst_36 = arith.constant 1.000000e+00 : f32
    %115 = vector.broadcast %cst_36 : f32 to vector<8x128xf32>
    %116 = arith.addf %115, %114 : vector<8x128xf32>
    %117 = arith.divf %115, %116 : vector<8x128xf32>
    %118 = vector.extract_strided_slice %105 {offsets = [0, 256], sizes = [8, 128], strides = [1, 1]} : vector<8x512xf32> to vector<8x128xf32>
    %119 = math.tanh %118 : vector<8x128xf32>
    %120 = vector.extract_strided_slice %105 {offsets = [0, 384], sizes = [8, 128], strides = [1, 1]} : vector<8x512xf32> to vector<8x128xf32>
    %121 = arith.negf %120 : vector<8x128xf32>
    %122 = math.exp %121 : vector<8x128xf32>
    %cst_37 = arith.constant 1.000000e+00 : f32
    %123 = vector.broadcast %cst_37 : f32 to vector<8x128xf32>
    %124 = arith.addf %123, %122 : vector<8x128xf32>
    %125 = arith.divf %123, %124 : vector<8x128xf32>
    %126 = arith.mulf %117, %63 : vector<8x128xf32>
    %127 = arith.mulf %111, %119 : vector<8x128xf32>
    %128 = arith.addf %126, %127 : vector<8x128xf32>
    %129 = math.tanh %128 : vector<8x128xf32>
    %130 = arith.mulf %125, %129 : vector<8x128xf32>
    %131 = arith.truncf %130 : vector<8x128xf32> to vector<8x128xbf16>
    %c16 = arith.constant 16 : index
    %c0_38 = arith.constant 0 : index
    %132 = vector.load %arg10[%c16, %c0_38] : memref<64x512xf32, #tpu.memory_space<vmem>>, vector<8x512xf32>
    %133 = vector.broadcast %4 : vector<1x512xf32> to vector<8x512xf32>
    %134 = arith.addf %132, %133 : vector<8x512xf32>
    %c0_39 = arith.constant 0 : index
    %c0_40 = arith.constant 0 : index
    %135 = vector.load %arg2[%c0_39, %c0_40] : memref<128x512xbf16, #tpu.memory_space<vmem>>, vector<128x512xbf16>
    %cst_41 = arith.constant dense<0.000000e+00> : vector<8x512xf32>
    %136 = tpu.matmul %98, %135, %cst_41 {dimension_numbers = #tpu.dot_dimension_numbers<[1], [0], [0], [1], [0, 0, 1, 1], [], []>} : vector<8x128xbf16>, vector<128x512xbf16>, vector<8x512xf32> -> vector<8x512xf32>
    %137 = arith.addf %134, %136 : vector<8x512xf32>
    %138 = vector.extract_strided_slice %137 {offsets = [0, 0], sizes = [8, 128], strides = [1, 1]} : vector<8x512xf32> to vector<8x128xf32>
    %139 = arith.negf %138 : vector<8x128xf32>
    %140 = math.exp %139 : vector<8x128xf32>
    %cst_42 = arith.constant 1.000000e+00 : f32
    %141 = vector.broadcast %cst_42 : f32 to vector<8x128xf32>
    %142 = arith.addf %141, %140 : vector<8x128xf32>
    %143 = arith.divf %141, %142 : vector<8x128xf32>
    %144 = vector.extract_strided_slice %137 {offsets = [0, 128], sizes = [8, 128], strides = [1, 1]} : vector<8x512xf32> to vector<8x128xf32>
    %145 = arith.negf %144 : vector<8x128xf32>
    %146 = math.exp %145 : vector<8x128xf32>
    %cst_43 = arith.constant 1.000000e+00 : f32
    %147 = vector.broadcast %cst_43 : f32 to vector<8x128xf32>
    %148 = arith.addf %147, %146 : vector<8x128xf32>
    %149 = arith.divf %147, %148 : vector<8x128xf32>
    %150 = vector.extract_strided_slice %137 {offsets = [0, 256], sizes = [8, 128], strides = [1, 1]} : vector<8x512xf32> to vector<8x128xf32>
    %151 = math.tanh %150 : vector<8x128xf32>
    %152 = vector.extract_strided_slice %137 {offsets = [0, 384], sizes = [8, 128], strides = [1, 1]} : vector<8x512xf32> to vector<8x128xf32>
    %153 = arith.negf %152 : vector<8x128xf32>
    %154 = math.exp %153 : vector<8x128xf32>
    %cst_44 = arith.constant 1.000000e+00 : f32
    %155 = vector.broadcast %cst_44 : f32 to vector<8x128xf32>
    %156 = arith.addf %155, %154 : vector<8x128xf32>
    %157 = arith.divf %155, %156 : vector<8x128xf32>
    %158 = arith.mulf %149, %95 : vector<8x128xf32>
    %159 = arith.mulf %143, %151 : vector<8x128xf32>
    %160 = arith.addf %158, %159 : vector<8x128xf32>
    %161 = math.tanh %160 : vector<8x128xf32>
    %162 = arith.mulf %157, %161 : vector<8x128xf32>
    %163 = arith.truncf %162 : vector<8x128xf32> to vector<8x128xbf16>
    %c0_45 = arith.constant 0 : index
    %c0_46 = arith.constant 0 : index
    %164 = vector.load %arg4[%c0_45, %c0_46] : memref<128x512xbf16, #tpu.memory_space<vmem>>, vector<128x512xbf16>
    %cst_47 = arith.constant dense<0.000000e+00> : vector<8x512xf32>
    %165 = tpu.matmul %163, %164, %cst_47 {dimension_numbers = #tpu.dot_dimension_numbers<[1], [0], [0], [1], [0, 0, 1, 1], [], []>} : vector<8x128xbf16>, vector<128x512xbf16>, vector<8x512xf32> -> vector<8x512xf32>
    %166 = vector.broadcast %5 : vector<1x512xf32> to vector<8x512xf32>
    %167 = arith.addf %165, %166 : vector<8x512xf32>
    %c0_48 = arith.constant 0 : index
    %c0_49 = arith.constant 0 : index
    %168 = vector.load %arg5[%c0_48, %c0_49] : memref<128x512xbf16, #tpu.memory_space<vmem>>, vector<128x512xbf16>
    %cst_50 = arith.constant dense<0.000000e+00> : vector<8x512xf32>
    %169 = tpu.matmul %131, %168, %cst_50 {dimension_numbers = #tpu.dot_dimension_numbers<[1], [0], [0], [1], [0, 0, 1, 1], [], []>} : vector<8x128xbf16>, vector<128x512xbf16>, vector<8x512xf32> -> vector<8x512xf32>
    %170 = arith.addf %167, %169 : vector<8x512xf32>
    %171 = vector.extract_strided_slice %170 {offsets = [0, 0], sizes = [8, 128], strides = [1, 1]} : vector<8x512xf32> to vector<8x128xf32>
    %172 = arith.negf %171 : vector<8x128xf32>
    %173 = math.exp %172 : vector<8x128xf32>
    %cst_51 = arith.constant 1.000000e+00 : f32
    %174 = vector.broadcast %cst_51 : f32 to vector<8x128xf32>
    %175 = arith.addf %174, %173 : vector<8x128xf32>
    %176 = arith.divf %174, %175 : vector<8x128xf32>
    %177 = vector.extract_strided_slice %170 {offsets = [0, 128], sizes = [8, 128], strides = [1, 1]} : vector<8x512xf32> to vector<8x128xf32>
    %178 = arith.negf %177 : vector<8x128xf32>
    %179 = math.exp %178 : vector<8x128xf32>
    %cst_52 = arith.constant 1.000000e+00 : f32
    %180 = vector.broadcast %cst_52 : f32 to vector<8x128xf32>
    %181 = arith.addf %180, %179 : vector<8x128xf32>
    %182 = arith.divf %180, %181 : vector<8x128xf32>
    %183 = vector.extract_strided_slice %170 {offsets = [0, 256], sizes = [8, 128], strides = [1, 1]} : vector<8x512xf32> to vector<8x128xf32>
    %184 = math.tanh %183 : vector<8x128xf32>
    %185 = vector.extract_strided_slice %170 {offsets = [0, 384], sizes = [8, 128], strides = [1, 1]} : vector<8x512xf32> to vector<8x128xf32>
    %186 = arith.negf %185 : vector<8x128xf32>
    %187 = math.exp %186 : vector<8x128xf32>
    %cst_53 = arith.constant 1.000000e+00 : f32
    %188 = vector.broadcast %cst_53 : f32 to vector<8x128xf32>
    %189 = arith.addf %188, %187 : vector<8x128xf32>
    %190 = arith.divf %188, %189 : vector<8x128xf32>
    %191 = arith.mulf %182, %128 : vector<8x128xf32>
    %192 = arith.mulf %176, %184 : vector<8x128xf32>
    %193 = arith.addf %191, %192 : vector<8x128xf32>
    %194 = math.tanh %193 : vector<8x128xf32>
    %195 = arith.mulf %190, %194 : vector<8x128xf32>
    %196 = arith.truncf %195 : vector<8x128xf32> to vector<8x128xbf16>
    %c24 = arith.constant 24 : index
    %c0_54 = arith.constant 0 : index
    %197 = vector.load %arg10[%c24, %c0_54] : memref<64x512xf32, #tpu.memory_space<vmem>>, vector<8x512xf32>
    %198 = vector.broadcast %4 : vector<1x512xf32> to vector<8x512xf32>
    %199 = arith.addf %197, %198 : vector<8x512xf32>
    %c0_55 = arith.constant 0 : index
    %c0_56 = arith.constant 0 : index
    %200 = vector.load %arg2[%c0_55, %c0_56] : memref<128x512xbf16, #tpu.memory_space<vmem>>, vector<128x512xbf16>
    %cst_57 = arith.constant dense<0.000000e+00> : vector<8x512xf32>
    %201 = tpu.matmul %163, %200, %cst_57 {dimension_numbers = #tpu.dot_dimension_numbers<[1], [0], [0], [1], [0, 0, 1, 1], [], []>} : vector<8x128xbf16>, vector<128x512xbf16>, vector<8x512xf32> -> vector<8x512xf32>
    %202 = arith.addf %199, %201 : vector<8x512xf32>
    %203 = vector.extract_strided_slice %202 {offsets = [0, 0], sizes = [8, 128], strides = [1, 1]} : vector<8x512xf32> to vector<8x128xf32>
    %204 = arith.negf %203 : vector<8x128xf32>
    %205 = math.exp %204 : vector<8x128xf32>
    %cst_58 = arith.constant 1.000000e+00 : f32
    %206 = vector.broadcast %cst_58 : f32 to vector<8x128xf32>
    %207 = arith.addf %206, %205 : vector<8x128xf32>
    %208 = arith.divf %206, %207 : vector<8x128xf32>
    %209 = vector.extract_strided_slice %202 {offsets = [0, 128], sizes = [8, 128], strides = [1, 1]} : vector<8x512xf32> to vector<8x128xf32>
    %210 = arith.negf %209 : vector<8x128xf32>
    %211 = math.exp %210 : vector<8x128xf32>
    %cst_59 = arith.constant 1.000000e+00 : f32
    %212 = vector.broadcast %cst_59 : f32 to vector<8x128xf32>
    %213 = arith.addf %212, %211 : vector<8x128xf32>
    %214 = arith.divf %212, %213 : vector<8x128xf32>
    %215 = vector.extract_strided_slice %202 {offsets = [0, 256], sizes = [8, 128], strides = [1, 1]} : vector<8x512xf32> to vector<8x128xf32>
    %216 = math.tanh %215 : vector<8x128xf32>
    %217 = vector.extract_strided_slice %202 {offsets = [0, 384], sizes = [8, 128], strides = [1, 1]} : vector<8x512xf32> to vector<8x128xf32>
    %218 = arith.negf %217 : vector<8x128xf32>
    %219 = math.exp %218 : vector<8x128xf32>
    %cst_60 = arith.constant 1.000000e+00 : f32
    %220 = vector.broadcast %cst_60 : f32 to vector<8x128xf32>
    %221 = arith.addf %220, %219 : vector<8x128xf32>
    %222 = arith.divf %220, %221 : vector<8x128xf32>
    %223 = arith.mulf %214, %160 : vector<8x128xf32>
    %224 = arith.mulf %208, %216 : vector<8x128xf32>
    %225 = arith.addf %223, %224 : vector<8x128xf32>
    %226 = math.tanh %225 : vector<8x128xf32>
    %227 = arith.mulf %222, %226 : vector<8x128xf32>
    %228 = arith.truncf %227 : vector<8x128xf32> to vector<8x128xbf16>
    %c0_61 = arith.constant 0 : index
    %c0_62 = arith.constant 0 : index
    %229 = vector.load %arg4[%c0_61, %c0_62] : memref<128x512xbf16, #tpu.memory_space<vmem>>, vector<128x512xbf16>
    %cst_63 = arith.constant dense<0.000000e+00> : vector<8x512xf32>
    %230 = tpu.matmul %228, %229, %cst_63 {dimension_numbers = #tpu.dot_dimension_numbers<[1], [0], [0], [1], [0, 0, 1, 1], [], []>} : vector<8x128xbf16>, vector<128x512xbf16>, vector<8x512xf32> -> vector<8x512xf32>
    %231 = vector.broadcast %5 : vector<1x512xf32> to vector<8x512xf32>
    %232 = arith.addf %230, %231 : vector<8x512xf32>
    %c0_64 = arith.constant 0 : index
    %c0_65 = arith.constant 0 : index
    %233 = vector.load %arg5[%c0_64, %c0_65] : memref<128x512xbf16, #tpu.memory_space<vmem>>, vector<128x512xbf16>
    %cst_66 = arith.constant dense<0.000000e+00> : vector<8x512xf32>
    %234 = tpu.matmul %196, %233, %cst_66 {dimension_numbers = #tpu.dot_dimension_numbers<[1], [0], [0], [1], [0, 0, 1, 1], [], []>} : vector<8x128xbf16>, vector<128x512xbf16>, vector<8x512xf32> -> vector<8x512xf32>
    %235 = arith.addf %232, %234 : vector<8x512xf32>
    %236 = vector.extract_strided_slice %235 {offsets = [0, 0], sizes = [8, 128], strides = [1, 1]} : vector<8x512xf32> to vector<8x128xf32>
    %237 = arith.negf %236 : vector<8x128xf32>
    %238 = math.exp %237 : vector<8x128xf32>
    %cst_67 = arith.constant 1.000000e+00 : f32
    %239 = vector.broadcast %cst_67 : f32 to vector<8x128xf32>
    %240 = arith.addf %239, %238 : vector<8x128xf32>
    %241 = arith.divf %239, %240 : vector<8x128xf32>
    %242 = vector.extract_strided_slice %235 {offsets = [0, 128], sizes = [8, 128], strides = [1, 1]} : vector<8x512xf32> to vector<8x128xf32>
    %243 = arith.negf %242 : vector<8x128xf32>
    %244 = math.exp %243 : vector<8x128xf32>
    %cst_68 = arith.constant 1.000000e+00 : f32
    %245 = vector.broadcast %cst_68 : f32 to vector<8x128xf32>
    %246 = arith.addf %245, %244 : vector<8x128xf32>
    %247 = arith.divf %245, %246 : vector<8x128xf32>
    %248 = vector.extract_strided_slice %235 {offsets = [0, 256], sizes = [8, 128], strides = [1, 1]} : vector<8x512xf32> to vector<8x128xf32>
    %249 = math.tanh %248 : vector<8x128xf32>
    %250 = vector.extract_strided_slice %235 {offsets = [0, 384], sizes = [8, 128], strides = [1, 1]} : vector<8x512xf32> to vector<8x128xf32>
    %251 = arith.negf %250 : vector<8x128xf32>
    %252 = math.exp %251 : vector<8x128xf32>
    %cst_69 = arith.constant 1.000000e+00 : f32
    %253 = vector.broadcast %cst_69 : f32 to vector<8x128xf32>
    %254 = arith.addf %253, %252 : vector<8x128xf32>
    %255 = arith.divf %253, %254 : vector<8x128xf32>
    %256 = arith.mulf %247, %193 : vector<8x128xf32>
    %257 = arith.mulf %241, %249 : vector<8x128xf32>
    %258 = arith.addf %256, %257 : vector<8x128xf32>
    %259 = math.tanh %258 : vector<8x128xf32>
    %260 = arith.mulf %255, %259 : vector<8x128xf32>
    %261 = arith.truncf %260 : vector<8x128xf32> to vector<8x128xbf16>
    %c32 = arith.constant 32 : index
    %c0_70 = arith.constant 0 : index
    %262 = vector.load %arg10[%c32, %c0_70] : memref<64x512xf32, #tpu.memory_space<vmem>>, vector<8x512xf32>
    %263 = vector.broadcast %4 : vector<1x512xf32> to vector<8x512xf32>
    %264 = arith.addf %262, %263 : vector<8x512xf32>
    %c0_71 = arith.constant 0 : index
    %c0_72 = arith.constant 0 : index
    %265 = vector.load %arg2[%c0_71, %c0_72] : memref<128x512xbf16, #tpu.memory_space<vmem>>, vector<128x512xbf16>
    %cst_73 = arith.constant dense<0.000000e+00> : vector<8x512xf32>
    %266 = tpu.matmul %228, %265, %cst_73 {dimension_numbers = #tpu.dot_dimension_numbers<[1], [0], [0], [1], [0, 0, 1, 1], [], []>} : vector<8x128xbf16>, vector<128x512xbf16>, vector<8x512xf32> -> vector<8x512xf32>
    %267 = arith.addf %264, %266 : vector<8x512xf32>
    %268 = vector.extract_strided_slice %267 {offsets = [0, 0], sizes = [8, 128], strides = [1, 1]} : vector<8x512xf32> to vector<8x128xf32>
    %269 = arith.negf %268 : vector<8x128xf32>
    %270 = math.exp %269 : vector<8x128xf32>
    %cst_74 = arith.constant 1.000000e+00 : f32
    %271 = vector.broadcast %cst_74 : f32 to vector<8x128xf32>
    %272 = arith.addf %271, %270 : vector<8x128xf32>
    %273 = arith.divf %271, %272 : vector<8x128xf32>
    %274 = vector.extract_strided_slice %267 {offsets = [0, 128], sizes = [8, 128], strides = [1, 1]} : vector<8x512xf32> to vector<8x128xf32>
    %275 = arith.negf %274 : vector<8x128xf32>
    %276 = math.exp %275 : vector<8x128xf32>
    %cst_75 = arith.constant 1.000000e+00 : f32
    %277 = vector.broadcast %cst_75 : f32 to vector<8x128xf32>
    %278 = arith.addf %277, %276 : vector<8x128xf32>
    %279 = arith.divf %277, %278 : vector<8x128xf32>
    %280 = vector.extract_strided_slice %267 {offsets = [0, 256], sizes = [8, 128], strides = [1, 1]} : vector<8x512xf32> to vector<8x128xf32>
    %281 = math.tanh %280 : vector<8x128xf32>
    %282 = vector.extract_strided_slice %267 {offsets = [0, 384], sizes = [8, 128], strides = [1, 1]} : vector<8x512xf32> to vector<8x128xf32>
    %283 = arith.negf %282 : vector<8x128xf32>
    %284 = math.exp %283 : vector<8x128xf32>
    %cst_76 = arith.constant 1.000000e+00 : f32
    %285 = vector.broadcast %cst_76 : f32 to vector<8x128xf32>
    %286 = arith.addf %285, %284 : vector<8x128xf32>
    %287 = arith.divf %285, %286 : vector<8x128xf32>
    %288 = arith.mulf %279, %225 : vector<8x128xf32>
    %289 = arith.mulf %273, %281 : vector<8x128xf32>
    %290 = arith.addf %288, %289 : vector<8x128xf32>
    %291 = math.tanh %290 : vector<8x128xf32>
    %292 = arith.mulf %287, %291 : vector<8x128xf32>
    %293 = arith.truncf %292 : vector<8x128xf32> to vector<8x128xbf16>
    %c0_77 = arith.constant 0 : index
    %c0_78 = arith.constant 0 : index
    %294 = vector.load %arg4[%c0_77, %c0_78] : memref<128x512xbf16, #tpu.memory_space<vmem>>, vector<128x512xbf16>
    %cst_79 = arith.constant dense<0.000000e+00> : vector<8x512xf32>
    %295 = tpu.matmul %293, %294, %cst_79 {dimension_numbers = #tpu.dot_dimension_numbers<[1], [0], [0], [1], [0, 0, 1, 1], [], []>} : vector<8x128xbf16>, vector<128x512xbf16>, vector<8x512xf32> -> vector<8x512xf32>
    %296 = vector.broadcast %5 : vector<1x512xf32> to vector<8x512xf32>
    %297 = arith.addf %295, %296 : vector<8x512xf32>
    %c0_80 = arith.constant 0 : index
    %c0_81 = arith.constant 0 : index
    %298 = vector.load %arg5[%c0_80, %c0_81] : memref<128x512xbf16, #tpu.memory_space<vmem>>, vector<128x512xbf16>
    %cst_82 = arith.constant dense<0.000000e+00> : vector<8x512xf32>
    %299 = tpu.matmul %261, %298, %cst_82 {dimension_numbers = #tpu.dot_dimension_numbers<[1], [0], [0], [1], [0, 0, 1, 1], [], []>} : vector<8x128xbf16>, vector<128x512xbf16>, vector<8x512xf32> -> vector<8x512xf32>
    %300 = arith.addf %297, %299 : vector<8x512xf32>
    %301 = vector.extract_strided_slice %300 {offsets = [0, 0], sizes = [8, 128], strides = [1, 1]} : vector<8x512xf32> to vector<8x128xf32>
    %302 = arith.negf %301 : vector<8x128xf32>
    %303 = math.exp %302 : vector<8x128xf32>
    %cst_83 = arith.constant 1.000000e+00 : f32
    %304 = vector.broadcast %cst_83 : f32 to vector<8x128xf32>
    %305 = arith.addf %304, %303 : vector<8x128xf32>
    %306 = arith.divf %304, %305 : vector<8x128xf32>
    %307 = vector.extract_strided_slice %300 {offsets = [0, 128], sizes = [8, 128], strides = [1, 1]} : vector<8x512xf32> to vector<8x128xf32>
    %308 = arith.negf %307 : vector<8x128xf32>
    %309 = math.exp %308 : vector<8x128xf32>
    %cst_84 = arith.constant 1.000000e+00 : f32
    %310 = vector.broadcast %cst_84 : f32 to vector<8x128xf32>
    %311 = arith.addf %310, %309 : vector<8x128xf32>
    %312 = arith.divf %310, %311 : vector<8x128xf32>
    %313 = vector.extract_strided_slice %300 {offsets = [0, 256], sizes = [8, 128], strides = [1, 1]} : vector<8x512xf32> to vector<8x128xf32>
    %314 = math.tanh %313 : vector<8x128xf32>
    %315 = vector.extract_strided_slice %300 {offsets = [0, 384], sizes = [8, 128], strides = [1, 1]} : vector<8x512xf32> to vector<8x128xf32>
    %316 = arith.negf %315 : vector<8x128xf32>
    %317 = math.exp %316 : vector<8x128xf32>
    %cst_85 = arith.constant 1.000000e+00 : f32
    %318 = vector.broadcast %cst_85 : f32 to vector<8x128xf32>
    %319 = arith.addf %318, %317 : vector<8x128xf32>
    %320 = arith.divf %318, %319 : vector<8x128xf32>
    %321 = arith.mulf %312, %258 : vector<8x128xf32>
    %322 = arith.mulf %306, %314 : vector<8x128xf32>
    %323 = arith.addf %321, %322 : vector<8x128xf32>
    %324 = math.tanh %323 : vector<8x128xf32>
    %325 = arith.mulf %320, %324 : vector<8x128xf32>
    %326 = arith.truncf %325 : vector<8x128xf32> to vector<8x128xbf16>
    %c40 = arith.constant 40 : index
    %c0_86 = arith.constant 0 : index
    %327 = vector.load %arg10[%c40, %c0_86] : memref<64x512xf32, #tpu.memory_space<vmem>>, vector<8x512xf32>
    %328 = vector.broadcast %4 : vector<1x512xf32> to vector<8x512xf32>
    %329 = arith.addf %327, %328 : vector<8x512xf32>
    %c0_87 = arith.constant 0 : index
    %c0_88 = arith.constant 0 : index
    %330 = vector.load %arg2[%c0_87, %c0_88] : memref<128x512xbf16, #tpu.memory_space<vmem>>, vector<128x512xbf16>
    %cst_89 = arith.constant dense<0.000000e+00> : vector<8x512xf32>
    %331 = tpu.matmul %293, %330, %cst_89 {dimension_numbers = #tpu.dot_dimension_numbers<[1], [0], [0], [1], [0, 0, 1, 1], [], []>} : vector<8x128xbf16>, vector<128x512xbf16>, vector<8x512xf32> -> vector<8x512xf32>
    %332 = arith.addf %329, %331 : vector<8x512xf32>
    %333 = vector.extract_strided_slice %332 {offsets = [0, 0], sizes = [8, 128], strides = [1, 1]} : vector<8x512xf32> to vector<8x128xf32>
    %334 = arith.negf %333 : vector<8x128xf32>
    %335 = math.exp %334 : vector<8x128xf32>
    %cst_90 = arith.constant 1.000000e+00 : f32
    %336 = vector.broadcast %cst_90 : f32 to vector<8x128xf32>
    %337 = arith.addf %336, %335 : vector<8x128xf32>
    %338 = arith.divf %336, %337 : vector<8x128xf32>
    %339 = vector.extract_strided_slice %332 {offsets = [0, 128], sizes = [8, 128], strides = [1, 1]} : vector<8x512xf32> to vector<8x128xf32>
    %340 = arith.negf %339 : vector<8x128xf32>
    %341 = math.exp %340 : vector<8x128xf32>
    %cst_91 = arith.constant 1.000000e+00 : f32
    %342 = vector.broadcast %cst_91 : f32 to vector<8x128xf32>
    %343 = arith.addf %342, %341 : vector<8x128xf32>
    %344 = arith.divf %342, %343 : vector<8x128xf32>
    %345 = vector.extract_strided_slice %332 {offsets = [0, 256], sizes = [8, 128], strides = [1, 1]} : vector<8x512xf32> to vector<8x128xf32>
    %346 = math.tanh %345 : vector<8x128xf32>
    %347 = vector.extract_strided_slice %332 {offsets = [0, 384], sizes = [8, 128], strides = [1, 1]} : vector<8x512xf32> to vector<8x128xf32>
    %348 = arith.negf %347 : vector<8x128xf32>
    %349 = math.exp %348 : vector<8x128xf32>
    %cst_92 = arith.constant 1.000000e+00 : f32
    %350 = vector.broadcast %cst_92 : f32 to vector<8x128xf32>
    %351 = arith.addf %350, %349 : vector<8x128xf32>
    %352 = arith.divf %350, %351 : vector<8x128xf32>
    %353 = arith.mulf %344, %290 : vector<8x128xf32>
    %354 = arith.mulf %338, %346 : vector<8x128xf32>
    %355 = arith.addf %353, %354 : vector<8x128xf32>
    %356 = math.tanh %355 : vector<8x128xf32>
    %357 = arith.mulf %352, %356 : vector<8x128xf32>
    %358 = arith.truncf %357 : vector<8x128xf32> to vector<8x128xbf16>
    %c0_93 = arith.constant 0 : index
    %c0_94 = arith.constant 0 : index
    %359 = vector.load %arg4[%c0_93, %c0_94] : memref<128x512xbf16, #tpu.memory_space<vmem>>, vector<128x512xbf16>
    %cst_95 = arith.constant dense<0.000000e+00> : vector<8x512xf32>
    %360 = tpu.matmul %358, %359, %cst_95 {dimension_numbers = #tpu.dot_dimension_numbers<[1], [0], [0], [1], [0, 0, 1, 1], [], []>} : vector<8x128xbf16>, vector<128x512xbf16>, vector<8x512xf32> -> vector<8x512xf32>
    %361 = vector.broadcast %5 : vector<1x512xf32> to vector<8x512xf32>
    %362 = arith.addf %360, %361 : vector<8x512xf32>
    %c0_96 = arith.constant 0 : index
    %c0_97 = arith.constant 0 : index
    %363 = vector.load %arg5[%c0_96, %c0_97] : memref<128x512xbf16, #tpu.memory_space<vmem>>, vector<128x512xbf16>
    %cst_98 = arith.constant dense<0.000000e+00> : vector<8x512xf32>
    %364 = tpu.matmul %326, %363, %cst_98 {dimension_numbers = #tpu.dot_dimension_numbers<[1], [0], [0], [1], [0, 0, 1, 1], [], []>} : vector<8x128xbf16>, vector<128x512xbf16>, vector<8x512xf32> -> vector<8x512xf32>
    %365 = arith.addf %362, %364 : vector<8x512xf32>
    %366 = vector.extract_strided_slice %365 {offsets = [0, 0], sizes = [8, 128], strides = [1, 1]} : vector<8x512xf32> to vector<8x128xf32>
    %367 = arith.negf %366 : vector<8x128xf32>
    %368 = math.exp %367 : vector<8x128xf32>
    %cst_99 = arith.constant 1.000000e+00 : f32
    %369 = vector.broadcast %cst_99 : f32 to vector<8x128xf32>
    %370 = arith.addf %369, %368 : vector<8x128xf32>
    %371 = arith.divf %369, %370 : vector<8x128xf32>
    %372 = vector.extract_strided_slice %365 {offsets = [0, 128], sizes = [8, 128], strides = [1, 1]} : vector<8x512xf32> to vector<8x128xf32>
    %373 = arith.negf %372 : vector<8x128xf32>
    %374 = math.exp %373 : vector<8x128xf32>
    %cst_100 = arith.constant 1.000000e+00 : f32
    %375 = vector.broadcast %cst_100 : f32 to vector<8x128xf32>
    %376 = arith.addf %375, %374 : vector<8x128xf32>
    %377 = arith.divf %375, %376 : vector<8x128xf32>
    %378 = vector.extract_strided_slice %365 {offsets = [0, 256], sizes = [8, 128], strides = [1, 1]} : vector<8x512xf32> to vector<8x128xf32>
    %379 = math.tanh %378 : vector<8x128xf32>
    %380 = vector.extract_strided_slice %365 {offsets = [0, 384], sizes = [8, 128], strides = [1, 1]} : vector<8x512xf32> to vector<8x128xf32>
    %381 = arith.negf %380 : vector<8x128xf32>
    %382 = math.exp %381 : vector<8x128xf32>
    %cst_101 = arith.constant 1.000000e+00 : f32
    %383 = vector.broadcast %cst_101 : f32 to vector<8x128xf32>
    %384 = arith.addf %383, %382 : vector<8x128xf32>
    %385 = arith.divf %383, %384 : vector<8x128xf32>
    %386 = arith.mulf %377, %323 : vector<8x128xf32>
    %387 = arith.mulf %371, %379 : vector<8x128xf32>
    %388 = arith.addf %386, %387 : vector<8x128xf32>
    %389 = math.tanh %388 : vector<8x128xf32>
    %390 = arith.mulf %385, %389 : vector<8x128xf32>
    %391 = arith.truncf %390 : vector<8x128xf32> to vector<8x128xbf16>
    %c48 = arith.constant 48 : index
    %c0_102 = arith.constant 0 : index
    %392 = vector.load %arg10[%c48, %c0_102] : memref<64x512xf32, #tpu.memory_space<vmem>>, vector<8x512xf32>
    %393 = vector.broadcast %4 : vector<1x512xf32> to vector<8x512xf32>
    %394 = arith.addf %392, %393 : vector<8x512xf32>
    %c0_103 = arith.constant 0 : index
    %c0_104 = arith.constant 0 : index
    %395 = vector.load %arg2[%c0_103, %c0_104] : memref<128x512xbf16, #tpu.memory_space<vmem>>, vector<128x512xbf16>
    %cst_105 = arith.constant dense<0.000000e+00> : vector<8x512xf32>
    %396 = tpu.matmul %358, %395, %cst_105 {dimension_numbers = #tpu.dot_dimension_numbers<[1], [0], [0], [1], [0, 0, 1, 1], [], []>} : vector<8x128xbf16>, vector<128x512xbf16>, vector<8x512xf32> -> vector<8x512xf32>
    %397 = arith.addf %394, %396 : vector<8x512xf32>
    %398 = vector.extract_strided_slice %397 {offsets = [0, 0], sizes = [8, 128], strides = [1, 1]} : vector<8x512xf32> to vector<8x128xf32>
    %399 = arith.negf %398 : vector<8x128xf32>
    %400 = math.exp %399 : vector<8x128xf32>
    %cst_106 = arith.constant 1.000000e+00 : f32
    %401 = vector.broadcast %cst_106 : f32 to vector<8x128xf32>
    %402 = arith.addf %401, %400 : vector<8x128xf32>
    %403 = arith.divf %401, %402 : vector<8x128xf32>
    %404 = vector.extract_strided_slice %397 {offsets = [0, 128], sizes = [8, 128], strides = [1, 1]} : vector<8x512xf32> to vector<8x128xf32>
    %405 = arith.negf %404 : vector<8x128xf32>
    %406 = math.exp %405 : vector<8x128xf32>
    %cst_107 = arith.constant 1.000000e+00 : f32
    %407 = vector.broadcast %cst_107 : f32 to vector<8x128xf32>
    %408 = arith.addf %407, %406 : vector<8x128xf32>
    %409 = arith.divf %407, %408 : vector<8x128xf32>
    %410 = vector.extract_strided_slice %397 {offsets = [0, 256], sizes = [8, 128], strides = [1, 1]} : vector<8x512xf32> to vector<8x128xf32>
    %411 = math.tanh %410 : vector<8x128xf32>
    %412 = vector.extract_strided_slice %397 {offsets = [0, 384], sizes = [8, 128], strides = [1, 1]} : vector<8x512xf32> to vector<8x128xf32>
    %413 = arith.negf %412 : vector<8x128xf32>
    %414 = math.exp %413 : vector<8x128xf32>
    %cst_108 = arith.constant 1.000000e+00 : f32
    %415 = vector.broadcast %cst_108 : f32 to vector<8x128xf32>
    %416 = arith.addf %415, %414 : vector<8x128xf32>
    %417 = arith.divf %415, %416 : vector<8x128xf32>
    %418 = arith.mulf %409, %355 : vector<8x128xf32>
    %419 = arith.mulf %403, %411 : vector<8x128xf32>
    %420 = arith.addf %418, %419 : vector<8x128xf32>
    %421 = math.tanh %420 : vector<8x128xf32>
    %422 = arith.mulf %417, %421 : vector<8x128xf32>
    %423 = arith.truncf %422 : vector<8x128xf32> to vector<8x128xbf16>
    %c0_109 = arith.constant 0 : index
    %c0_110 = arith.constant 0 : index
    %424 = vector.load %arg4[%c0_109, %c0_110] : memref<128x512xbf16, #tpu.memory_space<vmem>>, vector<128x512xbf16>
    %cst_111 = arith.constant dense<0.000000e+00> : vector<8x512xf32>
    %425 = tpu.matmul %423, %424, %cst_111 {dimension_numbers = #tpu.dot_dimension_numbers<[1], [0], [0], [1], [0, 0, 1, 1], [], []>} : vector<8x128xbf16>, vector<128x512xbf16>, vector<8x512xf32> -> vector<8x512xf32>
    %426 = vector.broadcast %5 : vector<1x512xf32> to vector<8x512xf32>
    %427 = arith.addf %425, %426 : vector<8x512xf32>
    %c0_112 = arith.constant 0 : index
    %c0_113 = arith.constant 0 : index
    %428 = vector.load %arg5[%c0_112, %c0_113] : memref<128x512xbf16, #tpu.memory_space<vmem>>, vector<128x512xbf16>
    %cst_114 = arith.constant dense<0.000000e+00> : vector<8x512xf32>
    %429 = tpu.matmul %391, %428, %cst_114 {dimension_numbers = #tpu.dot_dimension_numbers<[1], [0], [0], [1], [0, 0, 1, 1], [], []>} : vector<8x128xbf16>, vector<128x512xbf16>, vector<8x512xf32> -> vector<8x512xf32>
    %430 = arith.addf %427, %429 : vector<8x512xf32>
    %431 = vector.extract_strided_slice %430 {offsets = [0, 0], sizes = [8, 128], strides = [1, 1]} : vector<8x512xf32> to vector<8x128xf32>
    %432 = arith.negf %431 : vector<8x128xf32>
    %433 = math.exp %432 : vector<8x128xf32>
    %cst_115 = arith.constant 1.000000e+00 : f32
    %434 = vector.broadcast %cst_115 : f32 to vector<8x128xf32>
    %435 = arith.addf %434, %433 : vector<8x128xf32>
    %436 = arith.divf %434, %435 : vector<8x128xf32>
    %437 = vector.extract_strided_slice %430 {offsets = [0, 128], sizes = [8, 128], strides = [1, 1]} : vector<8x512xf32> to vector<8x128xf32>
    %438 = arith.negf %437 : vector<8x128xf32>
    %439 = math.exp %438 : vector<8x128xf32>
    %cst_116 = arith.constant 1.000000e+00 : f32
    %440 = vector.broadcast %cst_116 : f32 to vector<8x128xf32>
    %441 = arith.addf %440, %439 : vector<8x128xf32>
    %442 = arith.divf %440, %441 : vector<8x128xf32>
    %443 = vector.extract_strided_slice %430 {offsets = [0, 256], sizes = [8, 128], strides = [1, 1]} : vector<8x512xf32> to vector<8x128xf32>
    %444 = math.tanh %443 : vector<8x128xf32>
    %445 = vector.extract_strided_slice %430 {offsets = [0, 384], sizes = [8, 128], strides = [1, 1]} : vector<8x512xf32> to vector<8x128xf32>
    %446 = arith.negf %445 : vector<8x128xf32>
    %447 = math.exp %446 : vector<8x128xf32>
    %cst_117 = arith.constant 1.000000e+00 : f32
    %448 = vector.broadcast %cst_117 : f32 to vector<8x128xf32>
    %449 = arith.addf %448, %447 : vector<8x128xf32>
    %450 = arith.divf %448, %449 : vector<8x128xf32>
    %451 = arith.mulf %442, %388 : vector<8x128xf32>
    %452 = arith.mulf %436, %444 : vector<8x128xf32>
    %453 = arith.addf %451, %452 : vector<8x128xf32>
    %454 = math.tanh %453 : vector<8x128xf32>
    %455 = arith.mulf %450, %454 : vector<8x128xf32>
    %456 = arith.truncf %455 : vector<8x128xf32> to vector<8x128xbf16>
    %c56 = arith.constant 56 : index
    %c0_118 = arith.constant 0 : index
    %457 = vector.load %arg10[%c56, %c0_118] : memref<64x512xf32, #tpu.memory_space<vmem>>, vector<8x512xf32>
    %458 = vector.broadcast %4 : vector<1x512xf32> to vector<8x512xf32>
    %459 = arith.addf %457, %458 : vector<8x512xf32>
    %c0_119 = arith.constant 0 : index
    %c0_120 = arith.constant 0 : index
    %460 = vector.load %arg2[%c0_119, %c0_120] : memref<128x512xbf16, #tpu.memory_space<vmem>>, vector<128x512xbf16>
    %cst_121 = arith.constant dense<0.000000e+00> : vector<8x512xf32>
    %461 = tpu.matmul %423, %460, %cst_121 {dimension_numbers = #tpu.dot_dimension_numbers<[1], [0], [0], [1], [0, 0, 1, 1], [], []>} : vector<8x128xbf16>, vector<128x512xbf16>, vector<8x512xf32> -> vector<8x512xf32>
    %462 = arith.addf %459, %461 : vector<8x512xf32>
    %463 = vector.extract_strided_slice %462 {offsets = [0, 0], sizes = [8, 128], strides = [1, 1]} : vector<8x512xf32> to vector<8x128xf32>
    %464 = arith.negf %463 : vector<8x128xf32>
    %465 = math.exp %464 : vector<8x128xf32>
    %cst_122 = arith.constant 1.000000e+00 : f32
    %466 = vector.broadcast %cst_122 : f32 to vector<8x128xf32>
    %467 = arith.addf %466, %465 : vector<8x128xf32>
    %468 = arith.divf %466, %467 : vector<8x128xf32>
    %469 = vector.extract_strided_slice %462 {offsets = [0, 128], sizes = [8, 128], strides = [1, 1]} : vector<8x512xf32> to vector<8x128xf32>
    %470 = arith.negf %469 : vector<8x128xf32>
    %471 = math.exp %470 : vector<8x128xf32>
    %cst_123 = arith.constant 1.000000e+00 : f32
    %472 = vector.broadcast %cst_123 : f32 to vector<8x128xf32>
    %473 = arith.addf %472, %471 : vector<8x128xf32>
    %474 = arith.divf %472, %473 : vector<8x128xf32>
    %475 = vector.extract_strided_slice %462 {offsets = [0, 256], sizes = [8, 128], strides = [1, 1]} : vector<8x512xf32> to vector<8x128xf32>
    %476 = math.tanh %475 : vector<8x128xf32>
    %477 = vector.extract_strided_slice %462 {offsets = [0, 384], sizes = [8, 128], strides = [1, 1]} : vector<8x512xf32> to vector<8x128xf32>
    %478 = arith.negf %477 : vector<8x128xf32>
    %479 = math.exp %478 : vector<8x128xf32>
    %cst_124 = arith.constant 1.000000e+00 : f32
    %480 = vector.broadcast %cst_124 : f32 to vector<8x128xf32>
    %481 = arith.addf %480, %479 : vector<8x128xf32>
    %482 = arith.divf %480, %481 : vector<8x128xf32>
    %483 = arith.mulf %474, %420 : vector<8x128xf32>
    %484 = arith.mulf %468, %476 : vector<8x128xf32>
    %485 = arith.addf %483, %484 : vector<8x128xf32>
    %486 = math.tanh %485 : vector<8x128xf32>
    %487 = arith.mulf %482, %486 : vector<8x128xf32>
    %488 = arith.truncf %487 : vector<8x128xf32> to vector<8x128xbf16>
    %c0_125 = arith.constant 0 : index
    %c0_126 = arith.constant 0 : index
    %489 = vector.load %arg4[%c0_125, %c0_126] : memref<128x512xbf16, #tpu.memory_space<vmem>>, vector<128x512xbf16>
    %cst_127 = arith.constant dense<0.000000e+00> : vector<8x512xf32>
    %490 = tpu.matmul %488, %489, %cst_127 {dimension_numbers = #tpu.dot_dimension_numbers<[1], [0], [0], [1], [0, 0, 1, 1], [], []>} : vector<8x128xbf16>, vector<128x512xbf16>, vector<8x512xf32> -> vector<8x512xf32>
    %491 = vector.broadcast %5 : vector<1x512xf32> to vector<8x512xf32>
    %492 = arith.addf %490, %491 : vector<8x512xf32>
    %c0_128 = arith.constant 0 : index
    %c0_129 = arith.constant 0 : index
    %493 = vector.load %arg5[%c0_128, %c0_129] : memref<128x512xbf16, #tpu.memory_space<vmem>>, vector<128x512xbf16>
    %cst_130 = arith.constant dense<0.000000e+00> : vector<8x512xf32>
    %494 = tpu.matmul %456, %493, %cst_130 {dimension_numbers = #tpu.dot_dimension_numbers<[1], [0], [0], [1], [0, 0, 1, 1], [], []>} : vector<8x128xbf16>, vector<128x512xbf16>, vector<8x512xf32> -> vector<8x512xf32>
    %495 = arith.addf %492, %494 : vector<8x512xf32>
    %496 = vector.extract_strided_slice %495 {offsets = [0, 0], sizes = [8, 128], strides = [1, 1]} : vector<8x512xf32> to vector<8x128xf32>
    %497 = arith.negf %496 : vector<8x128xf32>
    %498 = math.exp %497 : vector<8x128xf32>
    %cst_131 = arith.constant 1.000000e+00 : f32
    %499 = vector.broadcast %cst_131 : f32 to vector<8x128xf32>
    %500 = arith.addf %499, %498 : vector<8x128xf32>
    %501 = arith.divf %499, %500 : vector<8x128xf32>
    %502 = vector.extract_strided_slice %495 {offsets = [0, 128], sizes = [8, 128], strides = [1, 1]} : vector<8x512xf32> to vector<8x128xf32>
    %503 = arith.negf %502 : vector<8x128xf32>
    %504 = math.exp %503 : vector<8x128xf32>
    %cst_132 = arith.constant 1.000000e+00 : f32
    %505 = vector.broadcast %cst_132 : f32 to vector<8x128xf32>
    %506 = arith.addf %505, %504 : vector<8x128xf32>
    %507 = arith.divf %505, %506 : vector<8x128xf32>
    %508 = vector.extract_strided_slice %495 {offsets = [0, 256], sizes = [8, 128], strides = [1, 1]} : vector<8x512xf32> to vector<8x128xf32>
    %509 = math.tanh %508 : vector<8x128xf32>
    %510 = vector.extract_strided_slice %495 {offsets = [0, 384], sizes = [8, 128], strides = [1, 1]} : vector<8x512xf32> to vector<8x128xf32>
    %511 = arith.negf %510 : vector<8x128xf32>
    %512 = math.exp %511 : vector<8x128xf32>
    %cst_133 = arith.constant 1.000000e+00 : f32
    %513 = vector.broadcast %cst_133 : f32 to vector<8x128xf32>
    %514 = arith.addf %513, %512 : vector<8x128xf32>
    %515 = arith.divf %513, %514 : vector<8x128xf32>
    %516 = arith.mulf %507, %453 : vector<8x128xf32>
    %517 = arith.mulf %501, %509 : vector<8x128xf32>
    %518 = arith.addf %516, %517 : vector<8x128xf32>
    %519 = math.tanh %518 : vector<8x128xf32>
    %520 = arith.mulf %515, %519 : vector<8x128xf32>
    %521 = arith.truncf %520 : vector<8x128xf32> to vector<8x128xbf16>
    %c0_134 = arith.constant 0 : index
    %c0_135 = arith.constant 0 : index
    %522 = vector.load %arg7[%c0_134, %c0_135] : memref<128x128xbf16, #tpu.memory_space<vmem>>, vector<128x128xbf16>
    %cst_136 = arith.constant dense<0.000000e+00> : vector<8x128xf32>
    %523 = tpu.matmul %521, %522, %cst_136 {dimension_numbers = #tpu.dot_dimension_numbers<[1], [0], [0], [1], [0, 0, 1, 1], [], []>} : vector<8x128xbf16>, vector<128x128xbf16>, vector<8x128xf32> -> vector<8x128xf32>
    %c0_137 = arith.constant 0 : index
    %c0_138 = arith.constant 0 : index
    %524 = vector.load %arg8[%c0_137, %c0_138] : memref<1x128xf32, #tpu.memory_space<vmem>>, vector<1x128xf32>
    %525 = vector.broadcast %524 : vector<1x128xf32> to vector<8x128xf32>
    %526 = arith.addf %523, %525 : vector<8x128xf32>
    %c0_139 = arith.constant 0 : index
    %c0_140 = arith.constant 0 : index
    %527 = vector.load %arg9[%c0_139, %c0_140] : memref<8x128xf32, #tpu.memory_space<vmem>>, vector<8x128xf32>
    tpu.vector_store %arg9[%c0_139, %c0_140], %526 {strides = array<i32>} : memref<8x128xf32, #tpu.memory_space<vmem>>, vector<8x128xf32>,
    return
  }
}

</mosaic_0001>

<llo_original>
// kernel: lstm_forward.1
$region0: #{lstm_forward.1}
  #allocation0 [shape = 'u32[]', space=smem, size = 0x4, offset = 0x4, fixed_abs, tag = 'smem constant byte address 0x4 - core index']
  #allocation1 [shape = 'u32[72,128]{1,0:T(1,128)}', space=vmem, size = 0x9000, scoped, tag = 'internal scratch']
  #allocation2 [shape = 'f32[64,512]{1,0:T(8,128)}', space=vmem, size = 0x20000, scoped, tag = 'scratch operand']
  %s0 = inlined_call_operand.vmem [shape: bf16[64,128], index: 0, kind: input, shape index: {}]
  %s1 = inlined_call_operand.hbm [shape: bf16[128,512], index: 1, kind: input, shape index: {}]
  %s2 = inlined_call_operand.hbm [shape: bf16[128,512], index: 2, kind: input, shape index: {}]
  %s3 = inlined_call_operand.vmem [shape: f32[1,512], index: 3, kind: input, shape index: {}]
  %s4 = inlined_call_operand.hbm [shape: bf16[128,512], index: 4, kind: input, shape index: {}]
  %s5 = inlined_call_operand.hbm [shape: bf16[128,512], index: 5, kind: input, shape index: {}]
  %s6 = inlined_call_operand.vmem [shape: f32[1,512], index: 6, kind: input, shape index: {}]
  %s7 = inlined_call_operand.vmem [shape: bf16[128,128], index: 7, kind: input, shape index: {}]
  %s8 = inlined_call_operand.vmem [shape: f32[1,128], index: 8, kind: input, shape index: {}]
  %s9 = inlined_call_operand.vmem [shape: f32[8,128], index: 9, kind: output, shape index: {}]
  %s10 = sld [smem:[#allocation0]]
  $region62: #{lstm_forward.1} parent=0
    _
  %s12 = ssub.s32 1, %s10
  %s13 = scalar_select 0, %s12, %s10
  $region1: #{lstm_forward.1} parent=0
    #allocation3 [shape = 'u8[131072]{0}', space=vmem, size = 0x20000, scoped, tag = 'input window, operand 1, single buffered']
    #allocation4 [shape = 's32[1]{0}', space=sflag, size = 0x4, scoped, tag = 'scoped memory for lstm_forward.1']
    #allocation5 [shape = 'u8[131072]{0}', space=vmem, size = 0x20000, scoped, tag = 'input window, operand 2, single buffered']
    #allocation6 [shape = 's32[1]{0}', space=sflag, size = 0x4, scoped, tag = 'scoped memory for lstm_forward.1']
    #allocation7 [shape = 'u8[131072]{0}', space=vmem, size = 0x20000, scoped, tag = 'input window, operand 4, single buffered']
    #allocation8 [shape = 'u8[131072]{0}', space=vmem, size = 0x20000, scoped, tag = 'input window, operand 5, single buffered']
    #allocation9 [shape = 's32[1]{0}', space=sflag, size = 0x4, scoped, tag = 'scoped memory for lstm_forward.1']
    %14 = vsyncpa [#allocation4], 0
    %15 = vsyncpa [#allocation6], 0
    %16 = vsyncpa [#allocation9], 0
    // Predicated region
    $region2: #{lstm_forward.1} parent=1 // pred_check
      _
    $region3: #{lstm_forward.1} parent=1 // pred_check_branch
      %18 = sbr.rel (0) target = $region5
    $region4: #{lstm_forward.1} parent=1 // pred_region
      _
    $region5: #{lstm_forward.1} parent=1 // pred_fallthru
      _
    // Predicated region
    $region6: #{lstm_forward.1} parent=1 // pred_check
      _
    $region7: #{lstm_forward.1} parent=1 // pred_check_branch
      %20 = sbr.rel (0) target = $region9
    $region8: #{lstm_forward.1} parent=1 // pred_region
      %22 = vsyncadd [#allocation4], 0
      %s23 = sshll.u32 %s1, 4
      %s24 = int_to_ptr.hbm [resolvable:$true] %s23
      %s25 = sshll.u32 [#allocation3], 4
      %s26 = int_to_ptr.vmem [resolvable:$true] %s25
      %31 = dma.hbm_to_vmem [thread:$0]  %s24, 4096, %s26, [#allocation4], 256, 256, 16
    $region9: #{lstm_forward.1} parent=1 // pred_fallthru
      _
    // Predicated region
    $region10: #{lstm_forward.1} parent=1 // pred_check
      _
    $region11: #{lstm_forward.1} parent=1 // pred_check_branch
      %33 = sbr.rel (0) target = $region13
    $region12: #{lstm_forward.1} parent=1 // pred_region
      %35 = vsyncadd [#allocation6], 0
      %s36 = sshll.u32 %s2, 4
      %s37 = int_to_ptr.hbm [resolvable:$true] %s36
      %s38 = sshll.u32 [#allocation5], 4
      %s39 = int_to_ptr.vmem [resolvable:$true] %s38
      %44 = dma.hbm_to_vmem [thread:$0]  %s37, 4096, %s39, [#allocation6], 256, 256, 16
    $region13: #{lstm_forward.1} parent=1 // pred_fallthru
      _
    // Predicated region
    $region14: #{lstm_forward.1} parent=1 // pred_check
      _
    $region15: #{lstm_forward.1} parent=1 // pred_check_branch
      %46 = sbr.rel (0) target = $region17
    $region16: #{lstm_forward.1} parent=1 // pred_region
      _
    $region17: #{lstm_forward.1} parent=1 // pred_fallthru
      _
    // Predicated region
    $region18: #{lstm_forward.1} parent=1 // pred_check
      _
    $region19: #{lstm_forward.1} parent=1 // pred_check_branch
      %48 = sbr.rel (0) target = $region21
    $region20: #{lstm_forward.1} parent=1 // pred_region
      %50 = vsyncadd [#allocation6], 0
      %s51 = sshll.u32 %s4, 4
      %s52 = int_to_ptr.hbm [resolvable:$true] %s51
      %s53 = sshll.u32 [#allocation7], 4
      %s54 = int_to_ptr.vmem [resolvable:$true] %s53
      %59 = dma.hbm_to_vmem [thread:$0]  %s52, 4096, %s54, [#allocation6], 256, 256, 16
    $region21: #{lstm_forward.1} parent=1 // pred_fallthru
      _
    // Predicated region
    $region22: #{lstm_forward.1} parent=1 // pred_check
      _
    $region23: #{lstm_forward.1} parent=1 // pred_check_branch
      %61 = sbr.rel (0) target = $region25
    $region24: #{lstm_forward.1} parent=1 // pred_region
      %63 = vsyncadd [#allocation9], 0
      %s64 = sshll.u32 %s5, 4
      %s65 = int_to_ptr.hbm [resolvable:$true] %s64
      %s66 = sshll.u32 [#allocation8], 4
      %s67 = int_to_ptr.vmem [resolvable:$true] %s66
      %72 = dma.hbm_to_vmem [thread:$0]  %s65, 4096, %s67, [#allocation9], 256, 256, 16
    $region25: #{lstm_forward.1} parent=1 // pred_fallthru
      _
    // Predicated region
    $region26: #{lstm_forward.1} parent=1 // pred_check
      _
    $region27: #{lstm_forward.1} parent=1 // pred_check_branch
      %74 = sbr.rel (0) target = $region29
    $region28: #{lstm_forward.1} parent=1 // pred_region
      _
    $region29: #{lstm_forward.1} parent=1 // pred_fallthru
      _
    // Predicated region
    $region30: #{lstm_forward.1} parent=1 // pred_check
      _
    $region31: #{lstm_forward.1} parent=1 // pred_check_branch
      %76 = sbr.rel (0) target = $region33
    $region32: #{lstm_forward.1} parent=1 // pred_region
      _
    $region33: #{lstm_forward.1} parent=1 // pred_fallthru
      _
    // Predicated region
    $region34: #{lstm_forward.1} parent=1 // pred_check
      _
    $region35: #{lstm_forward.1} parent=1 // pred_check_branch
      %78 = sbr.rel (0) target = $region37
    $region36: #{lstm_forward.1} parent=1 // pred_region
      _
    $region37: #{lstm_forward.1} parent=1 // pred_fallthru
      _
    // Predicated region
    $region38: #{lstm_forward.1} parent=1 // pred_check
      _
    $region39: #{lstm_forward.1} parent=1 // pred_check_branch
      %80 = sbr.rel (0) target = $region41
    $region40: #{lstm_forward.1} parent=1 // pred_region
      %82 = dma.done [#allocation4], 4096
    $region41: #{lstm_forward.1} parent=1 // pred_fallthru
      _
    // Predicated region
    $region42: #{lstm_forward.1} parent=1 // pred_check
      _
    $region43: #{lstm_forward.1} parent=1 // pred_check_branch
      %84 = sbr.rel (0) target = $region45
    $region44: #{lstm_forward.1} parent=1 // pred_region
      %86 = dma.done [#allocation6], 4096
    $region45: #{lstm_forward.1} parent=1 // pred_fallthru
      _
    // Predicated region
    $region46: #{lstm_forward.1} parent=1 // pred_check
      _
    $region47: #{lstm_forward.1} parent=1 // pred_check_branch
      %88 = sbr.rel (0) target = $region49
    $region48: #{lstm_forward.1} parent=1 // pred_region
      %90 = dma.done [#allocation6], 4096
    $region49: #{lstm_forward.1} parent=1 // pred_fallthru
      _
    // Predicated region
    $region50: #{lstm_forward.1} parent=1 // pred_check
      _
    $region51: #{lstm_forward.1} parent=1 // pred_check_branch
      %92 = sbr.rel (0) target = $region53
    $region52: #{lstm_forward.1} parent=1 // pred_region
      %94 = dma.done [#allocation9], 4096
    $region53: #{lstm_forward.1} parent=1 // pred_fallthru
      _
    %v95 = vld [vmem:[%s0] sm:$0xf]
    %v96 = vld [vmem:[%s0 + $0x4] sm:$0xf]
    %v97 = vld [vmem:[%s0 + $0x8] sm:$0xf]
    %v98 = vld [vmem:[%s0 + $0xc] sm:$0xf]
    %v99 = vld [vmem:[%s0 + $0x10] sm:$0xf]
    %v100 = vld [vmem:[%s0 + $0x14] sm:$0xf]
    %v101 = vld [vmem:[%s0 + $0x18] sm:$0xf]
    %v102 = vld [vmem:[%s0 + $0x1c] sm:$0xf]
    %v103 = vld [vmem:[#allocation3] sm:$0xff]
    %v104 = vld [vmem:[#allocation3 + $0x8] sm:$0xff]
    %v105 = vld [vmem:[#allocation3 + $0x10] sm:$0xff]
    %v106 = vld [vmem:[#allocation3 + $0x18] sm:$0xff]
    %v107 = vld [vmem:[#allocation3 + $0x20] sm:$0xff]
    %v108 = vld [vmem:[#allocation3 + $0x28] sm:$0xff]
    %v109 = vld [vmem:[#allocation3 + $0x30] sm:$0xff]
    %v110 = vld [vmem:[#allocation3 + $0x38] sm:$0xff]
    %v111 = vld [vmem:[#allocation3 + $0x40] sm:$0xff]
    %v112 = vld [vmem:[#allocation3 + $0x48] sm:$0xff]
    %v113 = vld [vmem:[#allocation3 + $0x50] sm:$0xff]
    %v114 = vld [vmem:[#allocation3 + $0x58] sm:$0xff]
    %v115 = vld [vmem:[#allocation3 + $0x60] sm:$0xff]
    %v116 = vld [vmem:[#allocation3 + $0x68] sm:$0xff]
    %v117 = vld [vmem:[#allocation3 + $0x70] sm:$0xff]
    %v118 = vld [vmem:[#allocation3 + $0x78] sm:$0xff]
    %v119 = vld [vmem:[#allocation3 + $0x80] sm:$0xff]
    %v120 = vld [vmem:[#allocation3 + $0x88] sm:$0xff]
    %v121 = vld [vmem:[#allocation3 + $0x90] sm:$0xff]
    %v122 = vld [vmem:[#allocation3 + $0x98] sm:$0xff]
    %v123 = vld [vmem:[#allocation3 + $0xa0] sm:$0xff]
    %v124 = vld [vmem:[#allocation3 + $0xa8] sm:$0xff]
    %v125 = vld [vmem:[#allocation3 + $0xb0] sm:$0xff]
    %v126 = vld [vmem:[#allocation3 + $0xb8] sm:$0xff]
    %v127 = vld [vmem:[#allocation3 + $0xc0] sm:$0xff]
    %v128 = vld [vmem:[#allocation3 + $0xc8] sm:$0xff]
    %v129 = vld [vmem:[#allocation3 + $0xd0] sm:$0xff]
    %v130 = vld [vmem:[#allocation3 + $0xd8] sm:$0xff]
    %v131 = vld [vmem:[#allocation3 + $0xe0] sm:$0xff]
    %v132 = vld [vmem:[#allocation3 + $0xe8] sm:$0xff]
    %v133 = vld [vmem:[#allocation3 + $0xf0] sm:$0xff]
    %v134 = vld [vmem:[#allocation3 + $0xf8] sm:$0xff]
    %v143 = vunpack.c.l.b16 %v95
    %v144 = vunpack.c.l.b16 %v96
    %v145 = vunpack.c.l.b16 %v97
    %v146 = vunpack.c.l.b16 %v98
    %v147 = vunpack.c.l.b16 %v99
    %v148 = vunpack.c.l.b16 %v100
    %v149 = vunpack.c.l.b16 %v101
    %v150 = vunpack.c.l.b16 %v102
    %v151 = vpack.c.b16 %v144, %v143
    %v152 = vpack.c.b16 %v146, %v145
    %v153 = vpack.c.b16 %v148, %v147
    %v154 = vpack.c.b16 %v150, %v149
    %v191 = vunpack.c.l.b16 %v103
    %v192 = vunpack.c.h.b16 %v103
    %v193 = vunpack.c.l.b16 %v104
    %v194 = vunpack.c.h.b16 %v104
    %v195 = vunpack.c.l.b16 %v105
    %v196 = vunpack.c.h.b16 %v105
    %v197 = vunpack.c.l.b16 %v106
    %v198 = vunpack.c.h.b16 %v106
    %v199 = vunpack.c.l.b16 %v107
    %v200 = vunpack.c.h.b16 %v107
    %v201 = vunpack.c.l.b16 %v108
    %v202 = vunpack.c.h.b16 %v108
    %v203 = vunpack.c.l.b16 %v109
    %v204 = vunpack.c.h.b16 %v109
    %v205 = vunpack.c.l.b16 %v110
    %v206 = vunpack.c.h.b16 %v110
    %v207 = vunpack.c.l.b16 %v111
    %v208 = vunpack.c.h.b16 %v111
    %v209 = vunpack.c.l.b16 %v112
    %v210 = vunpack.c.h.b16 %v112
    %v211 = vunpack.c.l.b16 %v113
    %v212 = vunpack.c.h.b16 %v113
    %v213 = vunpack.c.l.b16 %v114
    %v214 = vunpack.c.h.b16 %v114
    %v215 = vunpack.c.l.b16 %v115
    %v216 = vunpack.c.h.b16 %v115
    %v217 = vunpack.c.l.b16 %v116
    %v218 = vunpack.c.h.b16 %v116
    %v219 = vunpack.c.l.b16 %v117
    %v220 = vunpack.c.h.b16 %v117
    %v221 = vunpack.c.l.b16 %v118
    %v222 = vunpack.c.h.b16 %v118
    %v223 = vunpack.c.l.b16 %v119
    %v224 = vunpack.c.h.b16 %v119
    %v225 = vunpack.c.l.b16 %v120
    %v226 = vunpack.c.h.b16 %v120
    %v227 = vunpack.c.l.b16 %v121
    %v228 = vunpack.c.h.b16 %v121
    %v229 = vunpack.c.l.b16 %v122
    %v230 = vunpack.c.h.b16 %v122
    %v231 = vunpack.c.l.b16 %v123
    %v232 = vunpack.c.h.b16 %v123
    %v233 = vunpack.c.l.b16 %v124
    %v234 = vunpack.c.h.b16 %v124
    %v235 = vunpack.c.l.b16 %v125
    %v236 = vunpack.c.h.b16 %v125
    %v237 = vunpack.c.l.b16 %v126
    %v238 = vunpack.c.h.b16 %v126
    %v239 = vunpack.c.l.b16 %v127
    %v240 = vunpack.c.h.b16 %v127
    %v241 = vunpack.c.l.b16 %v128
    %v242 = vunpack.c.h.b16 %v128
    %v243 = vunpack.c.l.b16 %v129
    %v244 = vunpack.c.h.b16 %v129
    %v245 = vunpack.c.l.b16 %v130
    %v246 = vunpack.c.h.b16 %v130
    %v247 = vunpack.c.l.b16 %v131
    %v248 = vunpack.c.h.b16 %v131
    %v249 = vunpack.c.l.b16 %v132
    %v250 = vunpack.c.h.b16 %v132
    %v251 = vunpack.c.l.b16 %v133
    %v252 = vunpack.c.h.b16 %v133
    %v253 = vunpack.c.l.b16 %v134
    %v254 = vunpack.c.h.b16 %v134
    %v255 = vpack.c.b16 %v195, %v191
    %v256 = vpack.c.b16 %v196, %v192
    %v257 = vpack.c.b16 %v197, %v193
    %v258 = vpack.c.b16 %v198, %v194
    %v259 = vpack.c.b16 %v203, %v199
    %v260 = vpack.c.b16 %v204, %v200
    %v261 = vpack.c.b16 %v205, %v201
    %v262 = vpack.c.b16 %v206, %v202
    %v263 = vpack.c.b16 %v211, %v207
    %v264 = vpack.c.b16 %v212, %v208
    %v265 = vpack.c.b16 %v213, %v209
    %v266 = vpack.c.b16 %v214, %v210
    %v267 = vpack.c.b16 %v219, %v215
    %v268 = vpack.c.b16 %v220, %v216
    %v269 = vpack.c.b16 %v221, %v217
    %v270 = vpack.c.b16 %v222, %v218
    %v271 = vpack.c.b16 %v227, %v223
    %v272 = vpack.c.b16 %v228, %v224
    %v273 = vpack.c.b16 %v229, %v225
    %v274 = vpack.c.b16 %v230, %v226
    %v275 = vpack.c.b16 %v235, %v231
    %v276 = vpack.c.b16 %v236, %v232
    %v277 = vpack.c.b16 %v237, %v233
    %v278 = vpack.c.b16 %v238, %v234
    %v279 = vpack.c.b16 %v243, %v239
    %v280 = vpack.c.b16 %v244, %v240
    %v281 = vpack.c.b16 %v245, %v241
    %v282 = vpack.c.b16 %v246, %v242
    %v283 = vpack.c.b16 %v251, %v247
    %v284 = vpack.c.b16 %v252, %v248
    %v285 = vpack.c.b16 %v253, %v249
    %v286 = vpack.c.b16 %v254, %v250
    %319 = vmatpush.bf16.msra.mxu0 %v283
    %320 = vmatpush.bf16.msra.mxu0 %v279
    %321 = vmatpush.bf16.msra.mxu0 %v275
    %322 = vmatpush.bf16.msra.mxu0 %v271
    %323 = vmatpush.bf16.msra.mxu0 %v267
    %324 = vmatpush.bf16.msra.mxu0 %v263
    %325 = vmatpush.bf16.msra.mxu0 %v259
    %326 = vmatpush.bf16.msra.mxu0 %v255
    %327 = vmatmul.bf16.gmra.mxu0 %v151
    %v328 = vpop.f32.mrf.mxu0
    %v329 = vadd.f32 0.0, %v328
    %v330 = vpop.f32.mrf.mxu0
    %v331 = vadd.f32 0.0, %v330
    %332 = vmatmul.bf16.gmra.mxu0 %v152
    %v333 = vpop.f32.mrf.mxu0
    %v334 = vadd.f32 0.0, %v333
    %v335 = vpop.f32.mrf.mxu0
    %v336 = vadd.f32 0.0, %v335
    %337 = vmatmul.bf16.gmra.mxu0 %v153
    %v338 = vpop.f32.mrf.mxu0
    %v339 = vadd.f32 0.0, %v338
    %v340 = vpop.f32.mrf.mxu0
    %v341 = vadd.f32 0.0, %v340
    %342 = vmatmul.bf16.gmra.mxu0 %v154
    %v343 = vpop.f32.mrf.mxu0
    %v344 = vadd.f32 0.0, %v343
    %v345 = vpop.f32.mrf.mxu0
    %v346 = vadd.f32 0.0, %v345
    %347 = vdwg.mxu0
    %348 = vmatpush.bf16.msra.mxu0 %v284
    %349 = vmatpush.bf16.msra.mxu0 %v280
    %350 = vmatpush.bf16.msra.mxu0 %v276
    %351 = vmatpush.bf16.msra.mxu0 %v272
    %352 = vmatpush.bf16.msra.mxu0 %v268
    %353 = vmatpush.bf16.msra.mxu0 %v264
    %354 = vmatpush.bf16.msra.mxu0 %v260
    %355 = vmatpush.bf16.msra.mxu0 %v256
    %356 = vmatmul.bf16.gmra.mxu0 %v151
    %v357 = vpop.f32.mrf.mxu0
    %v358 = vadd.f32 0.0, %v357
    %v359 = vpop.f32.mrf.mxu0
    %v360 = vadd.f32 0.0, %v359
    %361 = vmatmul.bf16.gmra.mxu0 %v152
    %v362 = vpop.f32.mrf.mxu0
    %v363 = vadd.f32 0.0, %v362
    %v364 = vpop.f32.mrf.mxu0
    %v365 = vadd.f32 0.0, %v364
    %366 = vmatmul.bf16.gmra.mxu0 %v153
    %v367 = vpop.f32.mrf.mxu0
    %v368 = vadd.f32 0.0, %v367
    %v369 = vpop.f32.mrf.mxu0
    %v370 = vadd.f32 0.0, %v369
    %371 = vmatmul.bf16.gmra.mxu0 %v154
    %v372 = vpop.f32.mrf.mxu0
    %v373 = vadd.f32 0.0, %v372
    %v374 = vpop.f32.mrf.mxu0
    %v375 = vadd.f32 0.0, %v374
    %376 = vdwg.mxu0
    %377 = vmatpush.bf16.msra.mxu0 %v285
    %378 = vmatpush.bf16.msra.mxu0 %v281
    %379 = vmatpush.bf16.msra.mxu0 %v277
    %380 = vmatpush.bf16.msra.mxu0 %v273
    %381 = vmatpush.bf16.msra.mxu0 %v269
    %382 = vmatpush.bf16.msra.mxu0 %v265
    %383 = vmatpush.bf16.msra.mxu0 %v261
    %384 = vmatpush.bf16.msra.mxu0 %v257
    %385 = vmatmul.bf16.gmra.mxu0 %v151
    %v386 = vpop.f32.mrf.mxu0
    %v387 = vadd.f32 0.0, %v386
    %v388 = vpop.f32.mrf.mxu0
    %v389 = vadd.f32 0.0, %v388
    %390 = vmatmul.bf16.gmra.mxu0 %v152
    %v391 = vpop.f32.mrf.mxu0
    %v392 = vadd.f32 0.0, %v391
    %v393 = vpop.f32.mrf.mxu0
    %v394 = vadd.f32 0.0, %v393
    %395 = vmatmul.bf16.gmra.mxu0 %v153
    %v396 = vpop.f32.mrf.mxu0
    %v397 = vadd.f32 0.0, %v396
    %v398 = vpop.f32.mrf.mxu0
    %v399 = vadd.f32 0.0, %v398
    %400 = vmatmul.bf16.gmra.mxu0 %v154
    %v401 = vpop.f32.mrf.mxu0
    %v402 = vadd.f32 0.0, %v401
    %v403 = vpop.f32.mrf.mxu0
    %v404 = vadd.f32 0.0, %v403
    %405 = vdwg.mxu0
    %406 = vmatpush.bf16.msra.mxu0 %v286
    %407 = vmatpush.bf16.msra.mxu0 %v282
    %408 = vmatpush.bf16.msra.mxu0 %v278
    %409 = vmatpush.bf16.msra.mxu0 %v274
    %410 = vmatpush.bf16.msra.mxu0 %v270
    %411 = vmatpush.bf16.msra.mxu0 %v266
    %412 = vmatpush.bf16.msra.mxu0 %v262
    %413 = vmatpush.bf16.msra.mxu0 %v258
    %414 = vmatmul.bf16.gmra.mxu0 %v151
    %v415 = vpop.f32.mrf.mxu0
    %v416 = vadd.f32 0.0, %v415
    %v417 = vpop.f32.mrf.mxu0
    %v418 = vadd.f32 0.0, %v417
    %419 = vmatmul.bf16.gmra.mxu0 %v152
    %v420 = vpop.f32.mrf.mxu0
    %v421 = vadd.f32 0.0, %v420
    %v422 = vpop.f32.mrf.mxu0
    %v423 = vadd.f32 0.0, %v422
    %424 = vmatmul.bf16.gmra.mxu0 %v153
    %v425 = vpop.f32.mrf.mxu0
    %v426 = vadd.f32 0.0, %v425
    %v427 = vpop.f32.mrf.mxu0
    %v428 = vadd.f32 0.0, %v427
    %429 = vmatmul.bf16.gmra.mxu0 %v154
    %v430 = vpop.f32.mrf.mxu0
    %v431 = vadd.f32 0.0, %v430
    %v432 = vpop.f32.mrf.mxu0
    %v433 = vadd.f32 0.0, %v432
    %434 = vdwg.mxu0
    %435 = vst [vmem:[#allocation2] sm:$0xff] %v329
    %436 = vst [vmem:[#allocation2 + $0x8] sm:$0xff] %v358
    %437 = vst [vmem:[#allocation2 + $0x10] sm:$0xff] %v387
    %438 = vst [vmem:[#allocation2 + $0x18] sm:$0xff] %v416
    %439 = vst [vmem:[#allocation2 + $0x20] sm:$0xff] %v331
    %440 = vst [vmem:[#allocation2 + $0x28] sm:$0xff] %v360
    %441 = vst [vmem:[#allocation2 + $0x30] sm:$0xff] %v389
    %442 = vst [vmem:[#allocation2 + $0x38] sm:$0xff] %v418
    %443 = vst [vmem:[#allocation2 + $0x40] sm:$0xff] %v334
    %444 = vst [vmem:[#allocation2 + $0x48] sm:$0xff] %v363
    %445 = vst [vmem:[#allocation2 + $0x50] sm:$0xff] %v392
    %446 = vst [vmem:[#allocation2 + $0x58] sm:$0xff] %v421
    %447 = vst [vmem:[#allocation2 + $0x60] sm:$0xff] %v336
    %448 = vst [vmem:[#allocation2 + $0x68] sm:$0xff] %v365
    %449 = vst [vmem:[#allocation2 + $0x70] sm:$0xff] %v394
    %450 = vst [vmem:[#allocation2 + $0x78] sm:$0xff] %v423
    %451 = vst [vmem:[#allocation2 + $0x80] sm:$0xff] %v339
    %452 = vst [vmem:[#allocation2 + $0x88] sm:$0xff] %v368
    %453 = vst [vmem:[#allocation2 + $0x90] sm:$0xff] %v397
    %454 = vst [vmem:[#allocation2 + $0x98] sm:$0xff] %v426
    %455 = vst [vmem:[#allocation2 + $0xa0] sm:$0xff] %v341
    %456 = vst [vmem:[#allocation2 + $0xa8] sm:$0xff] %v370
    %457 = vst [vmem:[#allocation2 + $0xb0] sm:$0xff] %v399
    %458 = vst [vmem:[#allocation2 + $0xb8] sm:$0xff] %v428
    %459 = vst [vmem:[#allocation2 + $0xc0] sm:$0xff] %v344
    %460 = vst [vmem:[#allocation2 + $0xc8] sm:$0xff] %v373
    %461 = vst [vmem:[#allocation2 + $0xd0] sm:$0xff] %v402
    %462 = vst [vmem:[#allocation2 + $0xd8] sm:$0xff] %v431
    %463 = vst [vmem:[#allocation2 + $0xe0] sm:$0xff] %v346
    %464 = vst [vmem:[#allocation2 + $0xe8] sm:$0xff] %v375
    %465 = vst [vmem:[#allocation2 + $0xf0] sm:$0xff] %v404
    %466 = vst [vmem:[#allocation2 + $0xf8] sm:$0xff] %v433
    %v467 = vld [vmem:[%s3] sm:$0xf]
    %v468 = vld [vmem:[%s6] sm:$0xf]
    %v469 = vld [vmem:[#allocation2] sm:$0xff]
    %v470 = vld [vmem:[#allocation2 + $0x8] sm:$0xff]
    %v471 = vld [vmem:[#allocation2 + $0x10] sm:$0xff]
    %v472 = vld [vmem:[#allocation2 + $0x18] sm:$0xff]
    %v474 = vperm.slane %v467, 0
    %v475 = vperm.slane %v467, 1
    %v476 = vperm.slane %v467, 2
    %v477 = vperm.slane %v467, 3
    %v482 = vadd.f32 %v469, %v474
    %v483 = vadd.f32 %v470, %v475
    %v484 = vadd.f32 %v471, %v476
    %v485 = vadd.f32 %v472, %v477
    %v486 = vxor.u32 %v482, 2147483648
    %v487 = vmul.f32 %v486, 1.442695
    %v488 = vpow.pop %v487
    %v489 = vadd.f32 %v488, 1.0
    %v490 = vrcp.pop %v489
    %v491 = vmul.f32 %v489, %v490
    %v492 = vsub.f32 1.0, %v491
    %v493 = vmul.f32 %v490, %v492
    %v494 = vadd.f32 %v490, %v493
    %vm495 = vweird.f32 %v489
    %vm496 = vweird.f32 %v490
    %vm497 = vmor %vm495, %vm496
    %v498 = vsel %vm497, %v490, %v494
    %v499 = vand.u32 2147483647, %v489
    %vm500 = vcmp.eq.f32.partialorder %v499, 8.507059e+37
    %v501 = vand.u32 %v489, 2147483648
    %v502 = vor.u32 1.1754944e-38, %v501
    %v503 = vsel %vm500, %v502, %v498
    %v504 = vmul.f32 1.0, %v503
    %v505 = vxor.u32 %v483, 2147483648
    %v506 = vmul.f32 %v505, 1.442695
    %v507 = vpow.pop %v506
    %v508 = vadd.f32 %v507, 1.0
    %v509 = vrcp.pop %v508
    %v510 = vmul.f32 %v508, %v509
    %v511 = vsub.f32 1.0, %v510
    %v512 = vmul.f32 %v509, %v511
    %v513 = vadd.f32 %v509, %v512
    %vm514 = vweird.f32 %v508
    %vm515 = vweird.f32 %v509
    %vm516 = vmor %vm514, %vm515
    %v517 = vsel %vm516, %v509, %v513
    %v518 = vand.u32 2147483647, %v508
    %vm519 = vcmp.eq.f32.partialorder %v518, 8.507059e+37
    %v520 = vand.u32 %v508, 2147483648
    %v521 = vor.u32 1.1754944e-38, %v520
    %v522 = vsel %vm519, %v521, %v517
    %v523 = vmul.f32 1.0, %v522
    %v524 = vtanh.pop %v484
    %v525 = vxor.u32 %v485, 2147483648
    %v526 = vmul.f32 %v525, 1.442695
    %v527 = vpow.pop %v526
    %v528 = vadd.f32 %v527, 1.0
    %v529 = vrcp.pop %v528
    %v530 = vmul.f32 %v528, %v529
    %v531 = vsub.f32 1.0, %v530
    %v532 = vmul.f32 %v529, %v531
    %v533 = vadd.f32 %v529, %v532
    %vm534 = vweird.f32 %v528
    %vm535 = vweird.f32 %v529
    %vm536 = vmor %vm534, %vm535
    %v537 = vsel %vm536, %v529, %v533
    %v538 = vand.u32 2147483647, %v528
    %vm539 = vcmp.eq.f32.partialorder %v538, 8.507059e+37
    %v540 = vand.u32 %v528, 2147483648
    %v541 = vor.u32 1.1754944e-38, %v540
    %v542 = vsel %vm539, %v541, %v537
    %v543 = vmul.f32 1.0, %v542
    %v544 = vmul.f32 %v523, 0.0
    %v545 = vmul.f32 %v504, %v524
    %v546 = vadd.f32 %v544, %v545
    %v547 = vtanh.pop %v546
    %v548 = vmul.f32 %v543, %v547
    %v549 = vpack.c.bf16 %v548, %v548
    %v550 = vld [vmem:[#allocation7] sm:$0xff]
    %v551 = vld [vmem:[#allocation7 + $0x8] sm:$0xff]
    %v552 = vld [vmem:[#allocation7 + $0x10] sm:$0xff]
    %v553 = vld [vmem:[#allocation7 + $0x18] sm:$0xff]
    %v554 = vld [vmem:[#allocation7 + $0x20] sm:$0xff]
    %v555 = vld [vmem:[#allocation7 + $0x28] sm:$0xff]
    %v556 = vld [vmem:[#allocation7 + $0x30] sm:$0xff]
    %v557 = vld [vmem:[#allocation7 + $0x38] sm:$0xff]
    %v558 = vld [vmem:[#allocation7 + $0x40] sm:$0xff]
    %v559 = vld [vmem:[#allocation7 + $0x48] sm:$0xff]
    %v560 = vld [vmem:[#allocation7 + $0x50] sm:$0xff]
    %v561 = vld [vmem:[#allocation7 + $0x58] sm:$0xff]
    %v562 = vld [vmem:[#allocation7 + $0x60] sm:$0xff]
    %v563 = vld [vmem:[#allocation7 + $0x68] sm:$0xff]
    %v564 = vld [vmem:[#allocation7 + $0x70] sm:$0xff]
    %v565 = vld [vmem:[#allocation7 + $0x78] sm:$0xff]
    %v566 = vld [vmem:[#allocation7 + $0x80] sm:$0xff]
    %v567 = vld [vmem:[#allocation7 + $0x88] sm:$0xff]
    %v568 = vld [vmem:[#allocation7 + $0x90] sm:$0xff]
    %v569 = vld [vmem:[#allocation7 + $0x98] sm:$0xff]
    %v570 = vld [vmem:[#allocation7 + $0xa0] sm:$0xff]
    %v571 = vld [vmem:[#allocation7 + $0xa8] sm:$0xff]
    %v572 = vld [vmem:[#allocation7 + $0xb0] sm:$0xff]
    %v573 = vld [vmem:[#allocation7 + $0xb8] sm:$0xff]
    %v574 = vld [vmem:[#allocation7 + $0xc0] sm:$0xff]
    %v575 = vld [vmem:[#allocation7 + $0xc8] sm:$0xff]
    %v576 = vld [vmem:[#allocation7 + $0xd0] sm:$0xff]
    %v577 = vld [vmem:[#allocation7 + $0xd8] sm:$0xff]
    %v578 = vld [vmem:[#allocation7 + $0xe0] sm:$0xff]
    %v579 = vld [vmem:[#allocation7 + $0xe8] sm:$0xff]
    %v580 = vld [vmem:[#allocation7 + $0xf0] sm:$0xff]
    %v581 = vld [vmem:[#allocation7 + $0xf8] sm:$0xff]
    %v583 = vperm.slane %v468, 0
    %v584 = vperm.slane %v468, 1
    %v585 = vperm.slane %v468, 2
    %v586 = vperm.slane %v468, 3
    %v623 = vunpack.c.l.b16 %v550
    %v624 = vunpack.c.h.b16 %v550
    %v625 = vunpack.c.l.b16 %v551
    %v626 = vunpack.c.h.b16 %v551
    %v627 = vunpack.c.l.b16 %v552
    %v628 = vunpack.c.h.b16 %v552
    %v629 = vunpack.c.l.b16 %v553
    %v630 = vunpack.c.h.b16 %v553
    %v631 = vunpack.c.l.b16 %v554
    %v632 = vunpack.c.h.b16 %v554
    %v633 = vunpack.c.l.b16 %v555
    %v634 = vunpack.c.h.b16 %v555
    %v635 = vunpack.c.l.b16 %v556
    %v636 = vunpack.c.h.b16 %v556
    %v637 = vunpack.c.l.b16 %v557
    %v638 = vunpack.c.h.b16 %v557
    %v639 = vunpack.c.l.b16 %v558
    %v640 = vunpack.c.h.b16 %v558
    %v641 = vunpack.c.l.b16 %v559
    %v642 = vunpack.c.h.b16 %v559
    %v643 = vunpack.c.l.b16 %v560
    %v644 = vunpack.c.h.b16 %v560
    %v645 = vunpack.c.l.b16 %v561
    %v646 = vunpack.c.h.b16 %v561
    %v647 = vunpack.c.l.b16 %v562
    %v648 = vunpack.c.h.b16 %v562
    %v649 = vunpack.c.l.b16 %v563
    %v650 = vunpack.c.h.b16 %v563
    %v651 = vunpack.c.l.b16 %v564
    %v652 = vunpack.c.h.b16 %v564
    %v653 = vunpack.c.l.b16 %v565
    %v654 = vunpack.c.h.b16 %v565
    %v655 = vunpack.c.l.b16 %v566
    %v656 = vunpack.c.h.b16 %v566
    %v657 = vunpack.c.l.b16 %v567
    %v658 = vunpack.c.h.b16 %v567
    %v659 = vunpack.c.l.b16 %v568
    %v660 = vunpack.c.h.b16 %v568
    %v661 = vunpack.c.l.b16 %v569
    %v662 = vunpack.c.h.b16 %v569
    %v663 = vunpack.c.l.b16 %v570
    %v664 = vunpack.c.h.b16 %v570
    %v665 = vunpack.c.l.b16 %v571
    %v666 = vunpack.c.h.b16 %v571
    %v667 = vunpack.c.l.b16 %v572
    %v668 = vunpack.c.h.b16 %v572
    %v669 = vunpack.c.l.b16 %v573
    %v670 = vunpack.c.h.b16 %v573
    %v671 = vunpack.c.l.b16 %v574
    %v672 = vunpack.c.h.b16 %v574
    %v673 = vunpack.c.l.b16 %v575
    %v674 = vunpack.c.h.b16 %v575
    %v675 = vunpack.c.l.b16 %v576
    %v676 = vunpack.c.h.b16 %v576
    %v677 = vunpack.c.l.b16 %v577
    %v678 = vunpack.c.h.b16 %v577
    %v679 = vunpack.c.l.b16 %v578
    %v680 = vunpack.c.h.b16 %v578
    %v681 = vunpack.c.l.b16 %v579
    %v682 = vunpack.c.h.b16 %v579
    %v683 = vunpack.c.l.b16 %v580
    %v684 = vunpack.c.h.b16 %v580
    %v685 = vunpack.c.l.b16 %v581
    %v686 = vunpack.c.h.b16 %v581
    %v687 = vpack.c.b16 %v627, %v623
    %v688 = vpack.c.b16 %v628, %v624
    %v689 = vpack.c.b16 %v629, %v625
    %v690 = vpack.c.b16 %v630, %v626
    %v691 = vpack.c.b16 %v635, %v631
    %v692 = vpack.c.b16 %v636, %v632
    %v693 = vpack.c.b16 %v637, %v633
    %v694 = vpack.c.b16 %v638, %v634
    %v695 = vpack.c.b16 %v643, %v639
    %v696 = vpack.c.b16 %v644, %v640
    %v697 = vpack.c.b16 %v645, %v641
    %v698 = vpack.c.b16 %v646, %v642
    %v699 = vpack.c.b16 %v651, %v647
    %v700 = vpack.c.b16 %v652, %v648
    %v701 = vpack.c.b16 %v653, %v649
    %v702 = vpack.c.b16 %v654, %v650
    %v703 = vpack.c.b16 %v659, %v655
    %v704 = vpack.c.b16 %v660, %v656
    %v705 = vpack.c.b16 %v661, %v657
    %v706 = vpack.c.b16 %v662, %v658
    %v707 = vpack.c.b16 %v667, %v663
    %v708 = vpack.c.b16 %v668, %v664
    %v709 = vpack.c.b16 %v669, %v665
    %v710 = vpack.c.b16 %v670, %v666
    %v711 = vpack.c.b16 %v675, %v671
    %v712 = vpack.c.b16 %v676, %v672
    %v713 = vpack.c.b16 %v677, %v673
    %v714 = vpack.c.b16 %v678, %v674
    %v715 = vpack.c.b16 %v683, %v679
    %v716 = vpack.c.b16 %v684, %v680
    %v717 = vpack.c.b16 %v685, %v681
    %v718 = vpack.c.b16 %v686, %v682
    %751 = vmatpush.bf16.msra.mxu0 %v715
    %752 = vmatpush.bf16.msra.mxu0 %v711
    %753 = vmatpush.bf16.msra.mxu0 %v707
    %754 = vmatpush.bf16.msra.mxu0 %v703
    %755 = vmatpush.bf16.msra.mxu0 %v699
    %756 = vmatpush.bf16.msra.mxu0 %v695
    %757 = vmatpush.bf16.msra.mxu0 %v691
    %758 = vmatpush.bf16.msra.mxu0 %v687
    %759 = vmatmul.bf16.gmra.mxu0 %v549
    %v760 = vpop.f32.mrf.mxu0
    %v761 = vadd.f32 %v583, %v760
    %v762 = vpop.f32.mrf.mxu0
    %763 = vdwg.mxu0
    %764 = vmatpush.bf16.msra.mxu0 %v716
    %765 = vmatpush.bf16.msra.mxu0 %v712
    %766 = vmatpush.bf16.msra.mxu0 %v708
    %767 = vmatpush.bf16.msra.mxu0 %v704
    %768 = vmatpush.bf16.msra.mxu0 %v700
    %769 = vmatpush.bf16.msra.mxu0 %v696
    %770 = vmatpush.bf16.msra.mxu0 %v692
    %771 = vmatpush.bf16.msra.mxu0 %v688
    %772 = vmatmul.bf16.gmra.mxu0 %v549
    %v773 = vpop.f32.mrf.mxu0
    %v774 = vadd.f32 %v584, %v773
    %v775 = vpop.f32.mrf.mxu0
    %776 = vdwg.mxu0
    %777 = vmatpush.bf16.msra.mxu0 %v717
    %778 = vmatpush.bf16.msra.mxu0 %v713
    %779 = vmatpush.bf16.msra.mxu0 %v709
    %780 = vmatpush.bf16.msra.mxu0 %v705
    %781 = vmatpush.bf16.msra.mxu0 %v701
    %782 = vmatpush.bf16.msra.mxu0 %v697
    %783 = vmatpush.bf16.msra.mxu0 %v693
    %784 = vmatpush.bf16.msra.mxu0 %v689
    %785 = vmatmul.bf16.gmra.mxu0 %v549
    %v786 = vpop.f32.mrf.mxu0
    %v787 = vadd.f32 %v585, %v786
    %v788 = vpop.f32.mrf.mxu0
    %789 = vdwg.mxu0
    %790 = vmatpush.bf16.msra.mxu0 %v718
    %791 = vmatpush.bf16.msra.mxu0 %v714
    %792 = vmatpush.bf16.msra.mxu0 %v710
    %793 = vmatpush.bf16.msra.mxu0 %v706
    %794 = vmatpush.bf16.msra.mxu0 %v702
    %795 = vmatpush.bf16.msra.mxu0 %v698
    %796 = vmatpush.bf16.msra.mxu0 %v694
    %797 = vmatpush.bf16.msra.mxu0 %v690
    %798 = vmatmul.bf16.gmra.mxu0 %v549
    %v799 = vpop.f32.mrf.mxu0
    %v800 = vadd.f32 %v586, %v799
    %v801 = vpop.f32.mrf.mxu0
    %802 = vdwg.mxu0
    %v803 = vxor.u32 %v761, 2147483648
    %v804 = vmul.f32 %v803, 1.442695
    %v805 = vpow.pop %v804
    %v806 = vadd.f32 %v805, 1.0
    %v807 = vrcp.pop %v806
    %v808 = vmul.f32 %v806, %v807
    %v809 = vsub.f32 1.0, %v808
    %v810 = vmul.f32 %v807, %v809
    %v811 = vadd.f32 %v807, %v810
    %vm812 = vweird.f32 %v806
    %vm813 = vweird.f32 %v807
    %vm814 = vmor %vm812, %vm813
    %v815 = vsel %vm814, %v807, %v811
    %v816 = vand.u32 2147483647, %v806
    %vm817 = vcmp.eq.f32.partialorder %v816, 8.507059e+37
    %v818 = vand.u32 %v806, 2147483648
    %v819 = vor.u32 1.1754944e-38, %v818
    %v820 = vsel %vm817, %v819, %v815
    %v821 = vmul.f32 1.0, %v820
    %v822 = vxor.u32 %v774, 2147483648
    %v823 = vmul.f32 %v822, 1.442695
    %v824 = vpow.pop %v823
    %v825 = vadd.f32 %v824, 1.0
    %v826 = vrcp.pop %v825
    %v827 = vmul.f32 %v825, %v826
    %v828 = vsub.f32 1.0, %v827
    %v829 = vmul.f32 %v826, %v828
    %v830 = vadd.f32 %v826, %v829
    %vm831 = vweird.f32 %v825
    %vm832 = vweird.f32 %v826
    %vm833 = vmor %vm831, %vm832
    %v834 = vsel %vm833, %v826, %v830
    %v835 = vand.u32 2147483647, %v825
    %vm836 = vcmp.eq.f32.partialorder %v835, 8.507059e+37
    %v837 = vand.u32 %v825, 2147483648
    %v838 = vor.u32 1.1754944e-38, %v837
    %v839 = vsel %vm836, %v838, %v834
    %v840 = vmul.f32 1.0, %v839
    %v841 = vtanh.pop %v787
    %v842 = vxor.u32 %v800, 2147483648
    %v843 = vmul.f32 %v842, 1.442695
    %v844 = vpow.pop %v843
    %v845 = vadd.f32 %v844, 1.0
    %v846 = vrcp.pop %v845
    %v847 = vmul.f32 %v845, %v846
    %v848 = vsub.f32 1.0, %v847
    %v849 = vmul.f32 %v846, %v848
    %v850 = vadd.f32 %v846, %v849
    %vm851 = vweird.f32 %v845
    %vm852 = vweird.f32 %v846
    %vm853 = vmor %vm851, %vm852
    %v854 = vsel %vm853, %v846, %v850
    %v855 = vand.u32 2147483647, %v845
    %vm856 = vcmp.eq.f32.partialorder %v855, 8.507059e+37
    %v857 = vand.u32 %v845, 2147483648
    %v858 = vor.u32 1.1754944e-38, %v857
    %v859 = vsel %vm856, %v858, %v854
    %v860 = vmul.f32 1.0, %v859
    %v861 = vmul.f32 %v840, 0.0
    %v862 = vmul.f32 %v821, %v841
    %v863 = vadd.f32 %v861, %v862
    %v864 = vtanh.pop %v863
    %v865 = vmul.f32 %v860, %v864
    %v866 = vpack.c.bf16 %v865, %v865
    %v867 = vld [vmem:[#allocation2 + $0x20] sm:$0xff]
    %v868 = vld [vmem:[#allocation2 + $0x28] sm:$0xff]
    %v869 = vld [vmem:[#allocation2 + $0x30] sm:$0xff]
    %v870 = vld [vmem:[#allocation2 + $0x38] sm:$0xff]
    %v871 = vadd.f32 %v867, %v474
    %v872 = vadd.f32 %v868, %v475
    %v873 = vadd.f32 %v869, %v476
    %v874 = vadd.f32 %v870, %v477
    %v875 = vld [vmem:[#allocation5] sm:$0xff]
    %v876 = vld [vmem:[#allocation5 + $0x8] sm:$0xff]
    %v877 = vld [vmem:[#allocation5 + $0x10] sm:$0xff]
    %v878 = vld [vmem:[#allocation5 + $0x18] sm:$0xff]
    %v879 = vld [vmem:[#allocation5 + $0x20] sm:$0xff]
    %v880 = vld [vmem:[#allocation5 + $0x28] sm:$0xff]
    %v881 = vld [vmem:[#allocation5 + $0x30] sm:$0xff]
    %v882 = vld [vmem:[#allocation5 + $0x38] sm:$0xff]
    %v883 = vld [vmem:[#allocation5 + $0x40] sm:$0xff]
    %v884 = vld [vmem:[#allocation5 + $0x48] sm:$0xff]
    %v885 = vld [vmem:[#allocation5 + $0x50] sm:$0xff]
    %v886 = vld [vmem:[#allocation5 + $0x58] sm:$0xff]
    %v887 = vld [vmem:[#allocation5 + $0x60] sm:$0xff]
    %v888 = vld [vmem:[#allocation5 + $0x68] sm:$0xff]
    %v889 = vld [vmem:[#allocation5 + $0x70] sm:$0xff]
    %v890 = vld [vmem:[#allocation5 + $0x78] sm:$0xff]
    %v891 = vld [vmem:[#allocation5 + $0x80] sm:$0xff]
    %v892 = vld [vmem:[#allocation5 + $0x88] sm:$0xff]
    %v893 = vld [vmem:[#allocation5 + $0x90] sm:$0xff]
    %v894 = vld [vmem:[#allocation5 + $0x98] sm:$0xff]
    %v895 = vld [vmem:[#allocation5 + $0xa0] sm:$0xff]
    %v896 = vld [vmem:[#allocation5 + $0xa8] sm:$0xff]
    %v897 = vld [vmem:[#allocation5 + $0xb0] sm:$0xff]
    %v898 = vld [vmem:[#allocation5 + $0xb8] sm:$0xff]
    %v899 = vld [vmem:[#allocation5 + $0xc0] sm:$0xff]
    %v900 = vld [vmem:[#allocation5 + $0xc8] sm:$0xff]
    %v901 = vld [vmem:[#allocation5 + $0xd0] sm:$0xff]
    %v902 = vld [vmem:[#allocation5 + $0xd8] sm:$0xff]
    %v903 = vld [vmem:[#allocation5 + $0xe0] sm:$0xff]
    %v904 = vld [vmem:[#allocation5 + $0xe8] sm:$0xff]
    %v905 = vld [vmem:[#allocation5 + $0xf0] sm:$0xff]
    %v906 = vld [vmem:[#allocation5 + $0xf8] sm:$0xff]
    %v939 = vunpack.c.l.b16 %v875
    %v940 = vunpack.c.h.b16 %v875
    %v941 = vunpack.c.l.b16 %v876
    %v942 = vunpack.c.h.b16 %v876
    %v943 = vunpack.c.l.b16 %v877
    %v944 = vunpack.c.h.b16 %v877
    %v945 = vunpack.c.l.b16 %v878
    %v946 = vunpack.c.h.b16 %v878
    %v947 = vunpack.c.l.b16 %v879
    %v948 = vunpack.c.h.b16 %v879
    %v949 = vunpack.c.l.b16 %v880
    %v950 = vunpack.c.h.b16 %v880
    %v951 = vunpack.c.l.b16 %v881
    %v952 = vunpack.c.h.b16 %v881
    %v953 = vunpack.c.l.b16 %v882
    %v954 = vunpack.c.h.b16 %v882
    %v955 = vunpack.c.l.b16 %v883
    %v956 = vunpack.c.h.b16 %v883
    %v957 = vunpack.c.l.b16 %v884
    %v958 = vunpack.c.h.b16 %v884
    %v959 = vunpack.c.l.b16 %v885
    %v960 = vunpack.c.h.b16 %v885
    %v961 = vunpack.c.l.b16 %v886
    %v962 = vunpack.c.h.b16 %v886
    %v963 = vunpack.c.l.b16 %v887
    %v964 = vunpack.c.h.b16 %v887
    %v965 = vunpack.c.l.b16 %v888
    %v966 = vunpack.c.h.b16 %v888
    %v967 = vunpack.c.l.b16 %v889
    %v968 = vunpack.c.h.b16 %v889
    %v969 = vunpack.c.l.b16 %v890
    %v970 = vunpack.c.h.b16 %v890
    %v971 = vunpack.c.l.b16 %v891
    %v972 = vunpack.c.h.b16 %v891
    %v973 = vunpack.c.l.b16 %v892
    %v974 = vunpack.c.h.b16 %v892
    %v975 = vunpack.c.l.b16 %v893
    %v976 = vunpack.c.h.b16 %v893
    %v977 = vunpack.c.l.b16 %v894
    %v978 = vunpack.c.h.b16 %v894
    %v979 = vunpack.c.l.b16 %v895
    %v980 = vunpack.c.h.b16 %v895
    %v981 = vunpack.c.l.b16 %v896
    %v982 = vunpack.c.h.b16 %v896
    %v983 = vunpack.c.l.b16 %v897
    %v984 = vunpack.c.h.b16 %v897
    %v985 = vunpack.c.l.b16 %v898
    %v986 = vunpack.c.h.b16 %v898
    %v987 = vunpack.c.l.b16 %v899
    %v988 = vunpack.c.h.b16 %v899
    %v989 = vunpack.c.l.b16 %v900
    %v990 = vunpack.c.h.b16 %v900
    %v991 = vunpack.c.l.b16 %v901
    %v992 = vunpack.c.h.b16 %v901
    %v993 = vunpack.c.l.b16 %v902
    %v994 = vunpack.c.h.b16 %v902
    %v995 = vunpack.c.l.b16 %v903
    %v996 = vunpack.c.h.b16 %v903
    %v997 = vunpack.c.l.b16 %v904
    %v998 = vunpack.c.h.b16 %v904
    %v999 = vunpack.c.l.b16 %v905
    %v1000 = vunpack.c.h.b16 %v905
    %v1001 = vunpack.c.l.b16 %v906
    %v1002 = vunpack.c.h.b16 %v906
    %v1003 = vpack.c.b16 %v943, %v939
    %v1004 = vpack.c.b16 %v944, %v940
    %v1005 = vpack.c.b16 %v945, %v941
    %v1006 = vpack.c.b16 %v946, %v942
    %v1007 = vpack.c.b16 %v951, %v947
    %v1008 = vpack.c.b16 %v952, %v948
    %v1009 = vpack.c.b16 %v953, %v949
    %v1010 = vpack.c.b16 %v954, %v950
    %v1011 = vpack.c.b16 %v959, %v955
    %v1012 = vpack.c.b16 %v960, %v956
    %v1013 = vpack.c.b16 %v961, %v957
    %v1014 = vpack.c.b16 %v962, %v958
    %v1015 = vpack.c.b16 %v967, %v963
    %v1016 = vpack.c.b16 %v968, %v964
    %v1017 = vpack.c.b16 %v969, %v965
    %v1018 = vpack.c.b16 %v970, %v966
    %v1019 = vpack.c.b16 %v975, %v971
    %v1020 = vpack.c.b16 %v976, %v972
    %v1021 = vpack.c.b16 %v977, %v973
    %v1022 = vpack.c.b16 %v978, %v974
    %v1023 = vpack.c.b16 %v983, %v979
    %v1024 = vpack.c.b16 %v984, %v980
    %v1025 = vpack.c.b16 %v985, %v981
    %v1026 = vpack.c.b16 %v986, %v982
    %v1027 = vpack.c.b16 %v991, %v987
    %v1028 = vpack.c.b16 %v992, %v988
    %v1029 = vpack.c.b16 %v993, %v989
    %v1030 = vpack.c.b16 %v994, %v990
    %v1031 = vpack.c.b16 %v999, %v995
    %v1032 = vpack.c.b16 %v1000, %v996
    %v1033 = vpack.c.b16 %v1001, %v997
    %v1034 = vpack.c.b16 %v1002, %v998
    %1067 = vmatpush.bf16.msra.mxu0 %v1031
    %1068 = vmatpush.bf16.msra.mxu0 %v1027
    %1069 = vmatpush.bf16.msra.mxu0 %v1023
    %1070 = vmatpush.bf16.msra.mxu0 %v1019
    %1071 = vmatpush.bf16.msra.mxu0 %v1015
    %1072 = vmatpush.bf16.msra.mxu0 %v1011
    %1073 = vmatpush.bf16.msra.mxu0 %v1007
    %1074 = vmatpush.bf16.msra.mxu0 %v1003
    %1075 = vmatmul.bf16.gmra.mxu0 %v549
    %v1076 = vpop.f32.mrf.mxu0
    %v1077 = vadd.f32 0.0, %v1076
    %v1078 = vpop.f32.mrf.mxu0
    %1079 = vdwg.mxu0
    %1080 = vmatpush.bf16.msra.mxu0 %v1032
    %1081 = vmatpush.bf16.msra.mxu0 %v1028
    %1082 = vmatpush.bf16.msra.mxu0 %v1024
    %1083 = vmatpush.bf16.msra.mxu0 %v1020
    %1084 = vmatpush.bf16.msra.mxu0 %v1016
    %1085 = vmatpush.bf16.msra.mxu0 %v1012
    %1086 = vmatpush.bf16.msra.mxu0 %v1008
    %1087 = vmatpush.bf16.msra.mxu0 %v1004
    %1088 = vmatmul.bf16.gmra.mxu0 %v549
    %v1089 = vpop.f32.mrf.mxu0
    %v1090 = vadd.f32 0.0, %v1089
    %v1091 = vpop.f32.mrf.mxu0
    %1092 = vdwg.mxu0
    %1093 = vmatpush.bf16.msra.mxu0 %v1033
    %1094 = vmatpush.bf16.msra.mxu0 %v1029
    %1095 = vmatpush.bf16.msra.mxu0 %v1025
    %1096 = vmatpush.bf16.msra.mxu0 %v1021
    %1097 = vmatpush.bf16.msra.mxu0 %v1017
    %1098 = vmatpush.bf16.msra.mxu0 %v1013
    %1099 = vmatpush.bf16.msra.mxu0 %v1009
    %1100 = vmatpush.bf16.msra.mxu0 %v1005
    %1101 = vmatmul.bf16.gmra.mxu0 %v549
    %v1102 = vpop.f32.mrf.mxu0
    %v1103 = vadd.f32 0.0, %v1102
    %v1104 = vpop.f32.mrf.mxu0
    %1105 = vdwg.mxu0
    %1106 = vmatpush.bf16.msra.mxu0 %v1034
    %1107 = vmatpush.bf16.msra.mxu0 %v1030
    %1108 = vmatpush.bf16.msra.mxu0 %v1026
    %1109 = vmatpush.bf16.msra.mxu0 %v1022
    %1110 = vmatpush.bf16.msra.mxu0 %v1018
    %1111 = vmatpush.bf16.msra.mxu0 %v1014
    %1112 = vmatpush.bf16.msra.mxu0 %v1010
    %1113 = vmatpush.bf16.msra.mxu0 %v1006
    %1114 = vmatmul.bf16.gmra.mxu0 %v549
    %v1115 = vpop.f32.mrf.mxu0
    %v1116 = vadd.f32 0.0, %v1115
    %v1117 = vpop.f32.mrf.mxu0
    %1118 = vdwg.mxu0
    %v1119 = vadd.f32 %v871, %v1077
    %v1120 = vadd.f32 %v872, %v1090
    %v1121 = vadd.f32 %v873, %v1103
    %v1122 = vadd.f32 %v874, %v1116
    %v1123 = vxor.u32 %v1119, 2147483648
    %v1124 = vmul.f32 %v1123, 1.442695
    %v1125 = vpow.pop %v1124
    %v1126 = vadd.f32 %v1125, 1.0
    %v1127 = vrcp.pop %v1126
    %v1128 = vmul.f32 %v1126, %v1127
    %v1129 = vsub.f32 1.0, %v1128
    %v1130 = vmul.f32 %v1127, %v1129
    %v1131 = vadd.f32 %v1127, %v1130
    %vm1132 = vweird.f32 %v1126
    %vm1133 = vweird.f32 %v1127
    %vm1134 = vmor %vm1132, %vm1133
    %v1135 = vsel %vm1134, %v1127, %v1131
    %v1136 = vand.u32 2147483647, %v1126
    %vm1137 = vcmp.eq.f32.partialorder %v1136, 8.507059e+37
    %v1138 = vand.u32 %v1126, 2147483648
    %v1139 = vor.u32 1.1754944e-38, %v1138
    %v1140 = vsel %vm1137, %v1139, %v1135
    %v1141 = vmul.f32 1.0, %v1140
    %v1142 = vxor.u32 %v1120, 2147483648
    %v1143 = vmul.f32 %v1142, 1.442695
    %v1144 = vpow.pop %v1143
    %v1145 = vadd.f32 %v1144, 1.0
    %v1146 = vrcp.pop %v1145
    %v1147 = vmul.f32 %v1145, %v1146
    %v1148 = vsub.f32 1.0, %v1147
    %v1149 = vmul.f32 %v1146, %v1148
    %v1150 = vadd.f32 %v1146, %v1149
    %vm1151 = vweird.f32 %v1145
    %vm1152 = vweird.f32 %v1146
    %vm1153 = vmor %vm1151, %vm1152
    %v1154 = vsel %vm1153, %v1146, %v1150
    %v1155 = vand.u32 2147483647, %v1145
    %vm1156 = vcmp.eq.f32.partialorder %v1155, 8.507059e+37
    %v1157 = vand.u32 %v1145, 2147483648
    %v1158 = vor.u32 1.1754944e-38, %v1157
    %v1159 = vsel %vm1156, %v1158, %v1154
    %v1160 = vmul.f32 1.0, %v1159
    %v1161 = vtanh.pop %v1121
    %v1162 = vxor.u32 %v1122, 2147483648
    %v1163 = vmul.f32 %v1162, 1.442695
    %v1164 = vpow.pop %v1163
    %v1165 = vadd.f32 %v1164, 1.0
    %v1166 = vrcp.pop %v1165
    %v1167 = vmul.f32 %v1165, %v1166
    %v1168 = vsub.f32 1.0, %v1167
    %v1169 = vmul.f32 %v1166, %v1168
    %v1170 = vadd.f32 %v1166, %v1169
    %vm1171 = vweird.f32 %v1165
    %vm1172 = vweird.f32 %v1166
    %vm1173 = vmor %vm1171, %vm1172
    %v1174 = vsel %vm1173, %v1166, %v1170
    %v1175 = vand.u32 2147483647, %v1165
    %vm1176 = vcmp.eq.f32.partialorder %v1175, 8.507059e+37
    %v1177 = vand.u32 %v1165, 2147483648
    %v1178 = vor.u32 1.1754944e-38, %v1177
    %v1179 = vsel %vm1176, %v1178, %v1174
    %v1180 = vmul.f32 1.0, %v1179
    %v1181 = vmul.f32 %v1160, %v546
    %v1182 = vmul.f32 %v1141, %v1161
    %v1183 = vadd.f32 %v1181, %v1182
    %v1184 = vtanh.pop %v1183
    %v1185 = vmul.f32 %v1180, %v1184
    %v1186 = vpack.c.bf16 %v1185, %v1185
    %1187 = vmatpush.bf16.msra.mxu0 %v715
    %1188 = vmatpush.bf16.msra.mxu0 %v711
    %1189 = vmatpush.bf16.msra.mxu0 %v707
    %1190 = vmatpush.bf16.msra.mxu0 %v703
    %1191 = vmatpush.bf16.msra.mxu0 %v699
    %1192 = vmatpush.bf16.msra.mxu0 %v695
    %1193 = vmatpush.bf16.msra.mxu0 %v691
    %1194 = vmatpush.bf16.msra.mxu0 %v687
    %1195 = vmatmul.bf16.gmra.mxu0 %v1186
    %v1196 = vpop.f32.mrf.mxu0
    %v1197 = vadd.f32 %v583, %v1196
    %v1198 = vpop.f32.mrf.mxu0
    %1199 = vdwg.mxu0
    %1200 = vmatpush.bf16.msra.mxu0 %v716
    %1201 = vmatpush.bf16.msra.mxu0 %v712
    %1202 = vmatpush.bf16.msra.mxu0 %v708
    %1203 = vmatpush.bf16.msra.mxu0 %v704
    %1204 = vmatpush.bf16.msra.mxu0 %v700
    %1205 = vmatpush.bf16.msra.mxu0 %v696
    %1206 = vmatpush.bf16.msra.mxu0 %v692
    %1207 = vmatpush.bf16.msra.mxu0 %v688
    %1208 = vmatmul.bf16.gmra.mxu0 %v1186
    %v1209 = vpop.f32.mrf.mxu0
    %v1210 = vadd.f32 %v584, %v1209
    %v1211 = vpop.f32.mrf.mxu0
    %1212 = vdwg.mxu0
    %1213 = vmatpush.bf16.msra.mxu0 %v717
    %1214 = vmatpush.bf16.msra.mxu0 %v713
    %1215 = vmatpush.bf16.msra.mxu0 %v709
    %1216 = vmatpush.bf16.msra.mxu0 %v705
    %1217 = vmatpush.bf16.msra.mxu0 %v701
    %1218 = vmatpush.bf16.msra.mxu0 %v697
    %1219 = vmatpush.bf16.msra.mxu0 %v693
    %1220 = vmatpush.bf16.msra.mxu0 %v689
    %1221 = vmatmul.bf16.gmra.mxu0 %v1186
    %v1222 = vpop.f32.mrf.mxu0
    %v1223 = vadd.f32 %v585, %v1222
    %v1224 = vpop.f32.mrf.mxu0
    %1225 = vdwg.mxu0
    %1226 = vmatpush.bf16.msra.mxu0 %v718
    %1227 = vmatpush.bf16.msra.mxu0 %v714
    %1228 = vmatpush.bf16.msra.mxu0 %v710
    %1229 = vmatpush.bf16.msra.mxu0 %v706
    %1230 = vmatpush.bf16.msra.mxu0 %v702
    %1231 = vmatpush.bf16.msra.mxu0 %v698
    %1232 = vmatpush.bf16.msra.mxu0 %v694
    %1233 = vmatpush.bf16.msra.mxu0 %v690
    %1234 = vmatmul.bf16.gmra.mxu0 %v1186
    %v1235 = vpop.f32.mrf.mxu0
    %v1236 = vadd.f32 %v586, %v1235
    %v1237 = vpop.f32.mrf.mxu0
    %1238 = vdwg.mxu0
    %v1239 = vld [vmem:[#allocation8] sm:$0xff]
    %v1240 = vld [vmem:[#allocation8 + $0x8] sm:$0xff]
    %v1241 = vld [vmem:[#allocation8 + $0x10] sm:$0xff]
    %v1242 = vld [vmem:[#allocation8 + $0x18] sm:$0xff]
    %v1243 = vld [vmem:[#allocation8 + $0x20] sm:$0xff]
    %v1244 = vld [vmem:[#allocation8 + $0x28] sm:$0xff]
    %v1245 = vld [vmem:[#allocation8 + $0x30] sm:$0xff]
    %v1246 = vld [vmem:[#allocation8 + $0x38] sm:$0xff]
    %v1247 = vld [vmem:[#allocation8 + $0x40] sm:$0xff]
    %v1248 = vld [vmem:[#allocation8 + $0x48] sm:$0xff]
    %v1249 = vld [vmem:[#allocation8 + $0x50] sm:$0xff]
    %v1250 = vld [vmem:[#allocation8 + $0x58] sm:$0xff]
    %v1251 = vld [vmem:[#allocation8 + $0x60] sm:$0xff]
    %v1252 = vld [vmem:[#allocation8 + $0x68] sm:$0xff]
    %v1253 = vld [vmem:[#allocation8 + $0x70] sm:$0xff]
    %v1254 = vld [vmem:[#allocation8 + $0x78] sm:$0xff]
    %v1255 = vld [vmem:[#allocation8 + $0x80] sm:$0xff]
    %v1256 = vld [vmem:[#allocation8 + $0x88] sm:$0xff]
    %v1257 = vld [vmem:[#allocation8 + $0x90] sm:$0xff]
    %v1258 = vld [vmem:[#allocation8 + $0x98] sm:$0xff]
    %v1259 = vld [vmem:[#allocation8 + $0xa0] sm:$0xff]
    %v1260 = vld [vmem:[#allocation8 + $0xa8] sm:$0xff]
    %v1261 = vld [vmem:[#allocation8 + $0xb0] sm:$0xff]
    %v1262 = vld [vmem:[#allocation8 + $0xb8] sm:$0xff]
    %v1263 = vld [vmem:[#allocation8 + $0xc0] sm:$0xff]
    %v1264 = vld [vmem:[#allocation8 + $0xc8] sm:$0xff]
    %v1265 = vld [vmem:[#allocation8 + $0xd0] sm:$0xff]
    %v1266 = vld [vmem:[#allocation8 + $0xd8] sm:$0xff]
    %v1267 = vld [vmem:[#allocation8 + $0xe0] sm:$0xff]
    %v1268 = vld [vmem:[#allocation8 + $0xe8] sm:$0xff]
    %v1269 = vld [vmem:[#allocation8 + $0xf0] sm:$0xff]
    %v1270 = vld [vmem:[#allocation8 + $0xf8] sm:$0xff]
    %v1303 = vunpack.c.l.b16 %v1239
    %v1304 = vunpack.c.h.b16 %v1239
    %v1305 = vunpack.c.l.b16 %v1240
    %v1306 = vunpack.c.h.b16 %v1240
    %v1307 = vunpack.c.l.b16 %v1241
    %v1308 = vunpack.c.h.b16 %v1241
    %v1309 = vunpack.c.l.b16 %v1242
    %v1310 = vunpack.c.h.b16 %v1242
    %v1311 = vunpack.c.l.b16 %v1243
    %v1312 = vunpack.c.h.b16 %v1243
    %v1313 = vunpack.c.l.b16 %v1244
    %v1314 = vunpack.c.h.b16 %v1244
    %v1315 = vunpack.c.l.b16 %v1245
    %v1316 = vunpack.c.h.b16 %v1245
    %v1317 = vunpack.c.l.b16 %v1246
    %v1318 = vunpack.c.h.b16 %v1246
    %v1319 = vunpack.c.l.b16 %v1247
    %v1320 = vunpack.c.h.b16 %v1247
    %v1321 = vunpack.c.l.b16 %v1248
    %v1322 = vunpack.c.h.b16 %v1248
    %v1323 = vunpack.c.l.b16 %v1249
    %v1324 = vunpack.c.h.b16 %v1249
    %v1325 = vunpack.c.l.b16 %v1250
    %v1326 = vunpack.c.h.b16 %v1250
    %v1327 = vunpack.c.l.b16 %v1251
    %v1328 = vunpack.c.h.b16 %v1251
    %v1329 = vunpack.c.l.b16 %v1252
    %v1330 = vunpack.c.h.b16 %v1252
    %v1331 = vunpack.c.l.b16 %v1253
    %v1332 = vunpack.c.h.b16 %v1253
    %v1333 = vunpack.c.l.b16 %v1254
    %v1334 = vunpack.c.h.b16 %v1254
    %v1335 = vunpack.c.l.b16 %v1255
    %v1336 = vunpack.c.h.b16 %v1255
    %v1337 = vunpack.c.l.b16 %v1256
    %v1338 = vunpack.c.h.b16 %v1256
    %v1339 = vunpack.c.l.b16 %v1257
    %v1340 = vunpack.c.h.b16 %v1257
    %v1341 = vunpack.c.l.b16 %v1258
    %v1342 = vunpack.c.h.b16 %v1258
    %v1343 = vunpack.c.l.b16 %v1259
    %v1344 = vunpack.c.h.b16 %v1259
    %v1345 = vunpack.c.l.b16 %v1260
    %v1346 = vunpack.c.h.b16 %v1260
    %v1347 = vunpack.c.l.b16 %v1261
    %v1348 = vunpack.c.h.b16 %v1261
    %v1349 = vunpack.c.l.b16 %v1262
    %v1350 = vunpack.c.h.b16 %v1262
    %v1351 = vunpack.c.l.b16 %v1263
    %v1352 = vunpack.c.h.b16 %v1263
    %v1353 = vunpack.c.l.b16 %v1264
    %v1354 = vunpack.c.h.b16 %v1264
    %v1355 = vunpack.c.l.b16 %v1265
    %v1356 = vunpack.c.h.b16 %v1265
    %v1357 = vunpack.c.l.b16 %v1266
    %v1358 = vunpack.c.h.b16 %v1266
    %v1359 = vunpack.c.l.b16 %v1267
    %v1360 = vunpack.c.h.b16 %v1267
    %v1361 = vunpack.c.l.b16 %v1268
    %v1362 = vunpack.c.h.b16 %v1268
    %v1363 = vunpack.c.l.b16 %v1269
    %v1364 = vunpack.c.h.b16 %v1269
    %v1365 = vunpack.c.l.b16 %v1270
    %v1366 = vunpack.c.h.b16 %v1270
    %v1367 = vpack.c.b16 %v1307, %v1303
    %v1368 = vpack.c.b16 %v1308, %v1304
    %v1369 = vpack.c.b16 %v1309, %v1305
    %v1370 = vpack.c.b16 %v1310, %v1306
    %v1371 = vpack.c.b16 %v1315, %v1311
    %v1372 = vpack.c.b16 %v1316, %v1312
    %v1373 = vpack.c.b16 %v1317, %v1313
    %v1374 = vpack.c.b16 %v1318, %v1314
    %v1375 = vpack.c.b16 %v1323, %v1319
    %v1376 = vpack.c.b16 %v1324, %v1320
    %v1377 = vpack.c.b16 %v1325, %v1321
    %v1378 = vpack.c.b16 %v1326, %v1322
    %v1379 = vpack.c.b16 %v1331, %v1327
    %v1380 = vpack.c.b16 %v1332, %v1328
    %v1381 = vpack.c.b16 %v1333, %v1329
    %v1382 = vpack.c.b16 %v1334, %v1330
    %v1383 = vpack.c.b16 %v1339, %v1335
    %v1384 = vpack.c.b16 %v1340, %v1336
    %v1385 = vpack.c.b16 %v1341, %v1337
    %v1386 = vpack.c.b16 %v1342, %v1338
    %v1387 = vpack.c.b16 %v1347, %v1343
    %v1388 = vpack.c.b16 %v1348, %v1344
    %v1389 = vpack.c.b16 %v1349, %v1345
    %v1390 = vpack.c.b16 %v1350, %v1346
    %v1391 = vpack.c.b16 %v1355, %v1351
    %v1392 = vpack.c.b16 %v1356, %v1352
    %v1393 = vpack.c.b16 %v1357, %v1353
    %v1394 = vpack.c.b16 %v1358, %v1354
    %v1395 = vpack.c.b16 %v1363, %v1359
    %v1396 = vpack.c.b16 %v1364, %v1360
    %v1397 = vpack.c.b16 %v1365, %v1361
    %v1398 = vpack.c.b16 %v1366, %v1362
    %1431 = vmatpush.bf16.msra.mxu0 %v1395
    %1432 = vmatpush.bf16.msra.mxu0 %v1391
    %1433 = vmatpush.bf16.msra.mxu0 %v1387
    %1434 = vmatpush.bf16.msra.mxu0 %v1383
    %1435 = vmatpush.bf16.msra.mxu0 %v1379
    %1436 = vmatpush.bf16.msra.mxu0 %v1375
    %1437 = vmatpush.bf16.msra.mxu0 %v1371
    %1438 = vmatpush.bf16.msra.mxu0 %v1367
    %1439 = vmatmul.bf16.gmra.mxu0 %v866
    %v1440 = vpop.f32.mrf.mxu0
    %v1441 = vadd.f32 0.0, %v1440
    %v1442 = vpop.f32.mrf.mxu0
    %1443 = vdwg.mxu0
    %1444 = vmatpush.bf16.msra.mxu0 %v1396
    %1445 = vmatpush.bf16.msra.mxu0 %v1392
    %1446 = vmatpush.bf16.msra.mxu0 %v1388
    %1447 = vmatpush.bf16.msra.mxu0 %v1384
    %1448 = vmatpush.bf16.msra.mxu0 %v1380
    %1449 = vmatpush.bf16.msra.mxu0 %v1376
    %1450 = vmatpush.bf16.msra.mxu0 %v1372
    %1451 = vmatpush.bf16.msra.mxu0 %v1368
    %1452 = vmatmul.bf16.gmra.mxu0 %v866
    %v1453 = vpop.f32.mrf.mxu0
    %v1454 = vadd.f32 0.0, %v1453
    %v1455 = vpop.f32.mrf.mxu0
    %1456 = vdwg.mxu0
    %1457 = vmatpush.bf16.msra.mxu0 %v1397
    %1458 = vmatpush.bf16.msra.mxu0 %v1393
    %1459 = vmatpush.bf16.msra.mxu0 %v1389
    %1460 = vmatpush.bf16.msra.mxu0 %v1385
    %1461 = vmatpush.bf16.msra.mxu0 %v1381
    %1462 = vmatpush.bf16.msra.mxu0 %v1377
    %1463 = vmatpush.bf16.msra.mxu0 %v1373
    %1464 = vmatpush.bf16.msra.mxu0 %v1369
    %1465 = vmatmul.bf16.gmra.mxu0 %v866
    %v1466 = vpop.f32.mrf.mxu0
    %v1467 = vadd.f32 0.0, %v1466
    %v1468 = vpop.f32.mrf.mxu0
    %1469 = vdwg.mxu0
    %1470 = vmatpush.bf16.msra.mxu0 %v1398
    %1471 = vmatpush.bf16.msra.mxu0 %v1394
    %1472 = vmatpush.bf16.msra.mxu0 %v1390
    %1473 = vmatpush.bf16.msra.mxu0 %v1386
    %1474 = vmatpush.bf16.msra.mxu0 %v1382
    %1475 = vmatpush.bf16.msra.mxu0 %v1378
    %1476 = vmatpush.bf16.msra.mxu0 %v1374
    %1477 = vmatpush.bf16.msra.mxu0 %v1370
    %1478 = vmatmul.bf16.gmra.mxu0 %v866
    %v1479 = vpop.f32.mrf.mxu0
    %v1480 = vadd.f32 0.0, %v1479
    %v1481 = vpop.f32.mrf.mxu0
    %1482 = vdwg.mxu0
    %v1483 = vadd.f32 %v1197, %v1441
    %v1484 = vadd.f32 %v1210, %v1454
    %v1485 = vadd.f32 %v1223, %v1467
    %v1486 = vadd.f32 %v1236, %v1480
    %v1487 = vxor.u32 %v1483, 2147483648
    %v1488 = vmul.f32 %v1487, 1.442695
    %v1489 = vpow.pop %v1488
    %v1490 = vadd.f32 %v1489, 1.0
    %v1491 = vrcp.pop %v1490
    %v1492 = vmul.f32 %v1490, %v1491
    %v1493 = vsub.f32 1.0, %v1492
    %v1494 = vmul.f32 %v1491, %v1493
    %v1495 = vadd.f32 %v1491, %v1494
    %vm1496 = vweird.f32 %v1490
    %vm1497 = vweird.f32 %v1491
    %vm1498 = vmor %vm1496, %vm1497
    %v1499 = vsel %vm1498, %v1491, %v1495
    %v1500 = vand.u32 2147483647, %v1490
    %vm1501 = vcmp.eq.f32.partialorder %v1500, 8.507059e+37
    %v1502 = vand.u32 %v1490, 2147483648
    %v1503 = vor.u32 1.1754944e-38, %v1502
    %v1504 = vsel %vm1501, %v1503, %v1499
    %v1505 = vmul.f32 1.0, %v1504
    %v1506 = vxor.u32 %v1484, 2147483648
    %v1507 = vmul.f32 %v1506, 1.442695
    %v1508 = vpow.pop %v1507
    %v1509 = vadd.f32 %v1508, 1.0
    %v1510 = vrcp.pop %v1509
    %v1511 = vmul.f32 %v1509, %v1510
    %v1512 = vsub.f32 1.0, %v1511
    %v1513 = vmul.f32 %v1510, %v1512
    %v1514 = vadd.f32 %v1510, %v1513
    %vm1515 = vweird.f32 %v1509
    %vm1516 = vweird.f32 %v1510
    %vm1517 = vmor %vm1515, %vm1516
    %v1518 = vsel %vm1517, %v1510, %v1514
    %v1519 = vand.u32 2147483647, %v1509
    %vm1520 = vcmp.eq.f32.partialorder %v1519, 8.507059e+37
    %v1521 = vand.u32 %v1509, 2147483648
    %v1522 = vor.u32 1.1754944e-38, %v1521
    %v1523 = vsel %vm1520, %v1522, %v1518
    %v1524 = vmul.f32 1.0, %v1523
    %v1525 = vtanh.pop %v1485
    %v1526 = vxor.u32 %v1486, 2147483648
    %v1527 = vmul.f32 %v1526, 1.442695
    %v1528 = vpow.pop %v1527
    %v1529 = vadd.f32 %v1528, 1.0
    %v1530 = vrcp.pop %v1529
    %v1531 = vmul.f32 %v1529, %v1530
    %v1532 = vsub.f32 1.0, %v1531
    %v1533 = vmul.f32 %v1530, %v1532
    %v1534 = vadd.f32 %v1530, %v1533
    %vm1535 = vweird.f32 %v1529
    %vm1536 = vweird.f32 %v1530
    %vm1537 = vmor %vm1535, %vm1536
    %v1538 = vsel %vm1537, %v1530, %v1534
    %v1539 = vand.u32 2147483647, %v1529
    %vm1540 = vcmp.eq.f32.partialorder %v1539, 8.507059e+37
    %v1541 = vand.u32 %v1529, 2147483648
    %v1542 = vor.u32 1.1754944e-38, %v1541
    %v1543 = vsel %vm1540, %v1542, %v1538
    %v1544 = vmul.f32 1.0, %v1543
    %v1545 = vmul.f32 %v1524, %v863
    %v1546 = vmul.f32 %v1505, %v1525
    %v1547 = vadd.f32 %v1545, %v1546
    %v1548 = vtanh.pop %v1547
    %v1549 = vmul.f32 %v1544, %v1548
    %v1550 = vpack.c.bf16 %v1549, %v1549
    %v1551 = vld [vmem:[#allocation2 + $0x40] sm:$0xff]
    %v1552 = vld [vmem:[#allocation2 + $0x48] sm:$0xff]
    %v1553 = vld [vmem:[#allocation2 + $0x50] sm:$0xff]
    %v1554 = vld [vmem:[#allocation2 + $0x58] sm:$0xff]
    %v1555 = vadd.f32 %v1551, %v474
    %v1556 = vadd.f32 %v1552, %v475
    %v1557 = vadd.f32 %v1553, %v476
    %v1558 = vadd.f32 %v1554, %v477
    %1559 = vmatpush.bf16.msra.mxu0 %v1031
    %1560 = vmatpush.bf16.msra.mxu0 %v1027
    %1561 = vmatpush.bf16.msra.mxu0 %v1023
    %1562 = vmatpush.bf16.msra.mxu0 %v1019
    %1563 = vmatpush.bf16.msra.mxu0 %v1015
    %1564 = vmatpush.bf16.msra.mxu0 %v1011
    %1565 = vmatpush.bf16.msra.mxu0 %v1007
    %1566 = vmatpush.bf16.msra.mxu0 %v1003
    %1567 = vmatmul.bf16.gmra.mxu0 %v1186
    %v1568 = vpop.f32.mrf.mxu0
    %v1569 = vadd.f32 0.0, %v1568
    %v1570 = vpop.f32.mrf.mxu0
    %1571 = vdwg.mxu0
    %1572 = vmatpush.bf16.msra.mxu0 %v1032
    %1573 = vmatpush.bf16.msra.mxu0 %v1028
    %1574 = vmatpush.bf16.msra.mxu0 %v1024
    %1575 = vmatpush.bf16.msra.mxu0 %v1020
    %1576 = vmatpush.bf16.msra.mxu0 %v1016
    %1577 = vmatpush.bf16.msra.mxu0 %v1012
    %1578 = vmatpush.bf16.msra.mxu0 %v1008
    %1579 = vmatpush.bf16.msra.mxu0 %v1004
    %1580 = vmatmul.bf16.gmra.mxu0 %v1186
    %v1581 = vpop.f32.mrf.mxu0
    %v1582 = vadd.f32 0.0, %v1581
    %v1583 = vpop.f32.mrf.mxu0
    %1584 = vdwg.mxu0
    %1585 = vmatpush.bf16.msra.mxu0 %v1033
    %1586 = vmatpush.bf16.msra.mxu0 %v1029
    %1587 = vmatpush.bf16.msra.mxu0 %v1025
    %1588 = vmatpush.bf16.msra.mxu0 %v1021
    %1589 = vmatpush.bf16.msra.mxu0 %v1017
    %1590 = vmatpush.bf16.msra.mxu0 %v1013
    %1591 = vmatpush.bf16.msra.mxu0 %v1009
    %1592 = vmatpush.bf16.msra.mxu0 %v1005
    %1593 = vmatmul.bf16.gmra.mxu0 %v1186
    %v1594 = vpop.f32.mrf.mxu0
    %v1595 = vadd.f32 0.0, %v1594
    %v1596 = vpop.f32.mrf.mxu0
    %1597 = vdwg.mxu0
    %1598 = vmatpush.bf16.msra.mxu0 %v1034
    %1599 = vmatpush.bf16.msra.mxu0 %v1030
    %1600 = vmatpush.bf16.msra.mxu0 %v1026
    %1601 = vmatpush.bf16.msra.mxu0 %v1022
    %1602 = vmatpush.bf16.msra.mxu0 %v1018
    %1603 = vmatpush.bf16.msra.mxu0 %v1014
    %1604 = vmatpush.bf16.msra.mxu0 %v1010
    %1605 = vmatpush.bf16.msra.mxu0 %v1006
    %1606 = vmatmul.bf16.gmra.mxu0 %v1186
    %v1607 = vpop.f32.mrf.mxu0
    %v1608 = vadd.f32 0.0, %v1607
    %v1609 = vpop.f32.mrf.mxu0
    %1610 = vdwg.mxu0
    %v1611 = vadd.f32 %v1555, %v1569
    %v1612 = vadd.f32 %v1556, %v1582
    %v1613 = vadd.f32 %v1557, %v1595
    %v1614 = vadd.f32 %v1558, %v1608
    %v1615 = vxor.u32 %v1611, 2147483648
    %v1616 = vmul.f32 %v1615, 1.442695
    %v1617 = vpow.pop %v1616
    %v1618 = vadd.f32 %v1617, 1.0
    %v1619 = vrcp.pop %v1618
    %v1620 = vmul.f32 %v1618, %v1619
    %v1621 = vsub.f32 1.0, %v1620
    %v1622 = vmul.f32 %v1619, %v1621
    %v1623 = vadd.f32 %v1619, %v1622
    %vm1624 = vweird.f32 %v1618
    %vm1625 = vweird.f32 %v1619
    %vm1626 = vmor %vm1624, %vm1625
    %v1627 = vsel %vm1626, %v1619, %v1623
    %v1628 = vand.u32 2147483647, %v1618
    %vm1629 = vcmp.eq.f32.partialorder %v1628, 8.507059e+37
    %v1630 = vand.u32 %v1618, 2147483648
    %v1631 = vor.u32 1.1754944e-38, %v1630
    %v1632 = vsel %vm1629, %v1631, %v1627
    %v1633 = vmul.f32 1.0, %v1632
    %v1634 = vxor.u32 %v1612, 2147483648
    %v1635 = vmul.f32 %v1634, 1.442695
    %v1636 = vpow.pop %v1635
    %v1637 = vadd.f32 %v1636, 1.0
    %v1638 = vrcp.pop %v1637
    %v1639 = vmul.f32 %v1637, %v1638
    %v1640 = vsub.f32 1.0, %v1639
    %v1641 = vmul.f32 %v1638, %v1640
    %v1642 = vadd.f32 %v1638, %v1641
    %vm1643 = vweird.f32 %v1637
    %vm1644 = vweird.f32 %v1638
    %vm1645 = vmor %vm1643, %vm1644
    %v1646 = vsel %vm1645, %v1638, %v1642
    %v1647 = vand.u32 2147483647, %v1637
    %vm1648 = vcmp.eq.f32.partialorder %v1647, 8.507059e+37
    %v1649 = vand.u32 %v1637, 2147483648
    %v1650 = vor.u32 1.1754944e-38, %v1649
    %v1651 = vsel %vm1648, %v1650, %v1646
    %v1652 = vmul.f32 1.0, %v1651
    %v1653 = vtanh.pop %v1613
    %v1654 = vxor.u32 %v1614, 2147483648
    %v1655 = vmul.f32 %v1654, 1.442695
    %v1656 = vpow.pop %v1655
    %v1657 = vadd.f32 %v1656, 1.0
    %v1658 = vrcp.pop %v1657
    %v1659 = vmul.f32 %v1657, %v1658
    %v1660 = vsub.f32 1.0, %v1659
    %v1661 = vmul.f32 %v1658, %v1660
    %v1662 = vadd.f32 %v1658, %v1661
    %vm1663 = vweird.f32 %v1657
    %vm1664 = vweird.f32 %v1658
    %vm1665 = vmor %vm1663, %vm1664
    %v1666 = vsel %vm1665, %v1658, %v1662
    %v1667 = vand.u32 2147483647, %v1657
    %vm1668 = vcmp.eq.f32.partialorder %v1667, 8.507059e+37
    %v1669 = vand.u32 %v1657, 2147483648
    %v1670 = vor.u32 1.1754944e-38, %v1669
    %v1671 = vsel %vm1668, %v1670, %v1666
    %v1672 = vmul.f32 1.0, %v1671
    %v1673 = vmul.f32 %v1652, %v1183
    %v1674 = vmul.f32 %v1633, %v1653
    %v1675 = vadd.f32 %v1673, %v1674
    %v1676 = vtanh.pop %v1675
    %v1677 = vmul.f32 %v1672, %v1676
    %v1678 = vpack.c.bf16 %v1677, %v1677
    %1679 = vmatpush.bf16.msra.mxu0 %v715
    %1680 = vmatpush.bf16.msra.mxu0 %v711
    %1681 = vmatpush.bf16.msra.mxu0 %v707
    %1682 = vmatpush.bf16.msra.mxu0 %v703
    %1683 = vmatpush.bf16.msra.mxu0 %v699
    %1684 = vmatpush.bf16.msra.mxu0 %v695
    %1685 = vmatpush.bf16.msra.mxu0 %v691
    %1686 = vmatpush.bf16.msra.mxu0 %v687
    %1687 = vmatmul.bf16.gmra.mxu0 %v1678
    %v1688 = vpop.f32.mrf.mxu0
    %v1689 = vadd.f32 %v583, %v1688
    %v1690 = vpop.f32.mrf.mxu0
    %1691 = vdwg.mxu0
    %1692 = vmatpush.bf16.msra.mxu0 %v716
    %1693 = vmatpush.bf16.msra.mxu0 %v712
    %1694 = vmatpush.bf16.msra.mxu0 %v708
    %1695 = vmatpush.bf16.msra.mxu0 %v704
    %1696 = vmatpush.bf16.msra.mxu0 %v700
    %1697 = vmatpush.bf16.msra.mxu0 %v696
    %1698 = vmatpush.bf16.msra.mxu0 %v692
    %1699 = vmatpush.bf16.msra.mxu0 %v688
    %1700 = vmatmul.bf16.gmra.mxu0 %v1678
    %v1701 = vpop.f32.mrf.mxu0
    %v1702 = vadd.f32 %v584, %v1701
    %v1703 = vpop.f32.mrf.mxu0
    %1704 = vdwg.mxu0
    %1705 = vmatpush.bf16.msra.mxu0 %v717
    %1706 = vmatpush.bf16.msra.mxu0 %v713
    %1707 = vmatpush.bf16.msra.mxu0 %v709
    %1708 = vmatpush.bf16.msra.mxu0 %v705
    %1709 = vmatpush.bf16.msra.mxu0 %v701
    %1710 = vmatpush.bf16.msra.mxu0 %v697
    %1711 = vmatpush.bf16.msra.mxu0 %v693
    %1712 = vmatpush.bf16.msra.mxu0 %v689
    %1713 = vmatmul.bf16.gmra.mxu0 %v1678
    %v1714 = vpop.f32.mrf.mxu0
    %v1715 = vadd.f32 %v585, %v1714
    %v1716 = vpop.f32.mrf.mxu0
    %1717 = vdwg.mxu0
    %1718 = vmatpush.bf16.msra.mxu0 %v718
    %1719 = vmatpush.bf16.msra.mxu0 %v714
    %1720 = vmatpush.bf16.msra.mxu0 %v710
    %1721 = vmatpush.bf16.msra.mxu0 %v706
    %1722 = vmatpush.bf16.msra.mxu0 %v702
    %1723 = vmatpush.bf16.msra.mxu0 %v698
    %1724 = vmatpush.bf16.msra.mxu0 %v694
    %1725 = vmatpush.bf16.msra.mxu0 %v690
    %1726 = vmatmul.bf16.gmra.mxu0 %v1678
    %v1727 = vpop.f32.mrf.mxu0
    %v1728 = vadd.f32 %v586, %v1727
    %v1729 = vpop.f32.mrf.mxu0
    %1730 = vdwg.mxu0
    %1731 = vmatpush.bf16.msra.mxu0 %v1395
    %1732 = vmatpush.bf16.msra.mxu0 %v1391
    %1733 = vmatpush.bf16.msra.mxu0 %v1387
    %1734 = vmatpush.bf16.msra.mxu0 %v1383
    %1735 = vmatpush.bf16.msra.mxu0 %v1379
    %1736 = vmatpush.bf16.msra.mxu0 %v1375
    %1737 = vmatpush.bf16.msra.mxu0 %v1371
    %1738 = vmatpush.bf16.msra.mxu0 %v1367
    %1739 = vmatmul.bf16.gmra.mxu0 %v1550
    %v1740 = vpop.f32.mrf.mxu0
    %v1741 = vadd.f32 0.0, %v1740
    %v1742 = vpop.f32.mrf.mxu0
    %1743 = vdwg.mxu0
    %1744 = vmatpush.bf16.msra.mxu0 %v1396
    %1745 = vmatpush.bf16.msra.mxu0 %v1392
    %1746 = vmatpush.bf16.msra.mxu0 %v1388
    %1747 = vmatpush.bf16.msra.mxu0 %v1384
    %1748 = vmatpush.bf16.msra.mxu0 %v1380
    %1749 = vmatpush.bf16.msra.mxu0 %v1376
    %1750 = vmatpush.bf16.msra.mxu0 %v1372
    %1751 = vmatpush.bf16.msra.mxu0 %v1368
    %1752 = vmatmul.bf16.gmra.mxu0 %v1550
    %v1753 = vpop.f32.mrf.mxu0
    %v1754 = vadd.f32 0.0, %v1753
    %v1755 = vpop.f32.mrf.mxu0
    %1756 = vdwg.mxu0
    %1757 = vmatpush.bf16.msra.mxu0 %v1397
    %1758 = vmatpush.bf16.msra.mxu0 %v1393
    %1759 = vmatpush.bf16.msra.mxu0 %v1389
    %1760 = vmatpush.bf16.msra.mxu0 %v1385
    %1761 = vmatpush.bf16.msra.mxu0 %v1381
    %1762 = vmatpush.bf16.msra.mxu0 %v1377
    %1763 = vmatpush.bf16.msra.mxu0 %v1373
    %1764 = vmatpush.bf16.msra.mxu0 %v1369
    %1765 = vmatmul.bf16.gmra.mxu0 %v1550
    %v1766 = vpop.f32.mrf.mxu0
    %v1767 = vadd.f32 0.0, %v1766
    %v1768 = vpop.f32.mrf.mxu0
    %1769 = vdwg.mxu0
    %1770 = vmatpush.bf16.msra.mxu0 %v1398
    %1771 = vmatpush.bf16.msra.mxu0 %v1394
    %1772 = vmatpush.bf16.msra.mxu0 %v1390
    %1773 = vmatpush.bf16.msra.mxu0 %v1386
    %1774 = vmatpush.bf16.msra.mxu0 %v1382
    %1775 = vmatpush.bf16.msra.mxu0 %v1378
    %1776 = vmatpush.bf16.msra.mxu0 %v1374
    %1777 = vmatpush.bf16.msra.mxu0 %v1370
    %1778 = vmatmul.bf16.gmra.mxu0 %v1550
    %v1779 = vpop.f32.mrf.mxu0
    %v1780 = vadd.f32 0.0, %v1779
    %v1781 = vpop.f32.mrf.mxu0
    %1782 = vdwg.mxu0
    %v1783 = vadd.f32 %v1689, %v1741
    %v1784 = vadd.f32 %v1702, %v1754
    %v1785 = vadd.f32 %v1715, %v1767
    %v1786 = vadd.f32 %v1728, %v1780
    %v1787 = vxor.u32 %v1783, 2147483648
    %v1788 = vmul.f32 %v1787, 1.442695
    %v1789 = vpow.pop %v1788
    %v1790 = vadd.f32 %v1789, 1.0
    %v1791 = vrcp.pop %v1790
    %v1792 = vmul.f32 %v1790, %v1791
    %v1793 = vsub.f32 1.0, %v1792
    %v1794 = vmul.f32 %v1791, %v1793
    %v1795 = vadd.f32 %v1791, %v1794
    %vm1796 = vweird.f32 %v1790
    %vm1797 = vweird.f32 %v1791
    %vm1798 = vmor %vm1796, %vm1797
    %v1799 = vsel %vm1798, %v1791, %v1795
    %v1800 = vand.u32 2147483647, %v1790
    %vm1801 = vcmp.eq.f32.partialorder %v1800, 8.507059e+37
    %v1802 = vand.u32 %v1790, 2147483648
    %v1803 = vor.u32 1.1754944e-38, %v1802
    %v1804 = vsel %vm1801, %v1803, %v1799
    %v1805 = vmul.f32 1.0, %v1804
    %v1806 = vxor.u32 %v1784, 2147483648
    %v1807 = vmul.f32 %v1806, 1.442695
    %v1808 = vpow.pop %v1807
    %v1809 = vadd.f32 %v1808, 1.0
    %v1810 = vrcp.pop %v1809
    %v1811 = vmul.f32 %v1809, %v1810
    %v1812 = vsub.f32 1.0, %v1811
    %v1813 = vmul.f32 %v1810, %v1812
    %v1814 = vadd.f32 %v1810, %v1813
    %vm1815 = vweird.f32 %v1809
    %vm1816 = vweird.f32 %v1810
    %vm1817 = vmor %vm1815, %vm1816
    %v1818 = vsel %vm1817, %v1810, %v1814
    %v1819 = vand.u32 2147483647, %v1809
    %vm1820 = vcmp.eq.f32.partialorder %v1819, 8.507059e+37
    %v1821 = vand.u32 %v1809, 2147483648
    %v1822 = vor.u32 1.1754944e-38, %v1821
    %v1823 = vsel %vm1820, %v1822, %v1818
    %v1824 = vmul.f32 1.0, %v1823
    %v1825 = vtanh.pop %v1785
    %v1826 = vxor.u32 %v1786, 2147483648
    %v1827 = vmul.f32 %v1826, 1.442695
    %v1828 = vpow.pop %v1827
    %v1829 = vadd.f32 %v1828, 1.0
    %v1830 = vrcp.pop %v1829
    %v1831 = vmul.f32 %v1829, %v1830
    %v1832 = vsub.f32 1.0, %v1831
    %v1833 = vmul.f32 %v1830, %v1832
    %v1834 = vadd.f32 %v1830, %v1833
    %vm1835 = vweird.f32 %v1829
    %vm1836 = vweird.f32 %v1830
    %vm1837 = vmor %vm1835, %vm1836
    %v1838 = vsel %vm1837, %v1830, %v1834
    %v1839 = vand.u32 2147483647, %v1829
    %vm1840 = vcmp.eq.f32.partialorder %v1839, 8.507059e+37
    %v1841 = vand.u32 %v1829, 2147483648
    %v1842 = vor.u32 1.1754944e-38, %v1841
    %v1843 = vsel %vm1840, %v1842, %v1838
    %v1844 = vmul.f32 1.0, %v1843
    %v1845 = vmul.f32 %v1824, %v1547
    %v1846 = vmul.f32 %v1805, %v1825
    %v1847 = vadd.f32 %v1845, %v1846
    %v1848 = vtanh.pop %v1847
    %v1849 = vmul.f32 %v1844, %v1848
    %v1850 = vpack.c.bf16 %v1849, %v1849
    %v1851 = vld [vmem:[#allocation2 + $0x60] sm:$0xff]
    %v1852 = vld [vmem:[#allocation2 + $0x68] sm:$0xff]
    %v1853 = vld [vmem:[#allocation2 + $0x70] sm:$0xff]
    %v1854 = vld [vmem:[#allocation2 + $0x78] sm:$0xff]
    %v1855 = vadd.f32 %v1851, %v474
    %v1856 = vadd.f32 %v1852, %v475
    %v1857 = vadd.f32 %v1853, %v476
    %v1858 = vadd.f32 %v1854, %v477
    %1859 = vmatpush.bf16.msra.mxu0 %v1031
    %1860 = vmatpush.bf16.msra.mxu0 %v1027
    %1861 = vmatpush.bf16.msra.mxu0 %v1023
    %1862 = vmatpush.bf16.msra.mxu0 %v1019
    %1863 = vmatpush.bf16.msra.mxu0 %v1015
    %1864 = vmatpush.bf16.msra.mxu0 %v1011
    %1865 = vmatpush.bf16.msra.mxu0 %v1007
    %1866 = vmatpush.bf16.msra.mxu0 %v1003
    %1867 = vmatmul.bf16.gmra.mxu0 %v1678
    %v1868 = vpop.f32.mrf.mxu0
    %v1869 = vadd.f32 0.0, %v1868
    %v1870 = vpop.f32.mrf.mxu0
    %1871 = vdwg.mxu0
    %1872 = vmatpush.bf16.msra.mxu0 %v1032
    %1873 = vmatpush.bf16.msra.mxu0 %v1028
    %1874 = vmatpush.bf16.msra.mxu0 %v1024
    %1875 = vmatpush.bf16.msra.mxu0 %v1020
    %1876 = vmatpush.bf16.msra.mxu0 %v1016
    %1877 = vmatpush.bf16.msra.mxu0 %v1012
    %1878 = vmatpush.bf16.msra.mxu0 %v1008
    %1879 = vmatpush.bf16.msra.mxu0 %v1004
    %1880 = vmatmul.bf16.gmra.mxu0 %v1678
    %v1881 = vpop.f32.mrf.mxu0
    %v1882 = vadd.f32 0.0, %v1881
    %v1883 = vpop.f32.mrf.mxu0
    %1884 = vdwg.mxu0
    %1885 = vmatpush.bf16.msra.mxu0 %v1033
    %1886 = vmatpush.bf16.msra.mxu0 %v1029
    %1887 = vmatpush.bf16.msra.mxu0 %v1025
    %1888 = vmatpush.bf16.msra.mxu0 %v1021
    %1889 = vmatpush.bf16.msra.mxu0 %v1017
    %1890 = vmatpush.bf16.msra.mxu0 %v1013
    %1891 = vmatpush.bf16.msra.mxu0 %v1009
    %1892 = vmatpush.bf16.msra.mxu0 %v1005
    %1893 = vmatmul.bf16.gmra.mxu0 %v1678
    %v1894 = vpop.f32.mrf.mxu0
    %v1895 = vadd.f32 0.0, %v1894
    %v1896 = vpop.f32.mrf.mxu0
    %1897 = vdwg.mxu0
    %1898 = vmatpush.bf16.msra.mxu0 %v1034
    %1899 = vmatpush.bf16.msra.mxu0 %v1030
    %1900 = vmatpush.bf16.msra.mxu0 %v1026
    %1901 = vmatpush.bf16.msra.mxu0 %v1022
    %1902 = vmatpush.bf16.msra.mxu0 %v1018
    %1903 = vmatpush.bf16.msra.mxu0 %v1014
    %1904 = vmatpush.bf16.msra.mxu0 %v1010
    %1905 = vmatpush.bf16.msra.mxu0 %v1006
    %1906 = vmatmul.bf16.gmra.mxu0 %v1678
    %v1907 = vpop.f32.mrf.mxu0
    %v1908 = vadd.f32 0.0, %v1907
    %v1909 = vpop.f32.mrf.mxu0
    %1910 = vdwg.mxu0
    %v1911 = vadd.f32 %v1855, %v1869
    %v1912 = vadd.f32 %v1856, %v1882
    %v1913 = vadd.f32 %v1857, %v1895
    %v1914 = vadd.f32 %v1858, %v1908
    %v1915 = vxor.u32 %v1911, 2147483648
    %v1916 = vmul.f32 %v1915, 1.442695
    %v1917 = vpow.pop %v1916
    %v1918 = vadd.f32 %v1917, 1.0
    %v1919 = vrcp.pop %v1918
    %v1920 = vmul.f32 %v1918, %v1919
    %v1921 = vsub.f32 1.0, %v1920
    %v1922 = vmul.f32 %v1919, %v1921
    %v1923 = vadd.f32 %v1919, %v1922
    %vm1924 = vweird.f32 %v1918
    %vm1925 = vweird.f32 %v1919
    %vm1926 = vmor %vm1924, %vm1925
    %v1927 = vsel %vm1926, %v1919, %v1923
    %v1928 = vand.u32 2147483647, %v1918
    %vm1929 = vcmp.eq.f32.partialorder %v1928, 8.507059e+37
    %v1930 = vand.u32 %v1918, 2147483648
    %v1931 = vor.u32 1.1754944e-38, %v1930
    %v1932 = vsel %vm1929, %v1931, %v1927
    %v1933 = vmul.f32 1.0, %v1932
    %v1934 = vxor.u32 %v1912, 2147483648
    %v1935 = vmul.f32 %v1934, 1.442695
    %v1936 = vpow.pop %v1935
    %v1937 = vadd.f32 %v1936, 1.0
    %v1938 = vrcp.pop %v1937
    %v1939 = vmul.f32 %v1937, %v1938
    %v1940 = vsub.f32 1.0, %v1939
    %v1941 = vmul.f32 %v1938, %v1940
    %v1942 = vadd.f32 %v1938, %v1941
    %vm1943 = vweird.f32 %v1937
    %vm1944 = vweird.f32 %v1938
    %vm1945 = vmor %vm1943, %vm1944
    %v1946 = vsel %vm1945, %v1938, %v1942
    %v1947 = vand.u32 2147483647, %v1937
    %vm1948 = vcmp.eq.f32.partialorder %v1947, 8.507059e+37
    %v1949 = vand.u32 %v1937, 2147483648
    %v1950 = vor.u32 1.1754944e-38, %v1949
    %v1951 = vsel %vm1948, %v1950, %v1946
    %v1952 = vmul.f32 1.0, %v1951
    %v1953 = vtanh.pop %v1913
    %v1954 = vxor.u32 %v1914, 2147483648
    %v1955 = vmul.f32 %v1954, 1.442695
    %v1956 = vpow.pop %v1955
    %v1957 = vadd.f32 %v1956, 1.0
    %v1958 = vrcp.pop %v1957
    %v1959 = vmul.f32 %v1957, %v1958
    %v1960 = vsub.f32 1.0, %v1959
    %v1961 = vmul.f32 %v1958, %v1960
    %v1962 = vadd.f32 %v1958, %v1961
    %vm1963 = vweird.f32 %v1957
    %vm1964 = vweird.f32 %v1958
    %vm1965 = vmor %vm1963, %vm1964
    %v1966 = vsel %vm1965, %v1958, %v1962
    %v1967 = vand.u32 2147483647, %v1957
    %vm1968 = vcmp.eq.f32.partialorder %v1967, 8.507059e+37
    %v1969 = vand.u32 %v1957, 2147483648
    %v1970 = vor.u32 1.1754944e-38, %v1969
    %v1971 = vsel %vm1968, %v1970, %v1966
    %v1972 = vmul.f32 1.0, %v1971
    %v1973 = vmul.f32 %v1952, %v1675
    %v1974 = vmul.f32 %v1933, %v1953
    %v1975 = vadd.f32 %v1973, %v1974
    %v1976 = vtanh.pop %v1975
    %v1977 = vmul.f32 %v1972, %v1976
    %v1978 = vpack.c.bf16 %v1977, %v1977
    %1979 = vmatpush.bf16.msra.mxu0 %v715
    %1980 = vmatpush.bf16.msra.mxu0 %v711
    %1981 = vmatpush.bf16.msra.mxu0 %v707
    %1982 = vmatpush.bf16.msra.mxu0 %v703
    %1983 = vmatpush.bf16.msra.mxu0 %v699
    %1984 = vmatpush.bf16.msra.mxu0 %v695
    %1985 = vmatpush.bf16.msra.mxu0 %v691
    %1986 = vmatpush.bf16.msra.mxu0 %v687
    %1987 = vmatmul.bf16.gmra.mxu0 %v1978
    %v1988 = vpop.f32.mrf.mxu0
    %v1989 = vadd.f32 %v583, %v1988
    %v1990 = vpop.f32.mrf.mxu0
    %1991 = vdwg.mxu0
    %1992 = vmatpush.bf16.msra.mxu0 %v716
    %1993 = vmatpush.bf16.msra.mxu0 %v712
    %1994 = vmatpush.bf16.msra.mxu0 %v708
    %1995 = vmatpush.bf16.msra.mxu0 %v704
    %1996 = vmatpush.bf16.msra.mxu0 %v700
    %1997 = vmatpush.bf16.msra.mxu0 %v696
    %1998 = vmatpush.bf16.msra.mxu0 %v692
    %1999 = vmatpush.bf16.msra.mxu0 %v688
    %2000 = vmatmul.bf16.gmra.mxu0 %v1978
    %v2001 = vpop.f32.mrf.mxu0
    %v2002 = vadd.f32 %v584, %v2001
    %v2003 = vpop.f32.mrf.mxu0
    %2004 = vdwg.mxu0
    %2005 = vmatpush.bf16.msra.mxu0 %v717
    %2006 = vmatpush.bf16.msra.mxu0 %v713
    %2007 = vmatpush.bf16.msra.mxu0 %v709
    %2008 = vmatpush.bf16.msra.mxu0 %v705
    %2009 = vmatpush.bf16.msra.mxu0 %v701
    %2010 = vmatpush.bf16.msra.mxu0 %v697
    %2011 = vmatpush.bf16.msra.mxu0 %v693
    %2012 = vmatpush.bf16.msra.mxu0 %v689
    %2013 = vmatmul.bf16.gmra.mxu0 %v1978
    %v2014 = vpop.f32.mrf.mxu0
    %v2015 = vadd.f32 %v585, %v2014
    %v2016 = vpop.f32.mrf.mxu0
    %2017 = vdwg.mxu0
    %2018 = vmatpush.bf16.msra.mxu0 %v718
    %2019 = vmatpush.bf16.msra.mxu0 %v714
    %2020 = vmatpush.bf16.msra.mxu0 %v710
    %2021 = vmatpush.bf16.msra.mxu0 %v706
    %2022 = vmatpush.bf16.msra.mxu0 %v702
    %2023 = vmatpush.bf16.msra.mxu0 %v698
    %2024 = vmatpush.bf16.msra.mxu0 %v694
    %2025 = vmatpush.bf16.msra.mxu0 %v690
    %2026 = vmatmul.bf16.gmra.mxu0 %v1978
    %v2027 = vpop.f32.mrf.mxu0
    %v2028 = vadd.f32 %v586, %v2027
    %v2029 = vpop.f32.mrf.mxu0
    %2030 = vdwg.mxu0
    %2031 = vmatpush.bf16.msra.mxu0 %v1395
    %2032 = vmatpush.bf16.msra.mxu0 %v1391
    %2033 = vmatpush.bf16.msra.mxu0 %v1387
    %2034 = vmatpush.bf16.msra.mxu0 %v1383
    %2035 = vmatpush.bf16.msra.mxu0 %v1379
    %2036 = vmatpush.bf16.msra.mxu0 %v1375
    %2037 = vmatpush.bf16.msra.mxu0 %v1371
    %2038 = vmatpush.bf16.msra.mxu0 %v1367
    %2039 = vmatmul.bf16.gmra.mxu0 %v1850
    %v2040 = vpop.f32.mrf.mxu0
    %v2041 = vadd.f32 0.0, %v2040
    %v2042 = vpop.f32.mrf.mxu0
    %2043 = vdwg.mxu0
    %2044 = vmatpush.bf16.msra.mxu0 %v1396
    %2045 = vmatpush.bf16.msra.mxu0 %v1392
    %2046 = vmatpush.bf16.msra.mxu0 %v1388
    %2047 = vmatpush.bf16.msra.mxu0 %v1384
    %2048 = vmatpush.bf16.msra.mxu0 %v1380
    %2049 = vmatpush.bf16.msra.mxu0 %v1376
    %2050 = vmatpush.bf16.msra.mxu0 %v1372
    %2051 = vmatpush.bf16.msra.mxu0 %v1368
    %2052 = vmatmul.bf16.gmra.mxu0 %v1850
    %v2053 = vpop.f32.mrf.mxu0
    %v2054 = vadd.f32 0.0, %v2053
    %v2055 = vpop.f32.mrf.mxu0
    %2056 = vdwg.mxu0
    %2057 = vmatpush.bf16.msra.mxu0 %v1397
    %2058 = vmatpush.bf16.msra.mxu0 %v1393
    %2059 = vmatpush.bf16.msra.mxu0 %v1389
    %2060 = vmatpush.bf16.msra.mxu0 %v1385
    %2061 = vmatpush.bf16.msra.mxu0 %v1381
    %2062 = vmatpush.bf16.msra.mxu0 %v1377
    %2063 = vmatpush.bf16.msra.mxu0 %v1373
    %2064 = vmatpush.bf16.msra.mxu0 %v1369
    %2065 = vmatmul.bf16.gmra.mxu0 %v1850
    %v2066 = vpop.f32.mrf.mxu0
    %v2067 = vadd.f32 0.0, %v2066
    %v2068 = vpop.f32.mrf.mxu0
    %2069 = vdwg.mxu0
    %2070 = vmatpush.bf16.msra.mxu0 %v1398
    %2071 = vmatpush.bf16.msra.mxu0 %v1394
    %2072 = vmatpush.bf16.msra.mxu0 %v1390
    %2073 = vmatpush.bf16.msra.mxu0 %v1386
    %2074 = vmatpush.bf16.msra.mxu0 %v1382
    %2075 = vmatpush.bf16.msra.mxu0 %v1378
    %2076 = vmatpush.bf16.msra.mxu0 %v1374
    %2077 = vmatpush.bf16.msra.mxu0 %v1370
    %2078 = vmatmul.bf16.gmra.mxu0 %v1850
    %v2079 = vpop.f32.mrf.mxu0
    %v2080 = vadd.f32 0.0, %v2079
    %v2081 = vpop.f32.mrf.mxu0
    %2082 = vdwg.mxu0
    %v2083 = vadd.f32 %v1989, %v2041
    %v2084 = vadd.f32 %v2002, %v2054
    %v2085 = vadd.f32 %v2015, %v2067
    %v2086 = vadd.f32 %v2028, %v2080
    %v2087 = vxor.u32 %v2083, 2147483648
    %v2088 = vmul.f32 %v2087, 1.442695
    %v2089 = vpow.pop %v2088
    %v2090 = vadd.f32 %v2089, 1.0
    %v2091 = vrcp.pop %v2090
    %v2092 = vmul.f32 %v2090, %v2091
    %v2093 = vsub.f32 1.0, %v2092
    %v2094 = vmul.f32 %v2091, %v2093
    %v2095 = vadd.f32 %v2091, %v2094
    %vm2096 = vweird.f32 %v2090
    %vm2097 = vweird.f32 %v2091
    %vm2098 = vmor %vm2096, %vm2097
    %v2099 = vsel %vm2098, %v2091, %v2095
    %v2100 = vand.u32 2147483647, %v2090
    %vm2101 = vcmp.eq.f32.partialorder %v2100, 8.507059e+37
    %v2102 = vand.u32 %v2090, 2147483648
    %v2103 = vor.u32 1.1754944e-38, %v2102
    %v2104 = vsel %vm2101, %v2103, %v2099
    %v2105 = vmul.f32 1.0, %v2104
    %v2106 = vxor.u32 %v2084, 2147483648
    %v2107 = vmul.f32 %v2106, 1.442695
    %v2108 = vpow.pop %v2107
    %v2109 = vadd.f32 %v2108, 1.0
    %v2110 = vrcp.pop %v2109
    %v2111 = vmul.f32 %v2109, %v2110
    %v2112 = vsub.f32 1.0, %v2111
    %v2113 = vmul.f32 %v2110, %v2112
    %v2114 = vadd.f32 %v2110, %v2113
    %vm2115 = vweird.f32 %v2109
    %vm2116 = vweird.f32 %v2110
    %vm2117 = vmor %vm2115, %vm2116
    %v2118 = vsel %vm2117, %v2110, %v2114
    %v2119 = vand.u32 2147483647, %v2109
    %vm2120 = vcmp.eq.f32.partialorder %v2119, 8.507059e+37
    %v2121 = vand.u32 %v2109, 2147483648
    %v2122 = vor.u32 1.1754944e-38, %v2121
    %v2123 = vsel %vm2120, %v2122, %v2118
    %v2124 = vmul.f32 1.0, %v2123
    %v2125 = vtanh.pop %v2085
    %v2126 = vxor.u32 %v2086, 2147483648
    %v2127 = vmul.f32 %v2126, 1.442695
    %v2128 = vpow.pop %v2127
    %v2129 = vadd.f32 %v2128, 1.0
    %v2130 = vrcp.pop %v2129
    %v2131 = vmul.f32 %v2129, %v2130
    %v2132 = vsub.f32 1.0, %v2131
    %v2133 = vmul.f32 %v2130, %v2132
    %v2134 = vadd.f32 %v2130, %v2133
    %vm2135 = vweird.f32 %v2129
    %vm2136 = vweird.f32 %v2130
    %vm2137 = vmor %vm2135, %vm2136
    %v2138 = vsel %vm2137, %v2130, %v2134
    %v2139 = vand.u32 2147483647, %v2129
    %vm2140 = vcmp.eq.f32.partialorder %v2139, 8.507059e+37
    %v2141 = vand.u32 %v2129, 2147483648
    %v2142 = vor.u32 1.1754944e-38, %v2141
    %v2143 = vsel %vm2140, %v2142, %v2138
    %v2144 = vmul.f32 1.0, %v2143
    %v2145 = vmul.f32 %v2124, %v1847
    %v2146 = vmul.f32 %v2105, %v2125
    %v2147 = vadd.f32 %v2145, %v2146
    %v2148 = vtanh.pop %v2147
    %v2149 = vmul.f32 %v2144, %v2148
    %v2150 = vpack.c.bf16 %v2149, %v2149
    %v2151 = vld [vmem:[#allocation2 + $0x80] sm:$0xff]
    %v2152 = vld [vmem:[#allocation2 + $0x88] sm:$0xff]
    %v2153 = vld [vmem:[#allocation2 + $0x90] sm:$0xff]
    %v2154 = vld [vmem:[#allocation2 + $0x98] sm:$0xff]
    %v2155 = vadd.f32 %v2151, %v474
    %v2156 = vadd.f32 %v2152, %v475
    %v2157 = vadd.f32 %v2153, %v476
    %v2158 = vadd.f32 %v2154, %v477
    %2159 = vmatpush.bf16.msra.mxu0 %v1031
    %2160 = vmatpush.bf16.msra.mxu0 %v1027
    %2161 = vmatpush.bf16.msra.mxu0 %v1023
    %2162 = vmatpush.bf16.msra.mxu0 %v1019
    %2163 = vmatpush.bf16.msra.mxu0 %v1015
    %2164 = vmatpush.bf16.msra.mxu0 %v1011
    %2165 = vmatpush.bf16.msra.mxu0 %v1007
    %2166 = vmatpush.bf16.msra.mxu0 %v1003
    %2167 = vmatmul.bf16.gmra.mxu0 %v1978
    %v2168 = vpop.f32.mrf.mxu0
    %v2169 = vadd.f32 0.0, %v2168
    %v2170 = vpop.f32.mrf.mxu0
    %2171 = vdwg.mxu0
    %2172 = vmatpush.bf16.msra.mxu0 %v1032
    %2173 = vmatpush.bf16.msra.mxu0 %v1028
    %2174 = vmatpush.bf16.msra.mxu0 %v1024
    %2175 = vmatpush.bf16.msra.mxu0 %v1020
    %2176 = vmatpush.bf16.msra.mxu0 %v1016
    %2177 = vmatpush.bf16.msra.mxu0 %v1012
    %2178 = vmatpush.bf16.msra.mxu0 %v1008
    %2179 = vmatpush.bf16.msra.mxu0 %v1004
    %2180 = vmatmul.bf16.gmra.mxu0 %v1978
    %v2181 = vpop.f32.mrf.mxu0
    %v2182 = vadd.f32 0.0, %v2181
    %v2183 = vpop.f32.mrf.mxu0
    %2184 = vdwg.mxu0
    %2185 = vmatpush.bf16.msra.mxu0 %v1033
    %2186 = vmatpush.bf16.msra.mxu0 %v1029
    %2187 = vmatpush.bf16.msra.mxu0 %v1025
    %2188 = vmatpush.bf16.msra.mxu0 %v1021
    %2189 = vmatpush.bf16.msra.mxu0 %v1017
    %2190 = vmatpush.bf16.msra.mxu0 %v1013
    %2191 = vmatpush.bf16.msra.mxu0 %v1009
    %2192 = vmatpush.bf16.msra.mxu0 %v1005
    %2193 = vmatmul.bf16.gmra.mxu0 %v1978
    %v2194 = vpop.f32.mrf.mxu0
    %v2195 = vadd.f32 0.0, %v2194
    %v2196 = vpop.f32.mrf.mxu0
    %2197 = vdwg.mxu0
    %2198 = vmatpush.bf16.msra.mxu0 %v1034
    %2199 = vmatpush.bf16.msra.mxu0 %v1030
    %2200 = vmatpush.bf16.msra.mxu0 %v1026
    %2201 = vmatpush.bf16.msra.mxu0 %v1022
    %2202 = vmatpush.bf16.msra.mxu0 %v1018
    %2203 = vmatpush.bf16.msra.mxu0 %v1014
    %2204 = vmatpush.bf16.msra.mxu0 %v1010
    %2205 = vmatpush.bf16.msra.mxu0 %v1006
    %2206 = vmatmul.bf16.gmra.mxu0 %v1978
    %v2207 = vpop.f32.mrf.mxu0
    %v2208 = vadd.f32 0.0, %v2207
    %v2209 = vpop.f32.mrf.mxu0
    %2210 = vdwg.mxu0
    %v2211 = vadd.f32 %v2155, %v2169
    %v2212 = vadd.f32 %v2156, %v2182
    %v2213 = vadd.f32 %v2157, %v2195
    %v2214 = vadd.f32 %v2158, %v2208
    %v2215 = vxor.u32 %v2211, 2147483648
    %v2216 = vmul.f32 %v2215, 1.442695
    %v2217 = vpow.pop %v2216
    %v2218 = vadd.f32 %v2217, 1.0
    %v2219 = vrcp.pop %v2218
    %v2220 = vmul.f32 %v2218, %v2219
    %v2221 = vsub.f32 1.0, %v2220
    %v2222 = vmul.f32 %v2219, %v2221
    %v2223 = vadd.f32 %v2219, %v2222
    %vm2224 = vweird.f32 %v2218
    %vm2225 = vweird.f32 %v2219
    %vm2226 = vmor %vm2224, %vm2225
    %v2227 = vsel %vm2226, %v2219, %v2223
    %v2228 = vand.u32 2147483647, %v2218
    %vm2229 = vcmp.eq.f32.partialorder %v2228, 8.507059e+37
    %v2230 = vand.u32 %v2218, 2147483648
    %v2231 = vor.u32 1.1754944e-38, %v2230
    %v2232 = vsel %vm2229, %v2231, %v2227
    %v2233 = vmul.f32 1.0, %v2232
    %v2234 = vxor.u32 %v2212, 2147483648
    %v2235 = vmul.f32 %v2234, 1.442695
    %v2236 = vpow.pop %v2235
    %v2237 = vadd.f32 %v2236, 1.0
    %v2238 = vrcp.pop %v2237
    %v2239 = vmul.f32 %v2237, %v2238
    %v2240 = vsub.f32 1.0, %v2239
    %v2241 = vmul.f32 %v2238, %v2240
    %v2242 = vadd.f32 %v2238, %v2241
    %vm2243 = vweird.f32 %v2237
    %vm2244 = vweird.f32 %v2238
    %vm2245 = vmor %vm2243, %vm2244
    %v2246 = vsel %vm2245, %v2238, %v2242
    %v2247 = vand.u32 2147483647, %v2237
    %vm2248 = vcmp.eq.f32.partialorder %v2247, 8.507059e+37
    %v2249 = vand.u32 %v2237, 2147483648
    %v2250 = vor.u32 1.1754944e-38, %v2249
    %v2251 = vsel %vm2248, %v2250, %v2246
    %v2252 = vmul.f32 1.0, %v2251
    %v2253 = vtanh.pop %v2213
    %v2254 = vxor.u32 %v2214, 2147483648
    %v2255 = vmul.f32 %v2254, 1.442695
    %v2256 = vpow.pop %v2255
    %v2257 = vadd.f32 %v2256, 1.0
    %v2258 = vrcp.pop %v2257
    %v2259 = vmul.f32 %v2257, %v2258
    %v2260 = vsub.f32 1.0, %v2259
    %v2261 = vmul.f32 %v2258, %v2260
    %v2262 = vadd.f32 %v2258, %v2261
    %vm2263 = vweird.f32 %v2257
    %vm2264 = vweird.f32 %v2258
    %vm2265 = vmor %vm2263, %vm2264
    %v2266 = vsel %vm2265, %v2258, %v2262
    %v2267 = vand.u32 2147483647, %v2257
    %vm2268 = vcmp.eq.f32.partialorder %v2267, 8.507059e+37
    %v2269 = vand.u32 %v2257, 2147483648
    %v2270 = vor.u32 1.1754944e-38, %v2269
    %v2271 = vsel %vm2268, %v2270, %v2266
    %v2272 = vmul.f32 1.0, %v2271
    %v2273 = vmul.f32 %v2252, %v1975
    %v2274 = vmul.f32 %v2233, %v2253
    %v2275 = vadd.f32 %v2273, %v2274
    %v2276 = vtanh.pop %v2275
    %v2277 = vmul.f32 %v2272, %v2276
    %v2278 = vpack.c.bf16 %v2277, %v2277
    %2279 = vmatpush.bf16.msra.mxu0 %v715
    %2280 = vmatpush.bf16.msra.mxu0 %v711
    %2281 = vmatpush.bf16.msra.mxu0 %v707
    %2282 = vmatpush.bf16.msra.mxu0 %v703
    %2283 = vmatpush.bf16.msra.mxu0 %v699
    %2284 = vmatpush.bf16.msra.mxu0 %v695
    %2285 = vmatpush.bf16.msra.mxu0 %v691
    %2286 = vmatpush.bf16.msra.mxu0 %v687
    %2287 = vmatmul.bf16.gmra.mxu0 %v2278
    %v2288 = vpop.f32.mrf.mxu0
    %v2289 = vadd.f32 %v583, %v2288
    %v2290 = vpop.f32.mrf.mxu0
    %2291 = vdwg.mxu0
    %2292 = vmatpush.bf16.msra.mxu0 %v716
    %2293 = vmatpush.bf16.msra.mxu0 %v712
    %2294 = vmatpush.bf16.msra.mxu0 %v708
    %2295 = vmatpush.bf16.msra.mxu0 %v704
    %2296 = vmatpush.bf16.msra.mxu0 %v700
    %2297 = vmatpush.bf16.msra.mxu0 %v696
    %2298 = vmatpush.bf16.msra.mxu0 %v692
    %2299 = vmatpush.bf16.msra.mxu0 %v688
    %2300 = vmatmul.bf16.gmra.mxu0 %v2278
    %v2301 = vpop.f32.mrf.mxu0
    %v2302 = vadd.f32 %v584, %v2301
    %v2303 = vpop.f32.mrf.mxu0
    %2304 = vdwg.mxu0
    %2305 = vmatpush.bf16.msra.mxu0 %v717
    %2306 = vmatpush.bf16.msra.mxu0 %v713
    %2307 = vmatpush.bf16.msra.mxu0 %v709
    %2308 = vmatpush.bf16.msra.mxu0 %v705
    %2309 = vmatpush.bf16.msra.mxu0 %v701
    %2310 = vmatpush.bf16.msra.mxu0 %v697
    %2311 = vmatpush.bf16.msra.mxu0 %v693
    %2312 = vmatpush.bf16.msra.mxu0 %v689
    %2313 = vmatmul.bf16.gmra.mxu0 %v2278
    %v2314 = vpop.f32.mrf.mxu0
    %v2315 = vadd.f32 %v585, %v2314
    %v2316 = vpop.f32.mrf.mxu0
    %2317 = vdwg.mxu0
    %2318 = vmatpush.bf16.msra.mxu0 %v718
    %2319 = vmatpush.bf16.msra.mxu0 %v714
    %2320 = vmatpush.bf16.msra.mxu0 %v710
    %2321 = vmatpush.bf16.msra.mxu0 %v706
    %2322 = vmatpush.bf16.msra.mxu0 %v702
    %2323 = vmatpush.bf16.msra.mxu0 %v698
    %2324 = vmatpush.bf16.msra.mxu0 %v694
    %2325 = vmatpush.bf16.msra.mxu0 %v690
    %2326 = vmatmul.bf16.gmra.mxu0 %v2278
    %v2327 = vpop.f32.mrf.mxu0
    %v2328 = vadd.f32 %v586, %v2327
    %v2329 = vpop.f32.mrf.mxu0
    %2330 = vdwg.mxu0
    %2331 = vmatpush.bf16.msra.mxu0 %v1395
    %2332 = vmatpush.bf16.msra.mxu0 %v1391
    %2333 = vmatpush.bf16.msra.mxu0 %v1387
    %2334 = vmatpush.bf16.msra.mxu0 %v1383
    %2335 = vmatpush.bf16.msra.mxu0 %v1379
    %2336 = vmatpush.bf16.msra.mxu0 %v1375
    %2337 = vmatpush.bf16.msra.mxu0 %v1371
    %2338 = vmatpush.bf16.msra.mxu0 %v1367
    %2339 = vmatmul.bf16.gmra.mxu0 %v2150
    %v2340 = vpop.f32.mrf.mxu0
    %v2341 = vadd.f32 0.0, %v2340
    %v2342 = vpop.f32.mrf.mxu0
    %2343 = vdwg.mxu0
    %2344 = vmatpush.bf16.msra.mxu0 %v1396
    %2345 = vmatpush.bf16.msra.mxu0 %v1392
    %2346 = vmatpush.bf16.msra.mxu0 %v1388
    %2347 = vmatpush.bf16.msra.mxu0 %v1384
    %2348 = vmatpush.bf16.msra.mxu0 %v1380
    %2349 = vmatpush.bf16.msra.mxu0 %v1376
    %2350 = vmatpush.bf16.msra.mxu0 %v1372
    %2351 = vmatpush.bf16.msra.mxu0 %v1368
    %2352 = vmatmul.bf16.gmra.mxu0 %v2150
    %v2353 = vpop.f32.mrf.mxu0
    %v2354 = vadd.f32 0.0, %v2353
    %v2355 = vpop.f32.mrf.mxu0
    %2356 = vdwg.mxu0
    %2357 = vmatpush.bf16.msra.mxu0 %v1397
    %2358 = vmatpush.bf16.msra.mxu0 %v1393
    %2359 = vmatpush.bf16.msra.mxu0 %v1389
    %2360 = vmatpush.bf16.msra.mxu0 %v1385
    %2361 = vmatpush.bf16.msra.mxu0 %v1381
    %2362 = vmatpush.bf16.msra.mxu0 %v1377
    %2363 = vmatpush.bf16.msra.mxu0 %v1373
    %2364 = vmatpush.bf16.msra.mxu0 %v1369
    %2365 = vmatmul.bf16.gmra.mxu0 %v2150
    %v2366 = vpop.f32.mrf.mxu0
    %v2367 = vadd.f32 0.0, %v2366
    %v2368 = vpop.f32.mrf.mxu0
    %2369 = vdwg.mxu0
    %2370 = vmatpush.bf16.msra.mxu0 %v1398
    %2371 = vmatpush.bf16.msra.mxu0 %v1394
    %2372 = vmatpush.bf16.msra.mxu0 %v1390
    %2373 = vmatpush.bf16.msra.mxu0 %v1386
    %2374 = vmatpush.bf16.msra.mxu0 %v1382
    %2375 = vmatpush.bf16.msra.mxu0 %v1378
    %2376 = vmatpush.bf16.msra.mxu0 %v1374
    %2377 = vmatpush.bf16.msra.mxu0 %v1370
    %2378 = vmatmul.bf16.gmra.mxu0 %v2150
    %v2379 = vpop.f32.mrf.mxu0
    %v2380 = vadd.f32 0.0, %v2379
    %v2381 = vpop.f32.mrf.mxu0
    %2382 = vdwg.mxu0
    %v2383 = vadd.f32 %v2289, %v2341
    %v2384 = vadd.f32 %v2302, %v2354
    %v2385 = vadd.f32 %v2315, %v2367
    %v2386 = vadd.f32 %v2328, %v2380
    %v2387 = vxor.u32 %v2383, 2147483648
    %v2388 = vmul.f32 %v2387, 1.442695
    %v2389 = vpow.pop %v2388
    %v2390 = vadd.f32 %v2389, 1.0
    %v2391 = vrcp.pop %v2390
    %v2392 = vmul.f32 %v2390, %v2391
    %v2393 = vsub.f32 1.0, %v2392
    %v2394 = vmul.f32 %v2391, %v2393
    %v2395 = vadd.f32 %v2391, %v2394
    %vm2396 = vweird.f32 %v2390
    %vm2397 = vweird.f32 %v2391
    %vm2398 = vmor %vm2396, %vm2397
    %v2399 = vsel %vm2398, %v2391, %v2395
    %v2400 = vand.u32 2147483647, %v2390
    %vm2401 = vcmp.eq.f32.partialorder %v2400, 8.507059e+37
    %v2402 = vand.u32 %v2390, 2147483648
    %v2403 = vor.u32 1.1754944e-38, %v2402
    %v2404 = vsel %vm2401, %v2403, %v2399
    %v2405 = vmul.f32 1.0, %v2404
    %v2406 = vxor.u32 %v2384, 2147483648
    %v2407 = vmul.f32 %v2406, 1.442695
    %v2408 = vpow.pop %v2407
    %v2409 = vadd.f32 %v2408, 1.0
    %v2410 = vrcp.pop %v2409
    %v2411 = vmul.f32 %v2409, %v2410
    %v2412 = vsub.f32 1.0, %v2411
    %v2413 = vmul.f32 %v2410, %v2412
    %v2414 = vadd.f32 %v2410, %v2413
    %vm2415 = vweird.f32 %v2409
    %vm2416 = vweird.f32 %v2410
    %vm2417 = vmor %vm2415, %vm2416
    %v2418 = vsel %vm2417, %v2410, %v2414
    %v2419 = vand.u32 2147483647, %v2409
    %vm2420 = vcmp.eq.f32.partialorder %v2419, 8.507059e+37
    %v2421 = vand.u32 %v2409, 2147483648
    %v2422 = vor.u32 1.1754944e-38, %v2421
    %v2423 = vsel %vm2420, %v2422, %v2418
    %v2424 = vmul.f32 1.0, %v2423
    %v2425 = vtanh.pop %v2385
    %v2426 = vxor.u32 %v2386, 2147483648
    %v2427 = vmul.f32 %v2426, 1.442695
    %v2428 = vpow.pop %v2427
    %v2429 = vadd.f32 %v2428, 1.0
    %v2430 = vrcp.pop %v2429
    %v2431 = vmul.f32 %v2429, %v2430
    %v2432 = vsub.f32 1.0, %v2431
    %v2433 = vmul.f32 %v2430, %v2432
    %v2434 = vadd.f32 %v2430, %v2433
    %vm2435 = vweird.f32 %v2429
    %vm2436 = vweird.f32 %v2430
    %vm2437 = vmor %vm2435, %vm2436
    %v2438 = vsel %vm2437, %v2430, %v2434
    %v2439 = vand.u32 2147483647, %v2429
    %vm2440 = vcmp.eq.f32.partialorder %v2439, 8.507059e+37
    %v2441 = vand.u32 %v2429, 2147483648
    %v2442 = vor.u32 1.1754944e-38, %v2441
    %v2443 = vsel %vm2440, %v2442, %v2438
    %v2444 = vmul.f32 1.0, %v2443
    %v2445 = vmul.f32 %v2424, %v2147
    %v2446 = vmul.f32 %v2405, %v2425
    %v2447 = vadd.f32 %v2445, %v2446
    %v2448 = vtanh.pop %v2447
    %v2449 = vmul.f32 %v2444, %v2448
    %v2450 = vpack.c.bf16 %v2449, %v2449
    %v2451 = vld [vmem:[#allocation2 + $0xa0] sm:$0xff]
    %v2452 = vld [vmem:[#allocation2 + $0xa8] sm:$0xff]
    %v2453 = vld [vmem:[#allocation2 + $0xb0] sm:$0xff]
    %v2454 = vld [vmem:[#allocation2 + $0xb8] sm:$0xff]
    %v2455 = vadd.f32 %v2451, %v474
    %v2456 = vadd.f32 %v2452, %v475
    %v2457 = vadd.f32 %v2453, %v476
    %v2458 = vadd.f32 %v2454, %v477
    %2459 = vmatpush.bf16.msra.mxu0 %v1031
    %2460 = vmatpush.bf16.msra.mxu0 %v1027
    %2461 = vmatpush.bf16.msra.mxu0 %v1023
    %2462 = vmatpush.bf16.msra.mxu0 %v1019
    %2463 = vmatpush.bf16.msra.mxu0 %v1015
    %2464 = vmatpush.bf16.msra.mxu0 %v1011
    %2465 = vmatpush.bf16.msra.mxu0 %v1007
    %2466 = vmatpush.bf16.msra.mxu0 %v1003
    %2467 = vmatmul.bf16.gmra.mxu0 %v2278
    %v2468 = vpop.f32.mrf.mxu0
    %v2469 = vadd.f32 0.0, %v2468
    %v2470 = vpop.f32.mrf.mxu0
    %2471 = vdwg.mxu0
    %2472 = vmatpush.bf16.msra.mxu0 %v1032
    %2473 = vmatpush.bf16.msra.mxu0 %v1028
    %2474 = vmatpush.bf16.msra.mxu0 %v1024
    %2475 = vmatpush.bf16.msra.mxu0 %v1020
    %2476 = vmatpush.bf16.msra.mxu0 %v1016
    %2477 = vmatpush.bf16.msra.mxu0 %v1012
    %2478 = vmatpush.bf16.msra.mxu0 %v1008
    %2479 = vmatpush.bf16.msra.mxu0 %v1004
    %2480 = vmatmul.bf16.gmra.mxu0 %v2278
    %v2481 = vpop.f32.mrf.mxu0
    %v2482 = vadd.f32 0.0, %v2481
    %v2483 = vpop.f32.mrf.mxu0
    %2484 = vdwg.mxu0
    %2485 = vmatpush.bf16.msra.mxu0 %v1033
    %2486 = vmatpush.bf16.msra.mxu0 %v1029
    %2487 = vmatpush.bf16.msra.mxu0 %v1025
    %2488 = vmatpush.bf16.msra.mxu0 %v1021
    %2489 = vmatpush.bf16.msra.mxu0 %v1017
    %2490 = vmatpush.bf16.msra.mxu0 %v1013
    %2491 = vmatpush.bf16.msra.mxu0 %v1009
    %2492 = vmatpush.bf16.msra.mxu0 %v1005
    %2493 = vmatmul.bf16.gmra.mxu0 %v2278
    %v2494 = vpop.f32.mrf.mxu0
    %v2495 = vadd.f32 0.0, %v2494
    %v2496 = vpop.f32.mrf.mxu0
    %2497 = vdwg.mxu0
    %2498 = vmatpush.bf16.msra.mxu0 %v1034
    %2499 = vmatpush.bf16.msra.mxu0 %v1030
    %2500 = vmatpush.bf16.msra.mxu0 %v1026
    %2501 = vmatpush.bf16.msra.mxu0 %v1022
    %2502 = vmatpush.bf16.msra.mxu0 %v1018
    %2503 = vmatpush.bf16.msra.mxu0 %v1014
    %2504 = vmatpush.bf16.msra.mxu0 %v1010
    %2505 = vmatpush.bf16.msra.mxu0 %v1006
    %2506 = vmatmul.bf16.gmra.mxu0 %v2278
    %v2507 = vpop.f32.mrf.mxu0
    %v2508 = vadd.f32 0.0, %v2507
    %v2509 = vpop.f32.mrf.mxu0
    %2510 = vdwg.mxu0
    %v2511 = vadd.f32 %v2455, %v2469
    %v2512 = vadd.f32 %v2456, %v2482
    %v2513 = vadd.f32 %v2457, %v2495
    %v2514 = vadd.f32 %v2458, %v2508
    %v2515 = vxor.u32 %v2511, 2147483648
    %v2516 = vmul.f32 %v2515, 1.442695
    %v2517 = vpow.pop %v2516
    %v2518 = vadd.f32 %v2517, 1.0
    %v2519 = vrcp.pop %v2518
    %v2520 = vmul.f32 %v2518, %v2519
    %v2521 = vsub.f32 1.0, %v2520
    %v2522 = vmul.f32 %v2519, %v2521
    %v2523 = vadd.f32 %v2519, %v2522
    %vm2524 = vweird.f32 %v2518
    %vm2525 = vweird.f32 %v2519
    %vm2526 = vmor %vm2524, %vm2525
    %v2527 = vsel %vm2526, %v2519, %v2523
    %v2528 = vand.u32 2147483647, %v2518
    %vm2529 = vcmp.eq.f32.partialorder %v2528, 8.507059e+37
    %v2530 = vand.u32 %v2518, 2147483648
    %v2531 = vor.u32 1.1754944e-38, %v2530
    %v2532 = vsel %vm2529, %v2531, %v2527
    %v2533 = vmul.f32 1.0, %v2532
    %v2534 = vxor.u32 %v2512, 2147483648
    %v2535 = vmul.f32 %v2534, 1.442695
    %v2536 = vpow.pop %v2535
    %v2537 = vadd.f32 %v2536, 1.0
    %v2538 = vrcp.pop %v2537
    %v2539 = vmul.f32 %v2537, %v2538
    %v2540 = vsub.f32 1.0, %v2539
    %v2541 = vmul.f32 %v2538, %v2540
    %v2542 = vadd.f32 %v2538, %v2541
    %vm2543 = vweird.f32 %v2537
    %vm2544 = vweird.f32 %v2538
    %vm2545 = vmor %vm2543, %vm2544
    %v2546 = vsel %vm2545, %v2538, %v2542
    %v2547 = vand.u32 2147483647, %v2537
    %vm2548 = vcmp.eq.f32.partialorder %v2547, 8.507059e+37
    %v2549 = vand.u32 %v2537, 2147483648
    %v2550 = vor.u32 1.1754944e-38, %v2549
    %v2551 = vsel %vm2548, %v2550, %v2546
    %v2552 = vmul.f32 1.0, %v2551
    %v2553 = vtanh.pop %v2513
    %v2554 = vxor.u32 %v2514, 2147483648
    %v2555 = vmul.f32 %v2554, 1.442695
    %v2556 = vpow.pop %v2555
    %v2557 = vadd.f32 %v2556, 1.0
    %v2558 = vrcp.pop %v2557
    %v2559 = vmul.f32 %v2557, %v2558
    %v2560 = vsub.f32 1.0, %v2559
    %v2561 = vmul.f32 %v2558, %v2560
    %v2562 = vadd.f32 %v2558, %v2561
    %vm2563 = vweird.f32 %v2557
    %vm2564 = vweird.f32 %v2558
    %vm2565 = vmor %vm2563, %vm2564
    %v2566 = vsel %vm2565, %v2558, %v2562
    %v2567 = vand.u32 2147483647, %v2557
    %vm2568 = vcmp.eq.f32.partialorder %v2567, 8.507059e+37
    %v2569 = vand.u32 %v2557, 2147483648
    %v2570 = vor.u32 1.1754944e-38, %v2569
    %v2571 = vsel %vm2568, %v2570, %v2566
    %v2572 = vmul.f32 1.0, %v2571
    %v2573 = vmul.f32 %v2552, %v2275
    %v2574 = vmul.f32 %v2533, %v2553
    %v2575 = vadd.f32 %v2573, %v2574
    %v2576 = vtanh.pop %v2575
    %v2577 = vmul.f32 %v2572, %v2576
    %v2578 = vpack.c.bf16 %v2577, %v2577
    %2579 = vmatpush.bf16.msra.mxu0 %v715
    %2580 = vmatpush.bf16.msra.mxu0 %v711
    %2581 = vmatpush.bf16.msra.mxu0 %v707
    %2582 = vmatpush.bf16.msra.mxu0 %v703
    %2583 = vmatpush.bf16.msra.mxu0 %v699
    %2584 = vmatpush.bf16.msra.mxu0 %v695
    %2585 = vmatpush.bf16.msra.mxu0 %v691
    %2586 = vmatpush.bf16.msra.mxu0 %v687
    %2587 = vmatmul.bf16.gmra.mxu0 %v2578
    %v2588 = vpop.f32.mrf.mxu0
    %v2589 = vadd.f32 %v583, %v2588
    %v2590 = vpop.f32.mrf.mxu0
    %2591 = vdwg.mxu0
    %2592 = vmatpush.bf16.msra.mxu0 %v716
    %2593 = vmatpush.bf16.msra.mxu0 %v712
    %2594 = vmatpush.bf16.msra.mxu0 %v708
    %2595 = vmatpush.bf16.msra.mxu0 %v704
    %2596 = vmatpush.bf16.msra.mxu0 %v700
    %2597 = vmatpush.bf16.msra.mxu0 %v696
    %2598 = vmatpush.bf16.msra.mxu0 %v692
    %2599 = vmatpush.bf16.msra.mxu0 %v688
    %2600 = vmatmul.bf16.gmra.mxu0 %v2578
    %v2601 = vpop.f32.mrf.mxu0
    %v2602 = vadd.f32 %v584, %v2601
    %v2603 = vpop.f32.mrf.mxu0
    %2604 = vdwg.mxu0
    %2605 = vmatpush.bf16.msra.mxu0 %v717
    %2606 = vmatpush.bf16.msra.mxu0 %v713
    %2607 = vmatpush.bf16.msra.mxu0 %v709
    %2608 = vmatpush.bf16.msra.mxu0 %v705
    %2609 = vmatpush.bf16.msra.mxu0 %v701
    %2610 = vmatpush.bf16.msra.mxu0 %v697
    %2611 = vmatpush.bf16.msra.mxu0 %v693
    %2612 = vmatpush.bf16.msra.mxu0 %v689
    %2613 = vmatmul.bf16.gmra.mxu0 %v2578
    %v2614 = vpop.f32.mrf.mxu0
    %v2615 = vadd.f32 %v585, %v2614
    %v2616 = vpop.f32.mrf.mxu0
    %2617 = vdwg.mxu0
    %2618 = vmatpush.bf16.msra.mxu0 %v718
    %2619 = vmatpush.bf16.msra.mxu0 %v714
    %2620 = vmatpush.bf16.msra.mxu0 %v710
    %2621 = vmatpush.bf16.msra.mxu0 %v706
    %2622 = vmatpush.bf16.msra.mxu0 %v702
    %2623 = vmatpush.bf16.msra.mxu0 %v698
    %2624 = vmatpush.bf16.msra.mxu0 %v694
    %2625 = vmatpush.bf16.msra.mxu0 %v690
    %2626 = vmatmul.bf16.gmra.mxu0 %v2578
    %v2627 = vpop.f32.mrf.mxu0
    %v2628 = vadd.f32 %v586, %v2627
    %v2629 = vpop.f32.mrf.mxu0
    %2630 = vdwg.mxu0
    %2631 = vmatpush.bf16.msra.mxu0 %v1395
    %2632 = vmatpush.bf16.msra.mxu0 %v1391
    %2633 = vmatpush.bf16.msra.mxu0 %v1387
    %2634 = vmatpush.bf16.msra.mxu0 %v1383
    %2635 = vmatpush.bf16.msra.mxu0 %v1379
    %2636 = vmatpush.bf16.msra.mxu0 %v1375
    %2637 = vmatpush.bf16.msra.mxu0 %v1371
    %2638 = vmatpush.bf16.msra.mxu0 %v1367
    %2639 = vmatmul.bf16.gmra.mxu0 %v2450
    %v2640 = vpop.f32.mrf.mxu0
    %v2641 = vadd.f32 0.0, %v2640
    %v2642 = vpop.f32.mrf.mxu0
    %2643 = vdwg.mxu0
    %2644 = vmatpush.bf16.msra.mxu0 %v1396
    %2645 = vmatpush.bf16.msra.mxu0 %v1392
    %2646 = vmatpush.bf16.msra.mxu0 %v1388
    %2647 = vmatpush.bf16.msra.mxu0 %v1384
    %2648 = vmatpush.bf16.msra.mxu0 %v1380
    %2649 = vmatpush.bf16.msra.mxu0 %v1376
    %2650 = vmatpush.bf16.msra.mxu0 %v1372
    %2651 = vmatpush.bf16.msra.mxu0 %v1368
    %2652 = vmatmul.bf16.gmra.mxu0 %v2450
    %v2653 = vpop.f32.mrf.mxu0
    %v2654 = vadd.f32 0.0, %v2653
    %v2655 = vpop.f32.mrf.mxu0
    %2656 = vdwg.mxu0
    %2657 = vmatpush.bf16.msra.mxu0 %v1397
    %2658 = vmatpush.bf16.msra.mxu0 %v1393
    %2659 = vmatpush.bf16.msra.mxu0 %v1389
    %2660 = vmatpush.bf16.msra.mxu0 %v1385
    %2661 = vmatpush.bf16.msra.mxu0 %v1381
    %2662 = vmatpush.bf16.msra.mxu0 %v1377
    %2663 = vmatpush.bf16.msra.mxu0 %v1373
    %2664 = vmatpush.bf16.msra.mxu0 %v1369
    %2665 = vmatmul.bf16.gmra.mxu0 %v2450
    %v2666 = vpop.f32.mrf.mxu0
    %v2667 = vadd.f32 0.0, %v2666
    %v2668 = vpop.f32.mrf.mxu0
    %2669 = vdwg.mxu0
    %2670 = vmatpush.bf16.msra.mxu0 %v1398
    %2671 = vmatpush.bf16.msra.mxu0 %v1394
    %2672 = vmatpush.bf16.msra.mxu0 %v1390
    %2673 = vmatpush.bf16.msra.mxu0 %v1386
    %2674 = vmatpush.bf16.msra.mxu0 %v1382
    %2675 = vmatpush.bf16.msra.mxu0 %v1378
    %2676 = vmatpush.bf16.msra.mxu0 %v1374
    %2677 = vmatpush.bf16.msra.mxu0 %v1370
    %2678 = vmatmul.bf16.gmra.mxu0 %v2450
    %v2679 = vpop.f32.mrf.mxu0
    %v2680 = vadd.f32 0.0, %v2679
    %v2681 = vpop.f32.mrf.mxu0
    %2682 = vdwg.mxu0
    %v2683 = vadd.f32 %v2589, %v2641
    %v2684 = vadd.f32 %v2602, %v2654
    %v2685 = vadd.f32 %v2615, %v2667
    %v2686 = vadd.f32 %v2628, %v2680
    %v2687 = vxor.u32 %v2683, 2147483648
    %v2688 = vmul.f32 %v2687, 1.442695
    %v2689 = vpow.pop %v2688
    %v2690 = vadd.f32 %v2689, 1.0
    %v2691 = vrcp.pop %v2690
    %v2692 = vmul.f32 %v2690, %v2691
    %v2693 = vsub.f32 1.0, %v2692
    %v2694 = vmul.f32 %v2691, %v2693
    %v2695 = vadd.f32 %v2691, %v2694
    %vm2696 = vweird.f32 %v2690
    %vm2697 = vweird.f32 %v2691
    %vm2698 = vmor %vm2696, %vm2697
    %v2699 = vsel %vm2698, %v2691, %v2695
    %v2700 = vand.u32 2147483647, %v2690
    %vm2701 = vcmp.eq.f32.partialorder %v2700, 8.507059e+37
    %v2702 = vand.u32 %v2690, 2147483648
    %v2703 = vor.u32 1.1754944e-38, %v2702
    %v2704 = vsel %vm2701, %v2703, %v2699
    %v2705 = vmul.f32 1.0, %v2704
    %v2706 = vxor.u32 %v2684, 2147483648
    %v2707 = vmul.f32 %v2706, 1.442695
    %v2708 = vpow.pop %v2707
    %v2709 = vadd.f32 %v2708, 1.0
    %v2710 = vrcp.pop %v2709
    %v2711 = vmul.f32 %v2709, %v2710
    %v2712 = vsub.f32 1.0, %v2711
    %v2713 = vmul.f32 %v2710, %v2712
    %v2714 = vadd.f32 %v2710, %v2713
    %vm2715 = vweird.f32 %v2709
    %vm2716 = vweird.f32 %v2710
    %vm2717 = vmor %vm2715, %vm2716
    %v2718 = vsel %vm2717, %v2710, %v2714
    %v2719 = vand.u32 2147483647, %v2709
    %vm2720 = vcmp.eq.f32.partialorder %v2719, 8.507059e+37
    %v2721 = vand.u32 %v2709, 2147483648
    %v2722 = vor.u32 1.1754944e-38, %v2721
    %v2723 = vsel %vm2720, %v2722, %v2718
    %v2724 = vmul.f32 1.0, %v2723
    %v2725 = vtanh.pop %v2685
    %v2726 = vxor.u32 %v2686, 2147483648
    %v2727 = vmul.f32 %v2726, 1.442695
    %v2728 = vpow.pop %v2727
    %v2729 = vadd.f32 %v2728, 1.0
    %v2730 = vrcp.pop %v2729
    %v2731 = vmul.f32 %v2729, %v2730
    %v2732 = vsub.f32 1.0, %v2731
    %v2733 = vmul.f32 %v2730, %v2732
    %v2734 = vadd.f32 %v2730, %v2733
    %vm2735 = vweird.f32 %v2729
    %vm2736 = vweird.f32 %v2730
    %vm2737 = vmor %vm2735, %vm2736
    %v2738 = vsel %vm2737, %v2730, %v2734
    %v2739 = vand.u32 2147483647, %v2729
    %vm2740 = vcmp.eq.f32.partialorder %v2739, 8.507059e+37
    %v2741 = vand.u32 %v2729, 2147483648
    %v2742 = vor.u32 1.1754944e-38, %v2741
    %v2743 = vsel %vm2740, %v2742, %v2738
    %v2744 = vmul.f32 1.0, %v2743
    %v2745 = vmul.f32 %v2724, %v2447
    %v2746 = vmul.f32 %v2705, %v2725
    %v2747 = vadd.f32 %v2745, %v2746
    %v2748 = vtanh.pop %v2747
    %v2749 = vmul.f32 %v2744, %v2748
    %v2750 = vpack.c.bf16 %v2749, %v2749
    %v2751 = vld [vmem:[#allocation2 + $0xc0] sm:$0xff]
    %v2752 = vld [vmem:[#allocation2 + $0xc8] sm:$0xff]
    %v2753 = vld [vmem:[#allocation2 + $0xd0] sm:$0xff]
    %v2754 = vld [vmem:[#allocation2 + $0xd8] sm:$0xff]
    %v2755 = vadd.f32 %v2751, %v474
    %v2756 = vadd.f32 %v2752, %v475
    %v2757 = vadd.f32 %v2753, %v476
    %v2758 = vadd.f32 %v2754, %v477
    %2759 = vmatpush.bf16.msra.mxu0 %v1031
    %2760 = vmatpush.bf16.msra.mxu0 %v1027
    %2761 = vmatpush.bf16.msra.mxu0 %v1023
    %2762 = vmatpush.bf16.msra.mxu0 %v1019
    %2763 = vmatpush.bf16.msra.mxu0 %v1015
    %2764 = vmatpush.bf16.msra.mxu0 %v1011
    %2765 = vmatpush.bf16.msra.mxu0 %v1007
    %2766 = vmatpush.bf16.msra.mxu0 %v1003
    %2767 = vmatmul.bf16.gmra.mxu0 %v2578
    %v2768 = vpop.f32.mrf.mxu0
    %v2769 = vadd.f32 0.0, %v2768
    %v2770 = vpop.f32.mrf.mxu0
    %2771 = vdwg.mxu0
    %2772 = vmatpush.bf16.msra.mxu0 %v1032
    %2773 = vmatpush.bf16.msra.mxu0 %v1028
    %2774 = vmatpush.bf16.msra.mxu0 %v1024
    %2775 = vmatpush.bf16.msra.mxu0 %v1020
    %2776 = vmatpush.bf16.msra.mxu0 %v1016
    %2777 = vmatpush.bf16.msra.mxu0 %v1012
    %2778 = vmatpush.bf16.msra.mxu0 %v1008
    %2779 = vmatpush.bf16.msra.mxu0 %v1004
    %2780 = vmatmul.bf16.gmra.mxu0 %v2578
    %v2781 = vpop.f32.mrf.mxu0
    %v2782 = vadd.f32 0.0, %v2781
    %v2783 = vpop.f32.mrf.mxu0
    %2784 = vdwg.mxu0
    %2785 = vmatpush.bf16.msra.mxu0 %v1033
    %2786 = vmatpush.bf16.msra.mxu0 %v1029
    %2787 = vmatpush.bf16.msra.mxu0 %v1025
    %2788 = vmatpush.bf16.msra.mxu0 %v1021
    %2789 = vmatpush.bf16.msra.mxu0 %v1017
    %2790 = vmatpush.bf16.msra.mxu0 %v1013
    %2791 = vmatpush.bf16.msra.mxu0 %v1009
    %2792 = vmatpush.bf16.msra.mxu0 %v1005
    %2793 = vmatmul.bf16.gmra.mxu0 %v2578
    %v2794 = vpop.f32.mrf.mxu0
    %v2795 = vadd.f32 0.0, %v2794
    %v2796 = vpop.f32.mrf.mxu0
    %2797 = vdwg.mxu0
    %2798 = vmatpush.bf16.msra.mxu0 %v1034
    %2799 = vmatpush.bf16.msra.mxu0 %v1030
    %2800 = vmatpush.bf16.msra.mxu0 %v1026
    %2801 = vmatpush.bf16.msra.mxu0 %v1022
    %2802 = vmatpush.bf16.msra.mxu0 %v1018
    %2803 = vmatpush.bf16.msra.mxu0 %v1014
    %2804 = vmatpush.bf16.msra.mxu0 %v1010
    %2805 = vmatpush.bf16.msra.mxu0 %v1006
    %2806 = vmatmul.bf16.gmra.mxu0 %v2578
    %v2807 = vpop.f32.mrf.mxu0
    %v2808 = vadd.f32 0.0, %v2807
    %v2809 = vpop.f32.mrf.mxu0
    %2810 = vdwg.mxu0
    %v2811 = vadd.f32 %v2755, %v2769
    %v2812 = vadd.f32 %v2756, %v2782
    %v2813 = vadd.f32 %v2757, %v2795
    %v2814 = vadd.f32 %v2758, %v2808
    %v2815 = vxor.u32 %v2811, 2147483648
    %v2816 = vmul.f32 %v2815, 1.442695
    %v2817 = vpow.pop %v2816
    %v2818 = vadd.f32 %v2817, 1.0
    %v2819 = vrcp.pop %v2818
    %v2820 = vmul.f32 %v2818, %v2819
    %v2821 = vsub.f32 1.0, %v2820
    %v2822 = vmul.f32 %v2819, %v2821
    %v2823 = vadd.f32 %v2819, %v2822
    %vm2824 = vweird.f32 %v2818
    %vm2825 = vweird.f32 %v2819
    %vm2826 = vmor %vm2824, %vm2825
    %v2827 = vsel %vm2826, %v2819, %v2823
    %v2828 = vand.u32 2147483647, %v2818
    %vm2829 = vcmp.eq.f32.partialorder %v2828, 8.507059e+37
    %v2830 = vand.u32 %v2818, 2147483648
    %v2831 = vor.u32 1.1754944e-38, %v2830
    %v2832 = vsel %vm2829, %v2831, %v2827
    %v2833 = vmul.f32 1.0, %v2832
    %v2834 = vxor.u32 %v2812, 2147483648
    %v2835 = vmul.f32 %v2834, 1.442695
    %v2836 = vpow.pop %v2835
    %v2837 = vadd.f32 %v2836, 1.0
    %v2838 = vrcp.pop %v2837
    %v2839 = vmul.f32 %v2837, %v2838
    %v2840 = vsub.f32 1.0, %v2839
    %v2841 = vmul.f32 %v2838, %v2840
    %v2842 = vadd.f32 %v2838, %v2841
    %vm2843 = vweird.f32 %v2837
    %vm2844 = vweird.f32 %v2838
    %vm2845 = vmor %vm2843, %vm2844
    %v2846 = vsel %vm2845, %v2838, %v2842
    %v2847 = vand.u32 2147483647, %v2837
    %vm2848 = vcmp.eq.f32.partialorder %v2847, 8.507059e+37
    %v2849 = vand.u32 %v2837, 2147483648
    %v2850 = vor.u32 1.1754944e-38, %v2849
    %v2851 = vsel %vm2848, %v2850, %v2846
    %v2852 = vmul.f32 1.0, %v2851
    %v2853 = vtanh.pop %v2813
    %v2854 = vxor.u32 %v2814, 2147483648
    %v2855 = vmul.f32 %v2854, 1.442695
    %v2856 = vpow.pop %v2855
    %v2857 = vadd.f32 %v2856, 1.0
    %v2858 = vrcp.pop %v2857
    %v2859 = vmul.f32 %v2857, %v2858
    %v2860 = vsub.f32 1.0, %v2859
    %v2861 = vmul.f32 %v2858, %v2860
    %v2862 = vadd.f32 %v2858, %v2861
    %vm2863 = vweird.f32 %v2857
    %vm2864 = vweird.f32 %v2858
    %vm2865 = vmor %vm2863, %vm2864
    %v2866 = vsel %vm2865, %v2858, %v2862
    %v2867 = vand.u32 2147483647, %v2857
    %vm2868 = vcmp.eq.f32.partialorder %v2867, 8.507059e+37
    %v2869 = vand.u32 %v2857, 2147483648
    %v2870 = vor.u32 1.1754944e-38, %v2869
    %v2871 = vsel %vm2868, %v2870, %v2866
    %v2872 = vmul.f32 1.0, %v2871
    %v2873 = vmul.f32 %v2852, %v2575
    %v2874 = vmul.f32 %v2833, %v2853
    %v2875 = vadd.f32 %v2873, %v2874
    %v2876 = vtanh.pop %v2875
    %v2877 = vmul.f32 %v2872, %v2876
    %v2878 = vpack.c.bf16 %v2877, %v2877
    %2879 = vmatpush.bf16.msra.mxu0 %v715
    %2880 = vmatpush.bf16.msra.mxu0 %v711
    %2881 = vmatpush.bf16.msra.mxu0 %v707
    %2882 = vmatpush.bf16.msra.mxu0 %v703
    %2883 = vmatpush.bf16.msra.mxu0 %v699
    %2884 = vmatpush.bf16.msra.mxu0 %v695
    %2885 = vmatpush.bf16.msra.mxu0 %v691
    %2886 = vmatpush.bf16.msra.mxu0 %v687
    %2887 = vmatmul.bf16.gmra.mxu0 %v2878
    %v2888 = vpop.f32.mrf.mxu0
    %v2889 = vadd.f32 %v583, %v2888
    %v2890 = vpop.f32.mrf.mxu0
    %2891 = vdwg.mxu0
    %2892 = vmatpush.bf16.msra.mxu0 %v716
    %2893 = vmatpush.bf16.msra.mxu0 %v712
    %2894 = vmatpush.bf16.msra.mxu0 %v708
    %2895 = vmatpush.bf16.msra.mxu0 %v704
    %2896 = vmatpush.bf16.msra.mxu0 %v700
    %2897 = vmatpush.bf16.msra.mxu0 %v696
    %2898 = vmatpush.bf16.msra.mxu0 %v692
    %2899 = vmatpush.bf16.msra.mxu0 %v688
    %2900 = vmatmul.bf16.gmra.mxu0 %v2878
    %v2901 = vpop.f32.mrf.mxu0
    %v2902 = vadd.f32 %v584, %v2901
    %v2903 = vpop.f32.mrf.mxu0
    %2904 = vdwg.mxu0
    %2905 = vmatpush.bf16.msra.mxu0 %v717
    %2906 = vmatpush.bf16.msra.mxu0 %v713
    %2907 = vmatpush.bf16.msra.mxu0 %v709
    %2908 = vmatpush.bf16.msra.mxu0 %v705
    %2909 = vmatpush.bf16.msra.mxu0 %v701
    %2910 = vmatpush.bf16.msra.mxu0 %v697
    %2911 = vmatpush.bf16.msra.mxu0 %v693
    %2912 = vmatpush.bf16.msra.mxu0 %v689
    %2913 = vmatmul.bf16.gmra.mxu0 %v2878
    %v2914 = vpop.f32.mrf.mxu0
    %v2915 = vadd.f32 %v585, %v2914
    %v2916 = vpop.f32.mrf.mxu0
    %2917 = vdwg.mxu0
    %2918 = vmatpush.bf16.msra.mxu0 %v718
    %2919 = vmatpush.bf16.msra.mxu0 %v714
    %2920 = vmatpush.bf16.msra.mxu0 %v710
    %2921 = vmatpush.bf16.msra.mxu0 %v706
    %2922 = vmatpush.bf16.msra.mxu0 %v702
    %2923 = vmatpush.bf16.msra.mxu0 %v698
    %2924 = vmatpush.bf16.msra.mxu0 %v694
    %2925 = vmatpush.bf16.msra.mxu0 %v690
    %2926 = vmatmul.bf16.gmra.mxu0 %v2878
    %v2927 = vpop.f32.mrf.mxu0
    %v2928 = vadd.f32 %v586, %v2927
    %v2929 = vpop.f32.mrf.mxu0
    %2930 = vdwg.mxu0
    %2931 = vmatpush.bf16.msra.mxu0 %v1395
    %2932 = vmatpush.bf16.msra.mxu0 %v1391
    %2933 = vmatpush.bf16.msra.mxu0 %v1387
    %2934 = vmatpush.bf16.msra.mxu0 %v1383
    %2935 = vmatpush.bf16.msra.mxu0 %v1379
    %2936 = vmatpush.bf16.msra.mxu0 %v1375
    %2937 = vmatpush.bf16.msra.mxu0 %v1371
    %2938 = vmatpush.bf16.msra.mxu0 %v1367
    %2939 = vmatmul.bf16.gmra.mxu0 %v2750
    %v2940 = vpop.f32.mrf.mxu0
    %v2941 = vadd.f32 0.0, %v2940
    %v2942 = vpop.f32.mrf.mxu0
    %2943 = vdwg.mxu0
    %2944 = vmatpush.bf16.msra.mxu0 %v1396
    %2945 = vmatpush.bf16.msra.mxu0 %v1392
    %2946 = vmatpush.bf16.msra.mxu0 %v1388
    %2947 = vmatpush.bf16.msra.mxu0 %v1384
    %2948 = vmatpush.bf16.msra.mxu0 %v1380
    %2949 = vmatpush.bf16.msra.mxu0 %v1376
    %2950 = vmatpush.bf16.msra.mxu0 %v1372
    %2951 = vmatpush.bf16.msra.mxu0 %v1368
    %2952 = vmatmul.bf16.gmra.mxu0 %v2750
    %v2953 = vpop.f32.mrf.mxu0
    %v2954 = vadd.f32 0.0, %v2953
    %v2955 = vpop.f32.mrf.mxu0
    %2956 = vdwg.mxu0
    %2957 = vmatpush.bf16.msra.mxu0 %v1397
    %2958 = vmatpush.bf16.msra.mxu0 %v1393
    %2959 = vmatpush.bf16.msra.mxu0 %v1389
    %2960 = vmatpush.bf16.msra.mxu0 %v1385
    %2961 = vmatpush.bf16.msra.mxu0 %v1381
    %2962 = vmatpush.bf16.msra.mxu0 %v1377
    %2963 = vmatpush.bf16.msra.mxu0 %v1373
    %2964 = vmatpush.bf16.msra.mxu0 %v1369
    %2965 = vmatmul.bf16.gmra.mxu0 %v2750
    %v2966 = vpop.f32.mrf.mxu0
    %v2967 = vadd.f32 0.0, %v2966
    %v2968 = vpop.f32.mrf.mxu0
    %2969 = vdwg.mxu0
    %2970 = vmatpush.bf16.msra.mxu0 %v1398
    %2971 = vmatpush.bf16.msra.mxu0 %v1394
    %2972 = vmatpush.bf16.msra.mxu0 %v1390
    %2973 = vmatpush.bf16.msra.mxu0 %v1386
    %2974 = vmatpush.bf16.msra.mxu0 %v1382
    %2975 = vmatpush.bf16.msra.mxu0 %v1378
    %2976 = vmatpush.bf16.msra.mxu0 %v1374
    %2977 = vmatpush.bf16.msra.mxu0 %v1370
    %2978 = vmatmul.bf16.gmra.mxu0 %v2750
    %v2979 = vpop.f32.mrf.mxu0
    %v2980 = vadd.f32 0.0, %v2979
    %v2981 = vpop.f32.mrf.mxu0
    %2982 = vdwg.mxu0
    %v2983 = vadd.f32 %v2889, %v2941
    %v2984 = vadd.f32 %v2902, %v2954
    %v2985 = vadd.f32 %v2915, %v2967
    %v2986 = vadd.f32 %v2928, %v2980
    %v2987 = vxor.u32 %v2983, 2147483648
    %v2988 = vmul.f32 %v2987, 1.442695
    %v2989 = vpow.pop %v2988
    %v2990 = vadd.f32 %v2989, 1.0
    %v2991 = vrcp.pop %v2990
    %v2992 = vmul.f32 %v2990, %v2991
    %v2993 = vsub.f32 1.0, %v2992
    %v2994 = vmul.f32 %v2991, %v2993
    %v2995 = vadd.f32 %v2991, %v2994
    %vm2996 = vweird.f32 %v2990
    %vm2997 = vweird.f32 %v2991
    %vm2998 = vmor %vm2996, %vm2997
    %v2999 = vsel %vm2998, %v2991, %v2995
    %v3000 = vand.u32 2147483647, %v2990
    %vm3001 = vcmp.eq.f32.partialorder %v3000, 8.507059e+37
    %v3002 = vand.u32 %v2990, 2147483648
    %v3003 = vor.u32 1.1754944e-38, %v3002
    %v3004 = vsel %vm3001, %v3003, %v2999
    %v3005 = vmul.f32 1.0, %v3004
    %v3006 = vxor.u32 %v2984, 2147483648
    %v3007 = vmul.f32 %v3006, 1.442695
    %v3008 = vpow.pop %v3007
    %v3009 = vadd.f32 %v3008, 1.0
    %v3010 = vrcp.pop %v3009
    %v3011 = vmul.f32 %v3009, %v3010
    %v3012 = vsub.f32 1.0, %v3011
    %v3013 = vmul.f32 %v3010, %v3012
    %v3014 = vadd.f32 %v3010, %v3013
    %vm3015 = vweird.f32 %v3009
    %vm3016 = vweird.f32 %v3010
    %vm3017 = vmor %vm3015, %vm3016
    %v3018 = vsel %vm3017, %v3010, %v3014
    %v3019 = vand.u32 2147483647, %v3009
    %vm3020 = vcmp.eq.f32.partialorder %v3019, 8.507059e+37
    %v3021 = vand.u32 %v3009, 2147483648
    %v3022 = vor.u32 1.1754944e-38, %v3021
    %v3023 = vsel %vm3020, %v3022, %v3018
    %v3024 = vmul.f32 1.0, %v3023
    %v3025 = vtanh.pop %v2985
    %v3026 = vxor.u32 %v2986, 2147483648
    %v3027 = vmul.f32 %v3026, 1.442695
    %v3028 = vpow.pop %v3027
    %v3029 = vadd.f32 %v3028, 1.0
    %v3030 = vrcp.pop %v3029
    %v3031 = vmul.f32 %v3029, %v3030
    %v3032 = vsub.f32 1.0, %v3031
    %v3033 = vmul.f32 %v3030, %v3032
    %v3034 = vadd.f32 %v3030, %v3033
    %vm3035 = vweird.f32 %v3029
    %vm3036 = vweird.f32 %v3030
    %vm3037 = vmor %vm3035, %vm3036
    %v3038 = vsel %vm3037, %v3030, %v3034
    %v3039 = vand.u32 2147483647, %v3029
    %vm3040 = vcmp.eq.f32.partialorder %v3039, 8.507059e+37
    %v3041 = vand.u32 %v3029, 2147483648
    %v3042 = vor.u32 1.1754944e-38, %v3041
    %v3043 = vsel %vm3040, %v3042, %v3038
    %v3044 = vmul.f32 1.0, %v3043
    %v3045 = vmul.f32 %v3024, %v2747
    %v3046 = vmul.f32 %v3005, %v3025
    %v3047 = vadd.f32 %v3045, %v3046
    %v3048 = vtanh.pop %v3047
    %v3049 = vmul.f32 %v3044, %v3048
    %v3050 = vpack.c.bf16 %v3049, %v3049
    %v3051 = vld [vmem:[#allocation2 + $0xe0] sm:$0xff]
    %v3052 = vld [vmem:[#allocation2 + $0xe8] sm:$0xff]
    %v3053 = vld [vmem:[#allocation2 + $0xf0] sm:$0xff]
    %v3054 = vld [vmem:[#allocation2 + $0xf8] sm:$0xff]
    %v3055 = vadd.f32 %v3051, %v474
    %v3056 = vadd.f32 %v3052, %v475
    %v3057 = vadd.f32 %v3053, %v476
    %v3058 = vadd.f32 %v3054, %v477
    %3059 = vmatpush.bf16.msra.mxu0 %v1031
    %3060 = vmatpush.bf16.msra.mxu0 %v1027
    %3061 = vmatpush.bf16.msra.mxu0 %v1023
    %3062 = vmatpush.bf16.msra.mxu0 %v1019
    %3063 = vmatpush.bf16.msra.mxu0 %v1015
    %3064 = vmatpush.bf16.msra.mxu0 %v1011
    %3065 = vmatpush.bf16.msra.mxu0 %v1007
    %3066 = vmatpush.bf16.msra.mxu0 %v1003
    %3067 = vmatmul.bf16.gmra.mxu0 %v2878
    %v3068 = vpop.f32.mrf.mxu0
    %v3069 = vadd.f32 0.0, %v3068
    %v3070 = vpop.f32.mrf.mxu0
    %3071 = vdwg.mxu0
    %3072 = vmatpush.bf16.msra.mxu0 %v1032
    %3073 = vmatpush.bf16.msra.mxu0 %v1028
    %3074 = vmatpush.bf16.msra.mxu0 %v1024
    %3075 = vmatpush.bf16.msra.mxu0 %v1020
    %3076 = vmatpush.bf16.msra.mxu0 %v1016
    %3077 = vmatpush.bf16.msra.mxu0 %v1012
    %3078 = vmatpush.bf16.msra.mxu0 %v1008
    %3079 = vmatpush.bf16.msra.mxu0 %v1004
    %3080 = vmatmul.bf16.gmra.mxu0 %v2878
    %v3081 = vpop.f32.mrf.mxu0
    %v3082 = vadd.f32 0.0, %v3081
    %v3083 = vpop.f32.mrf.mxu0
    %3084 = vdwg.mxu0
    %3085 = vmatpush.bf16.msra.mxu0 %v1033
    %3086 = vmatpush.bf16.msra.mxu0 %v1029
    %3087 = vmatpush.bf16.msra.mxu0 %v1025
    %3088 = vmatpush.bf16.msra.mxu0 %v1021
    %3089 = vmatpush.bf16.msra.mxu0 %v1017
    %3090 = vmatpush.bf16.msra.mxu0 %v1013
    %3091 = vmatpush.bf16.msra.mxu0 %v1009
    %3092 = vmatpush.bf16.msra.mxu0 %v1005
    %3093 = vmatmul.bf16.gmra.mxu0 %v2878
    %v3094 = vpop.f32.mrf.mxu0
    %v3095 = vadd.f32 0.0, %v3094
    %v3096 = vpop.f32.mrf.mxu0
    %3097 = vdwg.mxu0
    %3098 = vmatpush.bf16.msra.mxu0 %v1034
    %3099 = vmatpush.bf16.msra.mxu0 %v1030
    %3100 = vmatpush.bf16.msra.mxu0 %v1026
    %3101 = vmatpush.bf16.msra.mxu0 %v1022
    %3102 = vmatpush.bf16.msra.mxu0 %v1018
    %3103 = vmatpush.bf16.msra.mxu0 %v1014
    %3104 = vmatpush.bf16.msra.mxu0 %v1010
    %3105 = vmatpush.bf16.msra.mxu0 %v1006
    %3106 = vmatmul.bf16.gmra.mxu0 %v2878
    %v3107 = vpop.f32.mrf.mxu0
    %v3108 = vadd.f32 0.0, %v3107
    %v3109 = vpop.f32.mrf.mxu0
    %3110 = vdwg.mxu0
    %v3111 = vadd.f32 %v3055, %v3069
    %v3112 = vadd.f32 %v3056, %v3082
    %v3113 = vadd.f32 %v3057, %v3095
    %v3114 = vadd.f32 %v3058, %v3108
    %v3115 = vxor.u32 %v3111, 2147483648
    %v3116 = vmul.f32 %v3115, 1.442695
    %v3117 = vpow.pop %v3116
    %v3118 = vadd.f32 %v3117, 1.0
    %v3119 = vrcp.pop %v3118
    %v3120 = vmul.f32 %v3118, %v3119
    %v3121 = vsub.f32 1.0, %v3120
    %v3122 = vmul.f32 %v3119, %v3121
    %v3123 = vadd.f32 %v3119, %v3122
    %vm3124 = vweird.f32 %v3118
    %vm3125 = vweird.f32 %v3119
    %vm3126 = vmor %vm3124, %vm3125
    %v3127 = vsel %vm3126, %v3119, %v3123
    %v3128 = vand.u32 2147483647, %v3118
    %vm3129 = vcmp.eq.f32.partialorder %v3128, 8.507059e+37
    %v3130 = vand.u32 %v3118, 2147483648
    %v3131 = vor.u32 1.1754944e-38, %v3130
    %v3132 = vsel %vm3129, %v3131, %v3127
    %v3133 = vmul.f32 1.0, %v3132
    %v3134 = vxor.u32 %v3112, 2147483648
    %v3135 = vmul.f32 %v3134, 1.442695
    %v3136 = vpow.pop %v3135
    %v3137 = vadd.f32 %v3136, 1.0
    %v3138 = vrcp.pop %v3137
    %v3139 = vmul.f32 %v3137, %v3138
    %v3140 = vsub.f32 1.0, %v3139
    %v3141 = vmul.f32 %v3138, %v3140
    %v3142 = vadd.f32 %v3138, %v3141
    %vm3143 = vweird.f32 %v3137
    %vm3144 = vweird.f32 %v3138
    %vm3145 = vmor %vm3143, %vm3144
    %v3146 = vsel %vm3145, %v3138, %v3142
    %v3147 = vand.u32 2147483647, %v3137
    %vm3148 = vcmp.eq.f32.partialorder %v3147, 8.507059e+37
    %v3149 = vand.u32 %v3137, 2147483648
    %v3150 = vor.u32 1.1754944e-38, %v3149
    %v3151 = vsel %vm3148, %v3150, %v3146
    %v3152 = vmul.f32 1.0, %v3151
    %v3153 = vtanh.pop %v3113
    %v3154 = vxor.u32 %v3114, 2147483648
    %v3155 = vmul.f32 %v3154, 1.442695
    %v3156 = vpow.pop %v3155
    %v3157 = vadd.f32 %v3156, 1.0
    %v3158 = vrcp.pop %v3157
    %v3159 = vmul.f32 %v3157, %v3158
    %v3160 = vsub.f32 1.0, %v3159
    %v3161 = vmul.f32 %v3158, %v3160
    %v3162 = vadd.f32 %v3158, %v3161
    %vm3163 = vweird.f32 %v3157
    %vm3164 = vweird.f32 %v3158
    %vm3165 = vmor %vm3163, %vm3164
    %v3166 = vsel %vm3165, %v3158, %v3162
    %v3167 = vand.u32 2147483647, %v3157
    %vm3168 = vcmp.eq.f32.partialorder %v3167, 8.507059e+37
    %v3169 = vand.u32 %v3157, 2147483648
    %v3170 = vor.u32 1.1754944e-38, %v3169
    %v3171 = vsel %vm3168, %v3170, %v3166
    %v3172 = vmul.f32 1.0, %v3171
    %v3173 = vmul.f32 %v3152, %v2875
    %v3174 = vmul.f32 %v3133, %v3153
    %v3175 = vadd.f32 %v3173, %v3174
    %v3176 = vtanh.pop %v3175
    %v3177 = vmul.f32 %v3172, %v3176
    %v3178 = vpack.c.bf16 %v3177, %v3177
    %3179 = vmatpush.bf16.msra.mxu0 %v715
    %3180 = vmatpush.bf16.msra.mxu0 %v711
    %3181 = vmatpush.bf16.msra.mxu0 %v707
    %3182 = vmatpush.bf16.msra.mxu0 %v703
    %3183 = vmatpush.bf16.msra.mxu0 %v699
    %3184 = vmatpush.bf16.msra.mxu0 %v695
    %3185 = vmatpush.bf16.msra.mxu0 %v691
    %3186 = vmatpush.bf16.msra.mxu0 %v687
    %3187 = vmatmul.bf16.gmra.mxu0 %v3178
    %v3188 = vpop.f32.mrf.mxu0
    %v3189 = vadd.f32 %v583, %v3188
    %v3190 = vpop.f32.mrf.mxu0
    %3191 = vdwg.mxu0
    %3192 = vmatpush.bf16.msra.mxu0 %v716
    %3193 = vmatpush.bf16.msra.mxu0 %v712
    %3194 = vmatpush.bf16.msra.mxu0 %v708
    %3195 = vmatpush.bf16.msra.mxu0 %v704
    %3196 = vmatpush.bf16.msra.mxu0 %v700
    %3197 = vmatpush.bf16.msra.mxu0 %v696
    %3198 = vmatpush.bf16.msra.mxu0 %v692
    %3199 = vmatpush.bf16.msra.mxu0 %v688
    %3200 = vmatmul.bf16.gmra.mxu0 %v3178
    %v3201 = vpop.f32.mrf.mxu0
    %v3202 = vadd.f32 %v584, %v3201
    %v3203 = vpop.f32.mrf.mxu0
    %3204 = vdwg.mxu0
    %3205 = vmatpush.bf16.msra.mxu0 %v717
    %3206 = vmatpush.bf16.msra.mxu0 %v713
    %3207 = vmatpush.bf16.msra.mxu0 %v709
    %3208 = vmatpush.bf16.msra.mxu0 %v705
    %3209 = vmatpush.bf16.msra.mxu0 %v701
    %3210 = vmatpush.bf16.msra.mxu0 %v697
    %3211 = vmatpush.bf16.msra.mxu0 %v693
    %3212 = vmatpush.bf16.msra.mxu0 %v689
    %3213 = vmatmul.bf16.gmra.mxu0 %v3178
    %v3214 = vpop.f32.mrf.mxu0
    %v3215 = vadd.f32 %v585, %v3214
    %v3216 = vpop.f32.mrf.mxu0
    %3217 = vdwg.mxu0
    %3218 = vmatpush.bf16.msra.mxu0 %v718
    %3219 = vmatpush.bf16.msra.mxu0 %v714
    %3220 = vmatpush.bf16.msra.mxu0 %v710
    %3221 = vmatpush.bf16.msra.mxu0 %v706
    %3222 = vmatpush.bf16.msra.mxu0 %v702
    %3223 = vmatpush.bf16.msra.mxu0 %v698
    %3224 = vmatpush.bf16.msra.mxu0 %v694
    %3225 = vmatpush.bf16.msra.mxu0 %v690
    %3226 = vmatmul.bf16.gmra.mxu0 %v3178
    %v3227 = vpop.f32.mrf.mxu0
    %v3228 = vadd.f32 %v586, %v3227
    %v3229 = vpop.f32.mrf.mxu0
    %3230 = vdwg.mxu0
    %3231 = vmatpush.bf16.msra.mxu0 %v1395
    %3232 = vmatpush.bf16.msra.mxu0 %v1391
    %3233 = vmatpush.bf16.msra.mxu0 %v1387
    %3234 = vmatpush.bf16.msra.mxu0 %v1383
    %3235 = vmatpush.bf16.msra.mxu0 %v1379
    %3236 = vmatpush.bf16.msra.mxu0 %v1375
    %3237 = vmatpush.bf16.msra.mxu0 %v1371
    %3238 = vmatpush.bf16.msra.mxu0 %v1367
    %3239 = vmatmul.bf16.gmra.mxu0 %v3050
    %v3240 = vpop.f32.mrf.mxu0
    %v3241 = vadd.f32 0.0, %v3240
    %v3242 = vpop.f32.mrf.mxu0
    %3243 = vdwg.mxu0
    %3244 = vmatpush.bf16.msra.mxu0 %v1396
    %3245 = vmatpush.bf16.msra.mxu0 %v1392
    %3246 = vmatpush.bf16.msra.mxu0 %v1388
    %3247 = vmatpush.bf16.msra.mxu0 %v1384
    %3248 = vmatpush.bf16.msra.mxu0 %v1380
    %3249 = vmatpush.bf16.msra.mxu0 %v1376
    %3250 = vmatpush.bf16.msra.mxu0 %v1372
    %3251 = vmatpush.bf16.msra.mxu0 %v1368
    %3252 = vmatmul.bf16.gmra.mxu0 %v3050
    %v3253 = vpop.f32.mrf.mxu0
    %v3254 = vadd.f32 0.0, %v3253
    %v3255 = vpop.f32.mrf.mxu0
    %3256 = vdwg.mxu0
    %3257 = vmatpush.bf16.msra.mxu0 %v1397
    %3258 = vmatpush.bf16.msra.mxu0 %v1393
    %3259 = vmatpush.bf16.msra.mxu0 %v1389
    %3260 = vmatpush.bf16.msra.mxu0 %v1385
    %3261 = vmatpush.bf16.msra.mxu0 %v1381
    %3262 = vmatpush.bf16.msra.mxu0 %v1377
    %3263 = vmatpush.bf16.msra.mxu0 %v1373
    %3264 = vmatpush.bf16.msra.mxu0 %v1369
    %3265 = vmatmul.bf16.gmra.mxu0 %v3050
    %v3266 = vpop.f32.mrf.mxu0
    %v3267 = vadd.f32 0.0, %v3266
    %v3268 = vpop.f32.mrf.mxu0
    %3269 = vdwg.mxu0
    %3270 = vmatpush.bf16.msra.mxu0 %v1398
    %3271 = vmatpush.bf16.msra.mxu0 %v1394
    %3272 = vmatpush.bf16.msra.mxu0 %v1390
    %3273 = vmatpush.bf16.msra.mxu0 %v1386
    %3274 = vmatpush.bf16.msra.mxu0 %v1382
    %3275 = vmatpush.bf16.msra.mxu0 %v1378
    %3276 = vmatpush.bf16.msra.mxu0 %v1374
    %3277 = vmatpush.bf16.msra.mxu0 %v1370
    %3278 = vmatmul.bf16.gmra.mxu0 %v3050
    %v3279 = vpop.f32.mrf.mxu0
    %v3280 = vadd.f32 0.0, %v3279
    %v3281 = vpop.f32.mrf.mxu0
    %3282 = vdwg.mxu0
    %v3283 = vadd.f32 %v3189, %v3241
    %v3284 = vadd.f32 %v3202, %v3254
    %v3285 = vadd.f32 %v3215, %v3267
    %v3286 = vadd.f32 %v3228, %v3280
    %v3287 = vxor.u32 %v3283, 2147483648
    %v3288 = vmul.f32 %v3287, 1.442695
    %v3289 = vpow.pop %v3288
    %v3290 = vadd.f32 %v3289, 1.0
    %v3291 = vrcp.pop %v3290
    %v3292 = vmul.f32 %v3290, %v3291
    %v3293 = vsub.f32 1.0, %v3292
    %v3294 = vmul.f32 %v3291, %v3293
    %v3295 = vadd.f32 %v3291, %v3294
    %vm3296 = vweird.f32 %v3290
    %vm3297 = vweird.f32 %v3291
    %vm3298 = vmor %vm3296, %vm3297
    %v3299 = vsel %vm3298, %v3291, %v3295
    %v3300 = vand.u32 2147483647, %v3290
    %vm3301 = vcmp.eq.f32.partialorder %v3300, 8.507059e+37
    %v3302 = vand.u32 %v3290, 2147483648
    %v3303 = vor.u32 1.1754944e-38, %v3302
    %v3304 = vsel %vm3301, %v3303, %v3299
    %v3305 = vmul.f32 1.0, %v3304
    %v3306 = vxor.u32 %v3284, 2147483648
    %v3307 = vmul.f32 %v3306, 1.442695
    %v3308 = vpow.pop %v3307
    %v3309 = vadd.f32 %v3308, 1.0
    %v3310 = vrcp.pop %v3309
    %v3311 = vmul.f32 %v3309, %v3310
    %v3312 = vsub.f32 1.0, %v3311
    %v3313 = vmul.f32 %v3310, %v3312
    %v3314 = vadd.f32 %v3310, %v3313
    %vm3315 = vweird.f32 %v3309
    %vm3316 = vweird.f32 %v3310
    %vm3317 = vmor %vm3315, %vm3316
    %v3318 = vsel %vm3317, %v3310, %v3314
    %v3319 = vand.u32 2147483647, %v3309
    %vm3320 = vcmp.eq.f32.partialorder %v3319, 8.507059e+37
    %v3321 = vand.u32 %v3309, 2147483648
    %v3322 = vor.u32 1.1754944e-38, %v3321
    %v3323 = vsel %vm3320, %v3322, %v3318
    %v3324 = vmul.f32 1.0, %v3323
    %v3325 = vtanh.pop %v3285
    %v3326 = vxor.u32 %v3286, 2147483648
    %v3327 = vmul.f32 %v3326, 1.442695
    %v3328 = vpow.pop %v3327
    %v3329 = vadd.f32 %v3328, 1.0
    %v3330 = vrcp.pop %v3329
    %v3331 = vmul.f32 %v3329, %v3330
    %v3332 = vsub.f32 1.0, %v3331
    %v3333 = vmul.f32 %v3330, %v3332
    %v3334 = vadd.f32 %v3330, %v3333
    %vm3335 = vweird.f32 %v3329
    %vm3336 = vweird.f32 %v3330
    %vm3337 = vmor %vm3335, %vm3336
    %v3338 = vsel %vm3337, %v3330, %v3334
    %v3339 = vand.u32 2147483647, %v3329
    %vm3340 = vcmp.eq.f32.partialorder %v3339, 8.507059e+37
    %v3341 = vand.u32 %v3329, 2147483648
    %v3342 = vor.u32 1.1754944e-38, %v3341
    %v3343 = vsel %vm3340, %v3342, %v3338
    %v3344 = vmul.f32 1.0, %v3343
    %v3345 = vmul.f32 %v3324, %v3047
    %v3346 = vmul.f32 %v3305, %v3325
    %v3347 = vadd.f32 %v3345, %v3346
    %v3348 = vtanh.pop %v3347
    %v3349 = vmul.f32 %v3344, %v3348
    %v3350 = vpack.c.bf16 %v3349, %v3349
    %v3351 = vld [vmem:[%s7] sm:$0xf]
    %v3352 = vld [vmem:[%s7 + $0x4] sm:$0xf]
    %v3353 = vld [vmem:[%s7 + $0x8] sm:$0xf]
    %v3354 = vld [vmem:[%s7 + $0xc] sm:$0xf]
    %v3355 = vld [vmem:[%s7 + $0x10] sm:$0xf]
    %v3356 = vld [vmem:[%s7 + $0x14] sm:$0xf]
    %v3357 = vld [vmem:[%s7 + $0x18] sm:$0xf]
    %v3358 = vld [vmem:[%s7 + $0x1c] sm:$0xf]
    %v3359 = vld [vmem:[%s7 + $0x20] sm:$0xf]
    %v3360 = vld [vmem:[%s7 + $0x24] sm:$0xf]
    %v3361 = vld [vmem:[%s7 + $0x28] sm:$0xf]
    %v3362 = vld [vmem:[%s7 + $0x2c] sm:$0xf]
    %v3363 = vld [vmem:[%s7 + $0x30] sm:$0xf]
    %v3364 = vld [vmem:[%s7 + $0x34] sm:$0xf]
    %v3365 = vld [vmem:[%s7 + $0x38] sm:$0xf]
    %v3366 = vld [vmem:[%s7 + $0x3c] sm:$0xf]
    %v3367 = vld [vmem:[%s8] sm:$0x1]
    %v3369 = vperm.slane %v3367, 0
    %v3387 = vunpack.c.l.b16 %v3351
    %v3388 = vunpack.c.l.b16 %v3352
    %v3389 = vunpack.c.l.b16 %v3353
    %v3390 = vunpack.c.l.b16 %v3354
    %v3391 = vunpack.c.l.b16 %v3355
    %v3392 = vunpack.c.l.b16 %v3356
    %v3393 = vunpack.c.l.b16 %v3357
    %v3394 = vunpack.c.l.b16 %v3358
    %v3395 = vunpack.c.l.b16 %v3359
    %v3396 = vunpack.c.l.b16 %v3360
    %v3397 = vunpack.c.l.b16 %v3361
    %v3398 = vunpack.c.l.b16 %v3362
    %v3399 = vunpack.c.l.b16 %v3363
    %v3400 = vunpack.c.l.b16 %v3364
    %v3401 = vunpack.c.l.b16 %v3365
    %v3402 = vunpack.c.l.b16 %v3366
    %v3403 = vpack.c.b16 %v3388, %v3387
    %v3404 = vpack.c.b16 %v3390, %v3389
    %v3405 = vpack.c.b16 %v3392, %v3391
    %v3406 = vpack.c.b16 %v3394, %v3393
    %v3407 = vpack.c.b16 %v3396, %v3395
    %v3408 = vpack.c.b16 %v3398, %v3397
    %v3409 = vpack.c.b16 %v3400, %v3399
    %v3410 = vpack.c.b16 %v3402, %v3401
    %3419 = vmatpush.bf16.msra.mxu0 %v3410
    %3420 = vmatpush.bf16.msra.mxu0 %v3409
    %3421 = vmatpush.bf16.msra.mxu0 %v3408
    %3422 = vmatpush.bf16.msra.mxu0 %v3407
    %3423 = vmatpush.bf16.msra.mxu0 %v3406
    %3424 = vmatpush.bf16.msra.mxu0 %v3405
    %3425 = vmatpush.bf16.msra.mxu0 %v3404
    %3426 = vmatpush.bf16.msra.mxu0 %v3403
    %3427 = vmatmul.bf16.gmra.mxu0 %v3350
    %v3428 = vpop.f32.mrf.mxu0
    %v3429 = vadd.f32 %v3369, %v3428
    %v3430 = vpop.f32.mrf.mxu0
    %3431 = vdwg.mxu0
    %3432 = vst [vmem:[%s9] sm:$0xff] %v3429
    // Predicated region
    $region54: #{lstm_forward.1} parent=1 // pred_check
      _
    $region55: #{lstm_forward.1} parent=1 // pred_check_branch
      %3434 = sbr.rel (0) target = $region57
    $region56: #{lstm_forward.1} parent=1 // pred_region
      _
    $region57: #{lstm_forward.1} parent=1 // pred_fallthru
      _
    // Predicated region
    $region58: #{lstm_forward.1} parent=1 // pred_check
      _
    $region59: #{lstm_forward.1} parent=1 // pred_check_branch
      %3436 = sbr.rel (0) target = $region61
    $region60: #{lstm_forward.1} parent=1 // pred_region
      _
    $region61: #{lstm_forward.1} parent=1 // pred_fallthru
      _
    %3437 = vsyncpa [#allocation4], 1
    %3438 = vsyncpa [#allocation6], 1
    %3439 = vsyncpa [#allocation9], 1

</llo_original>
